<compile_context>
chip_gen: v7x
topology: tpu7x:2x2x1
jax: 0.10.0
libtpu: 0.0.40
codegen_flags: <defaults>
</compile_context>

<pallas_src>
import functools
import math

import jax
import jax.numpy as jnp
from jax.experimental import pallas as pl
from jax.experimental.pallas import tpu as pltpu


# ----------------------------- Pallas kernels -----------------------------

_TM_MAX = 256   # below this, the whole M extent is one block (no padding / slicing)
_LN_EPS = 1e-5


def _round_up(x, m):
    return ((x + m - 1) // m) * m


def _mm_bias_kernel(a_ref, b_ref, bias_ref, o_ref, *, act):
    acc = jnp.dot(a_ref[...].astype(jnp.bfloat16), b_ref[...].astype(jnp.bfloat16),
                  preferred_element_type=jnp.float32)
    acc = acc + bias_ref[...]
    if act == "relu":
        acc = jnp.maximum(acc, 0.0)
    o_ref[...] = acc


def _mm_bias_res_ln_kernel(a_ref, b_ref, bias_ref, r_ref, lnw_ref, lnb_ref, o_ref):
    acc = jnp.dot(a_ref[...].astype(jnp.bfloat16), b_ref[...].astype(jnp.bfloat16),
                  preferred_element_type=jnp.float32)
    h = acc + bias_ref[...] + r_ref[...]
    mu = jnp.mean(h, axis=-1, keepdims=True)
    var = jnp.mean((h - mu) ** 2, axis=-1, keepdims=True)
    o_ref[...] = (h - mu) * jax.lax.rsqrt(var + _LN_EPS) * lnw_ref[...] + lnb_ref[...]


def matmul_bias(a, b, bias, *, act="none"):
    """a: [M, K] f32, b: [K, N] f32, bias: [N] -> act(a@b + bias), f32."""
    M, K = a.shape
    N = b.shape[1]
    tm = M if M <= _TM_MAX else 128
    Mp = _round_up(M, tm)
    a_p = a if Mp == M else jnp.pad(a, ((0, Mp - M), (0, 0)))
    out = pl.pallas_call(
        functools.partial(_mm_bias_kernel, act=act),
        out_shape=jax.ShapeDtypeStruct((Mp, N), jnp.float32),
        grid=(Mp // tm,),
        in_specs=[
            pl.BlockSpec((tm, K), lambda i: (i, 0)),
            pl.BlockSpec((K, N), lambda i: (0, 0)),
            pl.BlockSpec((1, N), lambda i: (0, 0)),
        ],
        out_specs=pl.BlockSpec((tm, N), lambda i: (i, 0)),
        compiler_params=pltpu.CompilerParams(dimension_semantics=("parallel",)),
    )(a_p, b, bias.reshape(1, N))
    return out if Mp == M else out[:M]


def matmul_bias_res_ln(a, b, bias, residual, ln_w, ln_b):
    """LayerNorm(a@b + bias + residual) with weight/bias, fully fused."""
    M, K = a.shape
    N = b.shape[1]
    tm = M if M <= _TM_MAX else 128
    Mp = _round_up(M, tm)
    a_p = a if Mp == M else jnp.pad(a, ((0, Mp - M), (0, 0)))
    r_p = residual if Mp == M else jnp.pad(residual, ((0, Mp - M), (0, 0)))
    out = pl.pallas_call(
        _mm_bias_res_ln_kernel,
        out_shape=jax.ShapeDtypeStruct((Mp, N), jnp.float32),
        grid=(Mp // tm,),
        in_specs=[
            pl.BlockSpec((tm, K), lambda i: (i, 0)),
            pl.BlockSpec((K, N), lambda i: (0, 0)),
            pl.BlockSpec((1, N), lambda i: (0, 0)),
            pl.BlockSpec((tm, N), lambda i: (i, 0)),
            pl.BlockSpec((1, N), lambda i: (0, 0)),
            pl.BlockSpec((1, N), lambda i: (0, 0)),
        ],
        out_specs=pl.BlockSpec((tm, N), lambda i: (i, 0)),
        compiler_params=pltpu.CompilerParams(dimension_semantics=("parallel",)),
    )(a_p, b, bias.reshape(1, N), r_p, ln_w.reshape(1, N), ln_b.reshape(1, N))
    return out if Mp == M else out[:M]


def _attn_kernel(q_ref, k_ref, v_ref, o_ref, *, scale):
    q = q_ref[0].astype(jnp.bfloat16)                  # [H, L, Dh]
    k = k_ref[0].astype(jnp.bfloat16)
    v = v_ref[0].astype(jnp.bfloat16)
    s = jax.lax.dot_general(q, k, (((2,), (2,)), ((0,), (0,))),
                            preferred_element_type=jnp.float32) * scale   # [H, L, L]
    m = jnp.max(s, axis=-1, keepdims=True)
    p = jnp.exp(s - m)
    denom = jnp.sum(p, axis=-1, keepdims=True)
    p = p * pl.reciprocal(denom, approx=True)
    o_ref[0] = jax.lax.dot_general(p.astype(jnp.bfloat16), v, (((2,), (1,)), ((0,), (0,))),
                                   preferred_element_type=jnp.float32)


def pallas_attention(q, k, v):
    """q,k,v: [B, H, L, Dh] f32 -> softmax(q k^T / sqrt(Dh)) v, all heads per grid step."""
    B, H, L, Dh = q.shape
    scale = 1.0 / math.sqrt(Dh)
    spec = pl.BlockSpec((1, H, L, Dh), lambda i: (i, 0, 0, 0))
    return pl.pallas_call(
        functools.partial(_attn_kernel, scale=scale),
        out_shape=jax.ShapeDtypeStruct((B, H, L, Dh), jnp.float32),
        grid=(B,),
        in_specs=[spec, spec, spec],
        out_specs=pl.BlockSpec((1, H, L, Dh), lambda i: (i, 0, 0, 0)),
        compiler_params=pltpu.CompilerParams(dimension_semantics=("parallel",)),
    )(q, k, v)


# ----------------------------- layer helpers (channels-last glue) -----------------------------

def gelu(x):
    return jax.nn.gelu(x, approximate=False)   # exact erf form, matches nn.GELU()


def conv1d_cl(x, w, b, *, stride=1, padding=0, pad_mode="zeros", act="none"):
    """Channels-last conv. x: [B, L, Cin], w: [Cout, Cin, k] (PyTorch layout) -> [B, Lout, Cout]."""
    B, L, Cin = x.shape
    Cout, _, k = w.shape
    if k == 1 and stride == 1 and padding == 0:
        a = x.reshape(B * L, Cin)
        wm = w[:, :, 0].T                                  # [Cin, Cout]
        Lout = L
    else:
        if padding > 0:
            mode = "edge" if pad_mode == "replicate" else "constant"
            xp = jnp.pad(x, ((0, 0), (padding, padding), (0, 0)), mode=mode)
        else:
            xp = x
        Lp = xp.shape[1]
        Lout = (Lp - k) // stride + 1
        cols = [jax.lax.slice(xp, (0, j, 0),
                              (B, j + stride * (Lout - 1) + 1, Cin),
                              (1, stride, 1)) for j in range(k)]   # each [B, Lout, Cin]
        patches = jnp.stack(cols, axis=2)                  # [B, Lout, k, Cin]
        a = patches.reshape(B * Lout, k * Cin)
        wm = w.transpose(2, 1, 0).reshape(k * Cin, Cout)   # (j, ci) ordering matches patches
    out = matmul_bias(a, wm, b, act=act)
    return out.reshape(B, Lout, Cout)


def conv_transpose1d_k2s2_cl(x, w, b):
    """x: [B, L, Cin], w: [Cin, Cout, 2], b: [Cout] -> [B, 2L, Cout] (single fused matmul)."""
    B, L, Cin = x.shape
    Cout = w.shape[1]
    wm = w.transpose(0, 2, 1).reshape(Cin, 2 * Cout)       # columns ordered (t, co)
    bias = jnp.concatenate([b, b])
    out = matmul_bias(x.reshape(B * L, Cin), wm, bias)     # [B*L, 2*Cout]
    return out.reshape(B, 2 * L, Cout)                     # (l, t) interleave -> position 2l+t


# ----------------------------- parameter construction -----------------------------

class ParamGen:
    def __init__(self, seed):
        self.key = jax.random.PRNGKey(seed)

    def __call__(self, shape, scale=0.05):
        self.key, sub = jax.random.split(self.key)
        return scale * jax.random.normal(sub, shape, dtype=jnp.float32)


KSIZES = (3, 5, 7)


def init_wavelet_block(g, ch):
    p = {}
    for k in KSIZES:
        p[f"conv{k}_w"] = g((ch, ch, k))
        p[f"conv{k}_b"] = g((ch,))
    p["fusion_w"] = g((ch, ch * len(KSIZES), 1))
    p["fusion_b"] = g((ch,))
    p["bn_w"] = jnp.ones((ch,), jnp.float32)
    p["bn_b"] = jnp.zeros((ch,), jnp.float32)
    p["bn_mean"] = jnp.zeros((ch,), jnp.float32)
    p["bn_var"] = jnp.ones((ch,), jnp.float32)
    return p


def init_unet(g, C, H, nb):
    p = {"input_w": g((H, C, 7)), "input_b": g((H,)),
         "enc": [], "down": [], "up": [], "dec": []}
    ch = H
    for _ in range(nb):
        p["enc"].append(init_wavelet_block(g, ch))
        p["down"].append({"w": g((2 * ch, ch, 2)), "b": g((2 * ch,))})
        ch *= 2
    p["mid"] = init_wavelet_block(g, ch)
    for _ in range(nb):
        p["up"].append({"w": g((ch, ch // 2, 2)), "b": g((ch // 2,))})  # ConvTranspose1d [Cin, Cout, k]
        ch //= 2
        p["dec"].append(init_wavelet_block(g, ch))
    p["output_w"] = g((C, H, 7))
    p["output_b"] = g((C,))
    return p


def init_transformer(g, C, d, nlayers, dff=512):
    p = {"input_w": g((d, C, 1)), "input_b": g((d,)),
         "layers": [],
         "output_w": g((C, d, 1)), "output_b": g((C,))}
    for _ in range(nlayers):
        p["layers"].append({
            "in_proj_w": g((3 * d, d)), "in_proj_b": g((3 * d,)),
            "out_proj_w": g((d, d)), "out_proj_b": g((d,)),
            "lin1_w": g((dff, d)), "lin1_b": g((dff,)),
            "lin2_w": g((d, dff)), "lin2_b": g((d,)),
            "ln1_w": jnp.ones((d,), jnp.float32), "ln1_b": jnp.zeros((d,), jnp.float32),
            "ln2_w": jnp.ones((d,), jnp.float32), "ln2_b": jnp.zeros((d,), jnp.float32),
        })
    return p


def init_hybrid(g, C, H, d, ntl, nwb):
    return {
        "unet": init_unet(g, C, H, nwb),
        "transformer": init_transformer(g, C, d, ntl),
        "fuse1_w": g((H, 2 * C, 1)), "fuse1_b": g((H,)),
        "fuse2_w": g((C, H, 1)), "fuse2_b": g((C,)),
    }


# ----------------------------- forward passes -----------------------------

def wavelet_block_cl(x, p, eps=1e-5):
    """Branch convs (k=3/5/7, replicate pad) + concat + 1x1 fusion + eval-BN folded into
    ONE k=7 replicate-pad conv (exact in eval mode), then erf-GELU + residual."""
    ch = x.shape[-1]
    f = p["fusion_w"][:, :, 0]                            # [ch, 3*ch]
    W = jnp.zeros((ch, ch, 7), jnp.float32)
    bias = p["fusion_b"]
    for bi, k in enumerate(KSIZES):
        fb = f[:, bi * ch:(bi + 1) * ch]                  # [ch, ch]
        off = (7 - k) // 2
        W = W.at[:, :, off:off + k].add(jnp.einsum("oc,cij->oij", fb, p[f"conv{k}_w"]))
        bias = bias + fb @ p[f"conv{k}_b"]
    s = p["bn_w"] / jnp.sqrt(p["bn_var"] + eps)           # fold eval-BatchNorm
    t = p["bn_b"] - p["bn_mean"] * s
    W = W * s[:, None, None]
    bias = bias * s + t
    z = conv1d_cl(x, W, bias, padding=3, pad_mode="replicate")
    return gelu(z) + x


def unet_forward(x, p):
    x = conv1d_cl(x, p["input_w"], p["input_b"], padding=3, pad_mode="replicate")
    skips = []
    for enc, down in zip(p["enc"], p["down"]):
        x = wavelet_block_cl(x, enc)
        skips.append(x)
        x = conv1d_cl(x, down["w"], down["b"], stride=2)
    x = wavelet_block_cl(x, p["mid"])
    for dec, up, skip in zip(p["dec"], p["up"], reversed(skips)):
        x = conv_transpose1d_k2s2_cl(x, up["w"], up["b"])
        if x.shape[1] != skip.shape[1]:
            x = jnp.pad(x, ((0, 0), (0, skip.shape[1] - x.shape[1]), (0, 0)))
        x = x + skip
        x = wavelet_block_cl(x, dec)
    return conv1d_cl(x, p["output_w"], p["output_b"], padding=3, pad_mode="replicate")


def positional_encoding(L, d):
    pos = jnp.arange(L, dtype=jnp.float32)[:, None]
    div = jnp.exp(jnp.arange(0, d, 2, dtype=jnp.float32) * (-math.log(10000.0) / d))
    pe = jnp.zeros((L, d), jnp.float32)
    pe = pe.at[:, 0::2].set(jnp.sin(pos * div))
    pe = pe.at[:, 1::2].set(jnp.cos(pos * div))
    return pe


def encoder_layer(h, p, nhead):
    """Post-norm TransformerEncoderLayer, ReLU FF, dropout = identity (eval)."""
    B, L, d = h.shape
    Dh = d // nhead
    xm = h.reshape(B * L, d)
    qkv = matmul_bias(xm, p["in_proj_w"].T, p["in_proj_b"])          # [B*L, 3d]
    q, k, v = jnp.split(qkv, 3, axis=-1)

    def heads(t):
        return t.reshape(B, L, nhead, Dh).transpose(0, 2, 1, 3)      # [B, H, L, Dh]

    o = pallas_attention(heads(q), heads(k), heads(v))               # [B, H, L, Dh]
    o = o.transpose(0, 2, 1, 3).reshape(B * L, d)
    # out-proj + residual + LayerNorm fused in one kernel
    x1 = matmul_bias_res_ln(o, p["out_proj_w"].T, p["out_proj_b"], xm, p["ln1_w"], p["ln1_b"])
    ff = matmul_bias(x1, p["lin1_w"].T, p["lin1_b"], act="relu")
    # second linear + residual + LayerNorm fused
    x2 = matmul_bias_res_ln(ff, p["lin2_w"].T, p["lin2_b"], x1, p["ln2_w"], p["ln2_b"])
    return x2.reshape(B, L, d)


def transformer_forward(x, p, nhead):
    B, L, C = x.shape
    h = conv1d_cl(x, p["input_w"], p["input_b"])                     # 1x1 conv == matmul
    d = h.shape[-1]
    h = h + positional_encoding(L, d)[None]
    for lp in p["layers"]:
        h = encoder_layer(h, lp, nhead)
    return conv1d_cl(h, p["output_w"], p["output_b"])                # [B, L, C]


def hybrid_forward(x, params, nhead):
    # x arrives in PyTorch NCL layout; go channels-last once, come back once.
    xc = x.transpose(0, 2, 1)                                        # [B, L, C]
    w_out = unet_forward(xc, params["unet"])                         # [B, L, C]
    t_out = transformer_forward(xc, params["transformer"], nhead)    # [B, L, C]
    comb = jnp.concatenate([w_out, t_out], axis=-1)                  # [B, L, 2C]
    h = conv1d_cl(comb, params["fuse1_w"], params["fuse1_b"])
    h = gelu(h)
    out = conv1d_cl(h, params["fuse2_w"], params["fuse2_b"])
    return out.transpose(0, 2, 1)                                    # [B, C, L]


# ----------------------------- main -----------------------------

if __name__ == "__main__":
    # small but shape-consistent config: L divisible by 2**num_wavelet_blocks
    B, C, L = 2, 4, 32
    H_CH, D_MODEL, NHEAD, N_TLAYERS, N_WBLOCKS = 16, 32, 4, 2, 2

    gen = ParamGen(seed=1)
    params = init_hybrid(gen, C, H_CH, D_MODEL, N_TLAYERS, N_WBLOCKS)

    x = jax.random.normal(jax.random.PRNGKey(0), (B, C, L), dtype=jnp.float32)

    fwd = jax.jit(functools.partial(hybrid_forward, nhead=NHEAD))
    out = fwd(x, params)
    out = jax.block_until_ready(out)

    assert out.shape == (B, C, L), out.shape
    assert bool(jnp.all(jnp.isfinite(out)))
    print("KERNEL_OK")
</pallas_src>

<mosaic_0001>
module attributes {stable_mosaic.version = 11 : i64} {
  func.func @_mm_bias_kernel(%arg0: i32, %arg1: memref<64x28xf32, #tpu.memory_space<vmem>>, %arg2: memref<28x16xf32, #tpu.memory_space<vmem>>, %arg3: memref<1x16xf32, #tpu.memory_space<vmem>>, %arg4: memref<64x16xf32, #tpu.memory_space<vmem>>) attributes {dimension_semantics = [#tpu.dimension_semantics<parallel>], iteration_bounds = array<i64: 1>, scalar_prefetch = 0 : i64, scratch_operands = 0 : i64, tpu.core_type = #tpu.core_type<tc>, window_params = [{transform_indices = @transform_0, window_bounds = array<i64: 64, 28>}, {pipeline_mode = #tpu.pipeline_mode<synchronous>, transform_indices = @transform_1, window_bounds = array<i64: 28, 16>}, {pipeline_mode = #tpu.pipeline_mode<synchronous>, transform_indices = @transform_2, window_bounds = array<i64: 1, 16>}, {transform_indices = @transform_3, window_bounds = array<i64: 64, 16>}]} {
    %c0 = arith.constant 0 : index
    %c0_0 = arith.constant 0 : index
    %0 = vector.load %arg1[%c0, %c0_0] : memref<64x28xf32, #tpu.memory_space<vmem>>, vector<64x28xf32>
    %1 = arith.truncf %0 : vector<64x28xf32> to vector<64x28xbf16>
    %c0_1 = arith.constant 0 : index
    %c0_2 = arith.constant 0 : index
    %2 = vector.load %arg2[%c0_1, %c0_2] : memref<28x16xf32, #tpu.memory_space<vmem>>, vector<28x16xf32>
    %3 = arith.truncf %2 : vector<28x16xf32> to vector<28x16xbf16>
    %cst = arith.constant dense<0.000000e+00> : vector<64x16xf32>
    %4 = tpu.matmul %1, %3, %cst {dimension_numbers = #tpu.dot_dimension_numbers<[1], [0], [0], [1], [0, 0, 1, 1], [], []>} : vector<64x28xbf16>, vector<28x16xbf16>, vector<64x16xf32> -> vector<64x16xf32>
    %c0_3 = arith.constant 0 : index
    %c0_4 = arith.constant 0 : index
    %5 = vector.load %arg3[%c0_3, %c0_4] : memref<1x16xf32, #tpu.memory_space<vmem>>, vector<1x16xf32>
    %6 = vector.broadcast %5 : vector<1x16xf32> to vector<64x16xf32>
    %7 = arith.addf %4, %6 : vector<64x16xf32>
    %c0_5 = arith.constant 0 : index
    %c0_6 = arith.constant 0 : index
    %8 = vector.load %arg4[%c0_5, %c0_6] : memref<64x16xf32, #tpu.memory_space<vmem>>, vector<64x16xf32>
    tpu.vector_store %arg4[%c0_5, %c0_6], %7 {strides = array<i32>} : memref<64x16xf32, #tpu.memory_space<vmem>>, vector<64x16xf32>,
    return
  }
  func.func @transform_0(%arg0: i32) -> (i32, i32) {
    %c0_i32 = arith.constant 0 : i32
    %c0_i32_0 = arith.constant 0 : i32
    return %arg0, %c0_i32 : i32, i32
  }
  func.func @transform_1(%arg0: i32) -> (i32, i32) {
    %c0_i32 = arith.constant 0 : i32
    %c0_i32_0 = arith.constant 0 : i32
    %c0_i32_1 = arith.constant 0 : i32
    return %c0_i32, %c0_i32_0 : i32, i32
  }
  func.func @transform_2(%arg0: i32) -> (i32, i32) {
    %c0_i32 = arith.constant 0 : i32
    %c0_i32_0 = arith.constant 0 : i32
    %c0_i32_1 = arith.constant 0 : i32
    return %c0_i32, %c0_i32_0 : i32, i32
  }
  func.func @transform_3(%arg0: i32) -> (i32, i32) {
    %c0_i32 = arith.constant 0 : i32
    %c0_i32_0 = arith.constant 0 : i32
    return %arg0, %c0_i32 : i32, i32
  }
}

module attributes {stable_mosaic.version = 11 : i64} {
  func.func @_mm_bias_kernel(%arg0: i32, %arg1: memref<64x112xf32, #tpu.memory_space<vmem>>, %arg2: memref<112x16xf32, #tpu.memory_space<vmem>>, %arg3: memref<1x16xf32, #tpu.memory_space<vmem>>, %arg4: memref<64x16xf32, #tpu.memory_space<vmem>>) attributes {dimension_semantics = [#tpu.dimension_semantics<parallel>], iteration_bounds = array<i64: 1>, scalar_prefetch = 0 : i64, scratch_operands = 0 : i64, tpu.core_type = #tpu.core_type<tc>, window_params = [{transform_indices = @transform_0, window_bounds = array<i64: 64, 112>}, {pipeline_mode = #tpu.pipeline_mode<synchronous>, transform_indices = @transform_1, window_bounds = array<i64: 112, 16>}, {pipeline_mode = #tpu.pipeline_mode<synchronous>, transform_indices = @transform_2, window_bounds = array<i64: 1, 16>}, {transform_indices = @transform_3, window_bounds = array<i64: 64, 16>}]} {
    %c0 = arith.constant 0 : index
    %c0_0 = arith.constant 0 : index
    %0 = vector.load %arg1[%c0, %c0_0] : memref<64x112xf32, #tpu.memory_space<vmem>>, vector<64x112xf32>
    %1 = arith.truncf %0 : vector<64x112xf32> to vector<64x112xbf16>
    %c0_1 = arith.constant 0 : index
    %c0_2 = arith.constant 0 : index
    %2 = vector.load %arg2[%c0_1, %c0_2] : memref<112x16xf32, #tpu.memory_space<vmem>>, vector<112x16xf32>
    %3 = arith.truncf %2 : vector<112x16xf32> to vector<112x16xbf16>
    %cst = arith.constant dense<0.000000e+00> : vector<64x16xf32>
    %4 = tpu.matmul %1, %3, %cst {dimension_numbers = #tpu.dot_dimension_numbers<[1], [0], [0], [1], [0, 0, 1, 1], [], []>} : vector<64x112xbf16>, vector<112x16xbf16>, vector<64x16xf32> -> vector<64x16xf32>
    %c0_3 = arith.constant 0 : index
    %c0_4 = arith.constant 0 : index
    %5 = vector.load %arg3[%c0_3, %c0_4] : memref<1x16xf32, #tpu.memory_space<vmem>>, vector<1x16xf32>
    %6 = vector.broadcast %5 : vector<1x16xf32> to vector<64x16xf32>
    %7 = arith.addf %4, %6 : vector<64x16xf32>
    %c0_5 = arith.constant 0 : index
    %c0_6 = arith.constant 0 : index
    %8 = vector.load %arg4[%c0_5, %c0_6] : memref<64x16xf32, #tpu.memory_space<vmem>>, vector<64x16xf32>
    tpu.vector_store %arg4[%c0_5, %c0_6], %7 {strides = array<i32>} : memref<64x16xf32, #tpu.memory_space<vmem>>, vector<64x16xf32>,
    return
  }
  func.func @transform_0(%arg0: i32) -> (i32, i32) {
    %c0_i32 = arith.constant 0 : i32
    %c0_i32_0 = arith.constant 0 : i32
    return %arg0, %c0_i32 : i32, i32
  }
  func.func @transform_1(%arg0: i32) -> (i32, i32) {
    %c0_i32 = arith.constant 0 : i32
    %c0_i32_0 = arith.constant 0 : i32
    %c0_i32_1 = arith.constant 0 : i32
    return %c0_i32, %c0_i32_0 : i32, i32
  }
  func.func @transform_2(%arg0: i32) -> (i32, i32) {
    %c0_i32 = arith.constant 0 : i32
    %c0_i32_0 = arith.constant 0 : i32
    %c0_i32_1 = arith.constant 0 : i32
    return %c0_i32, %c0_i32_0 : i32, i32
  }
  func.func @transform_3(%arg0: i32) -> (i32, i32) {
    %c0_i32 = arith.constant 0 : i32
    %c0_i32_0 = arith.constant 0 : i32
    return %arg0, %c0_i32 : i32, i32
  }
}

module attributes {stable_mosaic.version = 11 : i64} {
  func.func @_mm_bias_kernel(%arg0: i32, %arg1: memref<32x32xf32, #tpu.memory_space<vmem>>, %arg2: memref<32x32xf32, #tpu.memory_space<vmem>>, %arg3: memref<1x32xf32, #tpu.memory_space<vmem>>, %arg4: memref<32x32xf32, #tpu.memory_space<vmem>>) attributes {dimension_semantics = [#tpu.dimension_semantics<parallel>], iteration_bounds = array<i64: 1>, scalar_prefetch = 0 : i64, scratch_operands = 0 : i64, tpu.core_type = #tpu.core_type<tc>, window_params = [{transform_indices = @transform_0, window_bounds = array<i64: 32, 32>}, {pipeline_mode = #tpu.pipeline_mode<synchronous>, transform_indices = @transform_1, window_bounds = array<i64: 32, 32>}, {pipeline_mode = #tpu.pipeline_mode<synchronous>, transform_indices = @transform_2, window_bounds = array<i64: 1, 32>}, {transform_indices = @transform_3, window_bounds = array<i64: 32, 32>}]} {
    %c0 = arith.constant 0 : index
    %c0_0 = arith.constant 0 : index
    %0 = vector.load %arg1[%c0, %c0_0] : memref<32x32xf32, #tpu.memory_space<vmem>>, vector<32x32xf32>
    %1 = arith.truncf %0 : vector<32x32xf32> to vector<32x32xbf16>
    %c0_1 = arith.constant 0 : index
    %c0_2 = arith.constant 0 : index
    %2 = vector.load %arg2[%c0_1, %c0_2] : memref<32x32xf32, #tpu.memory_space<vmem>>, vector<32x32xf32>
    %3 = arith.truncf %2 : vector<32x32xf32> to vector<32x32xbf16>
    %cst = arith.constant dense<0.000000e+00> : vector<32x32xf32>
    %4 = tpu.matmul %1, %3, %cst {dimension_numbers = #tpu.dot_dimension_numbers<[1], [0], [0], [1], [0, 0, 1, 1], [], []>} : vector<32x32xbf16>, vector<32x32xbf16>, vector<32x32xf32> -> vector<32x32xf32>
    %c0_3 = arith.constant 0 : index
    %c0_4 = arith.constant 0 : index
    %5 = vector.load %arg3[%c0_3, %c0_4] : memref<1x32xf32, #tpu.memory_space<vmem>>, vector<1x32xf32>
    %6 = vector.broadcast %5 : vector<1x32xf32> to vector<32x32xf32>
    %7 = arith.addf %4, %6 : vector<32x32xf32>
    %c0_5 = arith.constant 0 : index
    %c0_6 = arith.constant 0 : index
    %8 = vector.load %arg4[%c0_5, %c0_6] : memref<32x32xf32, #tpu.memory_space<vmem>>, vector<32x32xf32>
    tpu.vector_store %arg4[%c0_5, %c0_6], %7 {strides = array<i32>} : memref<32x32xf32, #tpu.memory_space<vmem>>, vector<32x32xf32>,
    return
  }
  func.func @transform_0(%arg0: i32) -> (i32, i32) {
    %c0_i32 = arith.constant 0 : i32
    %c0_i32_0 = arith.constant 0 : i32
    return %arg0, %c0_i32 : i32, i32
  }
  func.func @transform_1(%arg0: i32) -> (i32, i32) {
    %c0_i32 = arith.constant 0 : i32
    %c0_i32_0 = arith.constant 0 : i32
    %c0_i32_1 = arith.constant 0 : i32
    return %c0_i32, %c0_i32_0 : i32, i32
  }
  func.func @transform_2(%arg0: i32) -> (i32, i32) {
    %c0_i32 = arith.constant 0 : i32
    %c0_i32_0 = arith.constant 0 : i32
    %c0_i32_1 = arith.constant 0 : i32
    return %c0_i32, %c0_i32_0 : i32, i32
  }
  func.func @transform_3(%arg0: i32) -> (i32, i32) {
    %c0_i32 = arith.constant 0 : i32
    %c0_i32_0 = arith.constant 0 : i32
    return %arg0, %c0_i32 : i32, i32
  }
}

module attributes {stable_mosaic.version = 11 : i64} {
  func.func @_mm_bias_kernel(%arg0: i32, %arg1: memref<32x224xf32, #tpu.memory_space<vmem>>, %arg2: memref<224x32xf32, #tpu.memory_space<vmem>>, %arg3: memref<1x32xf32, #tpu.memory_space<vmem>>, %arg4: memref<32x32xf32, #tpu.memory_space<vmem>>) attributes {dimension_semantics = [#tpu.dimension_semantics<parallel>], iteration_bounds = array<i64: 1>, scalar_prefetch = 0 : i64, scratch_operands = 0 : i64, tpu.core_type = #tpu.core_type<tc>, window_params = [{transform_indices = @transform_0, window_bounds = array<i64: 32, 224>}, {pipeline_mode = #tpu.pipeline_mode<synchronous>, transform_indices = @transform_1, window_bounds = array<i64: 224, 32>}, {pipeline_mode = #tpu.pipeline_mode<synchronous>, transform_indices = @transform_2, window_bounds = array<i64: 1, 32>}, {transform_indices = @transform_3, window_bounds = array<i64: 32, 32>}]} {
    %c0 = arith.constant 0 : index
    %c0_0 = arith.constant 0 : index
    %0 = vector.load %arg1[%c0, %c0_0] : memref<32x224xf32, #tpu.memory_space<vmem>>, vector<32x224xf32>
    %1 = arith.truncf %0 : vector<32x224xf32> to vector<32x224xbf16>
    %c0_1 = arith.constant 0 : index
    %c0_2 = arith.constant 0 : index
    %2 = vector.load %arg2[%c0_1, %c0_2] : memref<224x32xf32, #tpu.memory_space<vmem>>, vector<224x32xf32>
    %3 = arith.truncf %2 : vector<224x32xf32> to vector<224x32xbf16>
    %cst = arith.constant dense<0.000000e+00> : vector<32x32xf32>
    %4 = tpu.matmul %1, %3, %cst {dimension_numbers = #tpu.dot_dimension_numbers<[1], [0], [0], [1], [0, 0, 1, 1], [], []>} : vector<32x224xbf16>, vector<224x32xbf16>, vector<32x32xf32> -> vector<32x32xf32>
    %c0_3 = arith.constant 0 : index
    %c0_4 = arith.constant 0 : index
    %5 = vector.load %arg3[%c0_3, %c0_4] : memref<1x32xf32, #tpu.memory_space<vmem>>, vector<1x32xf32>
    %6 = vector.broadcast %5 : vector<1x32xf32> to vector<32x32xf32>
    %7 = arith.addf %4, %6 : vector<32x32xf32>
    %c0_5 = arith.constant 0 : index
    %c0_6 = arith.constant 0 : index
    %8 = vector.load %arg4[%c0_5, %c0_6] : memref<32x32xf32, #tpu.memory_space<vmem>>, vector<32x32xf32>
    tpu.vector_store %arg4[%c0_5, %c0_6], %7 {strides = array<i32>} : memref<32x32xf32, #tpu.memory_space<vmem>>, vector<32x32xf32>,
    return
  }
  func.func @transform_0(%arg0: i32) -> (i32, i32) {
    %c0_i32 = arith.constant 0 : i32
    %c0_i32_0 = arith.constant 0 : i32
    return %arg0, %c0_i32 : i32, i32
  }
  func.func @transform_1(%arg0: i32) -> (i32, i32) {
    %c0_i32 = arith.constant 0 : i32
    %c0_i32_0 = arith.constant 0 : i32
    %c0_i32_1 = arith.constant 0 : i32
    return %c0_i32, %c0_i32_0 : i32, i32
  }
  func.func @transform_2(%arg0: i32) -> (i32, i32) {
    %c0_i32 = arith.constant 0 : i32
    %c0_i32_0 = arith.constant 0 : i32
    %c0_i32_1 = arith.constant 0 : i32
    return %c0_i32, %c0_i32_0 : i32, i32
  }
  func.func @transform_3(%arg0: i32) -> (i32, i32) {
    %c0_i32 = arith.constant 0 : i32
    %c0_i32_0 = arith.constant 0 : i32
    return %arg0, %c0_i32 : i32, i32
  }
}

module attributes {stable_mosaic.version = 11 : i64} {
  func.func @_mm_bias_kernel(%arg0: i32, %arg1: memref<16x64xf32, #tpu.memory_space<vmem>>, %arg2: memref<64x64xf32, #tpu.memory_space<vmem>>, %arg3: memref<1x64xf32, #tpu.memory_space<vmem>>, %arg4: memref<16x64xf32, #tpu.memory_space<vmem>>) attributes {dimension_semantics = [#tpu.dimension_semantics<parallel>], iteration_bounds = array<i64: 1>, scalar_prefetch = 0 : i64, scratch_operands = 0 : i64, tpu.core_type = #tpu.core_type<tc>, window_params = [{transform_indices = @transform_0, window_bounds = array<i64: 16, 64>}, {pipeline_mode = #tpu.pipeline_mode<synchronous>, transform_indices = @transform_1, window_bounds = array<i64: 64, 64>}, {pipeline_mode = #tpu.pipeline_mode<synchronous>, transform_indices = @transform_2, window_bounds = array<i64: 1, 64>}, {transform_indices = @transform_3, window_bounds = array<i64: 16, 64>}]} {
    %c0 = arith.constant 0 : index
    %c0_0 = arith.constant 0 : index
    %0 = vector.load %arg1[%c0, %c0_0] : memref<16x64xf32, #tpu.memory_space<vmem>>, vector<16x64xf32>
    %1 = arith.truncf %0 : vector<16x64xf32> to vector<16x64xbf16>
    %c0_1 = arith.constant 0 : index
    %c0_2 = arith.constant 0 : index
    %2 = vector.load %arg2[%c0_1, %c0_2] : memref<64x64xf32, #tpu.memory_space<vmem>>, vector<64x64xf32>
    %3 = arith.truncf %2 : vector<64x64xf32> to vector<64x64xbf16>
    %cst = arith.constant dense<0.000000e+00> : vector<16x64xf32>
    %4 = tpu.matmul %1, %3, %cst {dimension_numbers = #tpu.dot_dimension_numbers<[1], [0], [0], [1], [0, 0, 1, 1], [], []>} : vector<16x64xbf16>, vector<64x64xbf16>, vector<16x64xf32> -> vector<16x64xf32>
    %c0_3 = arith.constant 0 : index
    %c0_4 = arith.constant 0 : index
    %5 = vector.load %arg3[%c0_3, %c0_4] : memref<1x64xf32, #tpu.memory_space<vmem>>, vector<1x64xf32>
    %6 = vector.broadcast %5 : vector<1x64xf32> to vector<16x64xf32>
    %7 = arith.addf %4, %6 : vector<16x64xf32>
    %c0_5 = arith.constant 0 : index
    %c0_6 = arith.constant 0 : index
    %8 = vector.load %arg4[%c0_5, %c0_6] : memref<16x64xf32, #tpu.memory_space<vmem>>, vector<16x64xf32>
    tpu.vector_store %arg4[%c0_5, %c0_6], %7 {strides = array<i32>} : memref<16x64xf32, #tpu.memory_space<vmem>>, vector<16x64xf32>,
    return
  }
  func.func @transform_0(%arg0: i32) -> (i32, i32) {
    %c0_i32 = arith.constant 0 : i32
    %c0_i32_0 = arith.constant 0 : i32
    return %arg0, %c0_i32 : i32, i32
  }
  func.func @transform_1(%arg0: i32) -> (i32, i32) {
    %c0_i32 = arith.constant 0 : i32
    %c0_i32_0 = arith.constant 0 : i32
    %c0_i32_1 = arith.constant 0 : i32
    return %c0_i32, %c0_i32_0 : i32, i32
  }
  func.func @transform_2(%arg0: i32) -> (i32, i32) {
    %c0_i32 = arith.constant 0 : i32
    %c0_i32_0 = arith.constant 0 : i32
    %c0_i32_1 = arith.constant 0 : i32
    return %c0_i32, %c0_i32_0 : i32, i32
  }
  func.func @transform_3(%arg0: i32) -> (i32, i32) {
    %c0_i32 = arith.constant 0 : i32
    %c0_i32_0 = arith.constant 0 : i32
    return %arg0, %c0_i32 : i32, i32
  }
}

module attributes {stable_mosaic.version = 11 : i64} {
  func.func @_mm_bias_kernel(%arg0: i32, %arg1: memref<16x448xf32, #tpu.memory_space<vmem>>, %arg2: memref<448x64xf32, #tpu.memory_space<vmem>>, %arg3: memref<1x64xf32, #tpu.memory_space<vmem>>, %arg4: memref<16x64xf32, #tpu.memory_space<vmem>>) attributes {dimension_semantics = [#tpu.dimension_semantics<parallel>], iteration_bounds = array<i64: 1>, scalar_prefetch = 0 : i64, scratch_operands = 0 : i64, tpu.core_type = #tpu.core_type<tc>, window_params = [{transform_indices = @transform_0, window_bounds = array<i64: 16, 448>}, {pipeline_mode = #tpu.pipeline_mode<synchronous>, transform_indices = @transform_1, window_bounds = array<i64: 448, 64>}, {pipeline_mode = #tpu.pipeline_mode<synchronous>, transform_indices = @transform_2, window_bounds = array<i64: 1, 64>}, {transform_indices = @transform_3, window_bounds = array<i64: 16, 64>}]} {
    %c0 = arith.constant 0 : index
    %c0_0 = arith.constant 0 : index
    %0 = vector.load %arg1[%c0, %c0_0] : memref<16x448xf32, #tpu.memory_space<vmem>>, vector<16x448xf32>
    %1 = arith.truncf %0 : vector<16x448xf32> to vector<16x448xbf16>
    %c0_1 = arith.constant 0 : index
    %c0_2 = arith.constant 0 : index
    %2 = vector.load %arg2[%c0_1, %c0_2] : memref<448x64xf32, #tpu.memory_space<vmem>>, vector<448x64xf32>
    %3 = arith.truncf %2 : vector<448x64xf32> to vector<448x64xbf16>
    %cst = arith.constant dense<0.000000e+00> : vector<16x64xf32>
    %4 = tpu.matmul %1, %3, %cst {dimension_numbers = #tpu.dot_dimension_numbers<[1], [0], [0], [1], [0, 0, 1, 1], [], []>} : vector<16x448xbf16>, vector<448x64xbf16>, vector<16x64xf32> -> vector<16x64xf32>
    %c0_3 = arith.constant 0 : index
    %c0_4 = arith.constant 0 : index
    %5 = vector.load %arg3[%c0_3, %c0_4] : memref<1x64xf32, #tpu.memory_space<vmem>>, vector<1x64xf32>
    %6 = vector.broadcast %5 : vector<1x64xf32> to vector<16x64xf32>
    %7 = arith.addf %4, %6 : vector<16x64xf32>
    %c0_5 = arith.constant 0 : index
    %c0_6 = arith.constant 0 : index
    %8 = vector.load %arg4[%c0_5, %c0_6] : memref<16x64xf32, #tpu.memory_space<vmem>>, vector<16x64xf32>
    tpu.vector_store %arg4[%c0_5, %c0_6], %7 {strides = array<i32>} : memref<16x64xf32, #tpu.memory_space<vmem>>, vector<16x64xf32>,
    return
  }
  func.func @transform_0(%arg0: i32) -> (i32, i32) {
    %c0_i32 = arith.constant 0 : i32
    %c0_i32_0 = arith.constant 0 : i32
    return %arg0, %c0_i32 : i32, i32
  }
  func.func @transform_1(%arg0: i32) -> (i32, i32) {
    %c0_i32 = arith.constant 0 : i32
    %c0_i32_0 = arith.constant 0 : i32
    %c0_i32_1 = arith.constant 0 : i32
    return %c0_i32, %c0_i32_0 : i32, i32
  }
  func.func @transform_2(%arg0: i32) -> (i32, i32) {
    %c0_i32 = arith.constant 0 : i32
    %c0_i32_0 = arith.constant 0 : i32
    %c0_i32_1 = arith.constant 0 : i32
    return %c0_i32, %c0_i32_0 : i32, i32
  }
  func.func @transform_3(%arg0: i32) -> (i32, i32) {
    %c0_i32 = arith.constant 0 : i32
    %c0_i32_0 = arith.constant 0 : i32
    return %arg0, %c0_i32 : i32, i32
  }
}

module attributes {stable_mosaic.version = 11 : i64} {
  func.func @_mm_bias_kernel(%arg0: i32, %arg1: memref<64x112xf32, #tpu.memory_space<vmem>>, %arg2: memref<112x4xf32, #tpu.memory_space<vmem>>, %arg3: memref<1x4xf32, #tpu.memory_space<vmem>>, %arg4: memref<64x4xf32, #tpu.memory_space<vmem>>) attributes {dimension_semantics = [#tpu.dimension_semantics<parallel>], iteration_bounds = array<i64: 1>, scalar_prefetch = 0 : i64, scratch_operands = 0 : i64, tpu.core_type = #tpu.core_type<tc>, window_params = [{transform_indices = @transform_0, window_bounds = array<i64: 64, 112>}, {pipeline_mode = #tpu.pipeline_mode<synchronous>, transform_indices = @transform_1, window_bounds = array<i64: 112, 4>}, {pipeline_mode = #tpu.pipeline_mode<synchronous>, transform_indices = @transform_2, window_bounds = array<i64: 1, 4>}, {transform_indices = @transform_3, window_bounds = array<i64: 64, 4>}]} {
    %c0 = arith.constant 0 : index
    %c0_0 = arith.constant 0 : index
    %0 = vector.load %arg1[%c0, %c0_0] : memref<64x112xf32, #tpu.memory_space<vmem>>, vector<64x112xf32>
    %1 = arith.truncf %0 : vector<64x112xf32> to vector<64x112xbf16>
    %c0_1 = arith.constant 0 : index
    %c0_2 = arith.constant 0 : index
    %2 = vector.load %arg2[%c0_1, %c0_2] : memref<112x4xf32, #tpu.memory_space<vmem>>, vector<112x4xf32>
    %3 = arith.truncf %2 : vector<112x4xf32> to vector<112x4xbf16>
    %cst = arith.constant dense<0.000000e+00> : vector<64x4xf32>
    %4 = tpu.matmul %1, %3, %cst {dimension_numbers = #tpu.dot_dimension_numbers<[1], [0], [0], [1], [0, 0, 1, 1], [], []>} : vector<64x112xbf16>, vector<112x4xbf16>, vector<64x4xf32> -> vector<64x4xf32>
    %c0_3 = arith.constant 0 : index
    %c0_4 = arith.constant 0 : index
    %5 = vector.load %arg3[%c0_3, %c0_4] : memref<1x4xf32, #tpu.memory_space<vmem>>, vector<1x4xf32>
    %6 = vector.broadcast %5 : vector<1x4xf32> to vector<64x4xf32>
    %7 = arith.addf %4, %6 : vector<64x4xf32>
    %c0_5 = arith.constant 0 : index
    %c0_6 = arith.constant 0 : index
    %8 = vector.load %arg4[%c0_5, %c0_6] : memref<64x4xf32, #tpu.memory_space<vmem>>, vector<64x4xf32>
    tpu.vector_store %arg4[%c0_5, %c0_6], %7 {strides = array<i32>} : memref<64x4xf32, #tpu.memory_space<vmem>>, vector<64x4xf32>,
    return
  }
  func.func @transform_0(%arg0: i32) -> (i32, i32) {
    %c0_i32 = arith.constant 0 : i32
    %c0_i32_0 = arith.constant 0 : i32
    return %arg0, %c0_i32 : i32, i32
  }
  func.func @transform_1(%arg0: i32) -> (i32, i32) {
    %c0_i32 = arith.constant 0 : i32
    %c0_i32_0 = arith.constant 0 : i32
    %c0_i32_1 = arith.constant 0 : i32
    return %c0_i32, %c0_i32_0 : i32, i32
  }
  func.func @transform_2(%arg0: i32) -> (i32, i32) {
    %c0_i32 = arith.constant 0 : i32
    %c0_i32_0 = arith.constant 0 : i32
    %c0_i32_1 = arith.constant 0 : i32
    return %c0_i32, %c0_i32_0 : i32, i32
  }
  func.func @transform_3(%arg0: i32) -> (i32, i32) {
    %c0_i32 = arith.constant 0 : i32
    %c0_i32_0 = arith.constant 0 : i32
    return %arg0, %c0_i32 : i32, i32
  }
}

module attributes {stable_mosaic.version = 11 : i64} {
  func.func @_mm_bias_kernel(%arg0: i32, %arg1: memref<64x4xf32, #tpu.memory_space<vmem>>, %arg2: memref<4x32xf32, #tpu.memory_space<vmem>>, %arg3: memref<1x32xf32, #tpu.memory_space<vmem>>, %arg4: memref<64x32xf32, #tpu.memory_space<vmem>>) attributes {dimension_semantics = [#tpu.dimension_semantics<parallel>], iteration_bounds = array<i64: 1>, scalar_prefetch = 0 : i64, scratch_operands = 0 : i64, tpu.core_type = #tpu.core_type<tc>, window_params = [{transform_indices = @transform_0, window_bounds = array<i64: 64, 4>}, {pipeline_mode = #tpu.pipeline_mode<synchronous>, transform_indices = @transform_1, window_bounds = array<i64: 4, 32>}, {pipeline_mode = #tpu.pipeline_mode<synchronous>, transform_indices = @transform_2, window_bounds = array<i64: 1, 32>}, {transform_indices = @transform_3, window_bounds = array<i64: 64, 32>}]} {
    %c0 = arith.constant 0 : index
    %c0_0 = arith.constant 0 : index
    %0 = vector.load %arg1[%c0, %c0_0] : memref<64x4xf32, #tpu.memory_space<vmem>>, vector<64x4xf32>
    %1 = arith.truncf %0 : vector<64x4xf32> to vector<64x4xbf16>
    %c0_1 = arith.constant 0 : index
    %c0_2 = arith.constant 0 : index
    %2 = vector.load %arg2[%c0_1, %c0_2] : memref<4x32xf32, #tpu.memory_space<vmem>>, vector<4x32xf32>
    %3 = arith.truncf %2 : vector<4x32xf32> to vector<4x32xbf16>
    %cst = arith.constant dense<0.000000e+00> : vector<64x32xf32>
    %4 = tpu.matmul %1, %3, %cst {dimension_numbers = #tpu.dot_dimension_numbers<[1], [0], [0], [1], [0, 0, 1, 1], [], []>} : vector<64x4xbf16>, vector<4x32xbf16>, vector<64x32xf32> -> vector<64x32xf32>
    %c0_3 = arith.constant 0 : index
    %c0_4 = arith.constant 0 : index
    %5 = vector.load %arg3[%c0_3, %c0_4] : memref<1x32xf32, #tpu.memory_space<vmem>>, vector<1x32xf32>
    %6 = vector.broadcast %5 : vector<1x32xf32> to vector<64x32xf32>
    %7 = arith.addf %4, %6 : vector<64x32xf32>
    %c0_5 = arith.constant 0 : index
    %c0_6 = arith.constant 0 : index
    %8 = vector.load %arg4[%c0_5, %c0_6] : memref<64x32xf32, #tpu.memory_space<vmem>>, vector<64x32xf32>
    tpu.vector_store %arg4[%c0_5, %c0_6], %7 {strides = array<i32>} : memref<64x32xf32, #tpu.memory_space<vmem>>, vector<64x32xf32>,
    return
  }
  func.func @transform_0(%arg0: i32) -> (i32, i32) {
    %c0_i32 = arith.constant 0 : i32
    %c0_i32_0 = arith.constant 0 : i32
    return %arg0, %c0_i32 : i32, i32
  }
  func.func @transform_1(%arg0: i32) -> (i32, i32) {
    %c0_i32 = arith.constant 0 : i32
    %c0_i32_0 = arith.constant 0 : i32
    %c0_i32_1 = arith.constant 0 : i32
    return %c0_i32, %c0_i32_0 : i32, i32
  }
  func.func @transform_2(%arg0: i32) -> (i32, i32) {
    %c0_i32 = arith.constant 0 : i32
    %c0_i32_0 = arith.constant 0 : i32
    %c0_i32_1 = arith.constant 0 : i32
    return %c0_i32, %c0_i32_0 : i32, i32
  }
  func.func @transform_3(%arg0: i32) -> (i32, i32) {
    %c0_i32 = arith.constant 0 : i32
    %c0_i32_0 = arith.constant 0 : i32
    return %arg0, %c0_i32 : i32, i32
  }
}

module attributes {stable_mosaic.version = 11 : i64} {
  func.func @_mm_bias_kernel(%arg0: i32, %arg1: memref<64x32xf32, #tpu.memory_space<vmem>>, %arg2: memref<32x96xf32, #tpu.memory_space<vmem>>, %arg3: memref<1x96xf32, #tpu.memory_space<vmem>>, %arg4: memref<64x96xf32, #tpu.memory_space<vmem>>) attributes {dimension_semantics = [#tpu.dimension_semantics<parallel>], iteration_bounds = array<i64: 1>, scalar_prefetch = 0 : i64, scratch_operands = 0 : i64, tpu.core_type = #tpu.core_type<tc>, window_params = [{transform_indices = @transform_0, window_bounds = array<i64: 64, 32>}, {pipeline_mode = #tpu.pipeline_mode<synchronous>, transform_indices = @transform_1, window_bounds = array<i64: 32, 96>}, {pipeline_mode = #tpu.pipeline_mode<synchronous>, transform_indices = @transform_2, window_bounds = array<i64: 1, 96>}, {transform_indices = @transform_3, window_bounds = array<i64: 64, 96>}]} {
    %c0 = arith.constant 0 : index
    %c0_0 = arith.constant 0 : index
    %0 = vector.load %arg1[%c0, %c0_0] : memref<64x32xf32, #tpu.memory_space<vmem>>, vector<64x32xf32>
    %1 = arith.truncf %0 : vector<64x32xf32> to vector<64x32xbf16>
    %c0_1 = arith.constant 0 : index
    %c0_2 = arith.constant 0 : index
    %2 = vector.load %arg2[%c0_1, %c0_2] : memref<32x96xf32, #tpu.memory_space<vmem>>, vector<32x96xf32>
    %3 = arith.truncf %2 : vector<32x96xf32> to vector<32x96xbf16>
    %cst = arith.constant dense<0.000000e+00> : vector<64x96xf32>
    %4 = tpu.matmul %1, %3, %cst {dimension_numbers = #tpu.dot_dimension_numbers<[1], [0], [0], [1], [0, 0, 1, 1], [], []>} : vector<64x32xbf16>, vector<32x96xbf16>, vector<64x96xf32> -> vector<64x96xf32>
    %c0_3 = arith.constant 0 : index
    %c0_4 = arith.constant 0 : index
    %5 = vector.load %arg3[%c0_3, %c0_4] : memref<1x96xf32, #tpu.memory_space<vmem>>, vector<1x96xf32>
    %6 = vector.broadcast %5 : vector<1x96xf32> to vector<64x96xf32>
    %7 = arith.addf %4, %6 : vector<64x96xf32>
    %c0_5 = arith.constant 0 : index
    %c0_6 = arith.constant 0 : index
    %8 = vector.load %arg4[%c0_5, %c0_6] : memref<64x96xf32, #tpu.memory_space<vmem>>, vector<64x96xf32>
    tpu.vector_store %arg4[%c0_5, %c0_6], %7 {strides = array<i32>} : memref<64x96xf32, #tpu.memory_space<vmem>>, vector<64x96xf32>,
    return
  }
  func.func @transform_0(%arg0: i32) -> (i32, i32) {
    %c0_i32 = arith.constant 0 : i32
    %c0_i32_0 = arith.constant 0 : i32
    return %arg0, %c0_i32 : i32, i32
  }
  func.func @transform_1(%arg0: i32) -> (i32, i32) {
    %c0_i32 = arith.constant 0 : i32
    %c0_i32_0 = arith.constant 0 : i32
    %c0_i32_1 = arith.constant 0 : i32
    return %c0_i32, %c0_i32_0 : i32, i32
  }
  func.func @transform_2(%arg0: i32) -> (i32, i32) {
    %c0_i32 = arith.constant 0 : i32
    %c0_i32_0 = arith.constant 0 : i32
    %c0_i32_1 = arith.constant 0 : i32
    return %c0_i32, %c0_i32_0 : i32, i32
  }
  func.func @transform_3(%arg0: i32) -> (i32, i32) {
    %c0_i32 = arith.constant 0 : i32
    %c0_i32_0 = arith.constant 0 : i32
    return %arg0, %c0_i32 : i32, i32
  }
}

module attributes {stable_mosaic.version = 11 : i64} {
  func.func @_attn_kernel(%arg0: i32, %arg1: memref<1x4x32x8xf32, #tpu.memory_space<vmem>>, %arg2: memref<1x4x32x8xf32, #tpu.memory_space<vmem>>, %arg3: memref<1x4x32x8xf32, #tpu.memory_space<vmem>>, %arg4: memref<1x4x32x8xf32, #tpu.memory_space<vmem>>) attributes {dimension_semantics = [#tpu.dimension_semantics<parallel>], iteration_bounds = array<i64: 2>, scalar_prefetch = 0 : i64, scratch_operands = 0 : i64, tpu.core_type = #tpu.core_type<tc>, window_params = [{transform_indices = @transform_0, window_bounds = array<i64: 1, 4, 32, 8>}, {transform_indices = @transform_1, window_bounds = array<i64: 1, 4, 32, 8>}, {transform_indices = @transform_2, window_bounds = array<i64: 1, 4, 32, 8>}, {transform_indices = @transform_3, window_bounds = array<i64: 1, 4, 32, 8>}]} {
    %c0 = arith.constant 0 : index
    %c0_0 = arith.constant 0 : index
    %c0_1 = arith.constant 0 : index
    %c0_2 = arith.constant 0 : index
    %0 = vector.load %arg1[%c0, %c0_0, %c0_1, %c0_2] : memref<1x4x32x8xf32, #tpu.memory_space<vmem>>, vector<1x4x32x8xf32>
    %1 = vector.shape_cast %0 : vector<1x4x32x8xf32> to vector<4x32x8xf32>
    %2 = arith.truncf %1 : vector<4x32x8xf32> to vector<4x32x8xbf16>
    %c0_3 = arith.constant 0 : index
    %c0_4 = arith.constant 0 : index
    %c0_5 = arith.constant 0 : index
    %c0_6 = arith.constant 0 : index
    %3 = vector.load %arg2[%c0_3, %c0_4, %c0_5, %c0_6] : memref<1x4x32x8xf32, #tpu.memory_space<vmem>>, vector<1x4x32x8xf32>
    %4 = vector.shape_cast %3 : vector<1x4x32x8xf32> to vector<4x32x8xf32>
    %5 = arith.truncf %4 : vector<4x32x8xf32> to vector<4x32x8xbf16>
    %c0_7 = arith.constant 0 : index
    %c0_8 = arith.constant 0 : index
    %c0_9 = arith.constant 0 : index
    %c0_10 = arith.constant 0 : index
    %6 = vector.load %arg3[%c0_7, %c0_8, %c0_9, %c0_10] : memref<1x4x32x8xf32, #tpu.memory_space<vmem>>, vector<1x4x32x8xf32>
    %7 = vector.shape_cast %6 : vector<1x4x32x8xf32> to vector<4x32x8xf32>
    %8 = arith.truncf %7 : vector<4x32x8xf32> to vector<4x32x8xbf16>
    %cst = arith.constant dense<0.000000e+00> : vector<4x32x32xf32>
    %9 = tpu.matmul %2, %5, %cst {dimension_numbers = #tpu.dot_dimension_numbers<[2], [2], [1], [1], [0, 0, 0, 1, 1, 1], [0], [0]>} : vector<4x32x8xbf16>, vector<4x32x8xbf16>, vector<4x32x32xf32> -> vector<4x32x32xf32>
    %cst_11 = arith.constant 0.353553385 : f32
    %10 = vector.broadcast %cst_11 : f32 to vector<4x32x32xf32>
    %11 = arith.mulf %9, %10 : vector<4x32x32xf32>
    %cst_12 = arith.constant dense<0xFF800000> : vector<4x32xf32>
    %12 = vector.multi_reduction <maximumf>, %11, %cst_12 [2] : vector<4x32x32xf32> to vector<4x32xf32>
    %13 = vector.shape_cast %12 : vector<4x32xf32> to vector<4x32x1xf32>
    %14 = vector.broadcast %13 : vector<4x32x1xf32> to vector<4x32x32xf32>
    %15 = arith.subf %11, %14 : vector<4x32x32xf32>
    %16 = math.exp %15 : vector<4x32x32xf32>
    %cst_13 = arith.constant dense<0.000000e+00> : vector<4x32xf32>
    %17 = vector.multi_reduction <add>, %16, %cst_13 [2] : vector<4x32x32xf32> to vector<4x32xf32>
    %18 = vector.shape_cast %17 : vector<4x32xf32> to vector<4x32x1xf32>
    %19 = tpu.reciprocal %18 {approx = true} : vector<4x32x1xf32> -> vector<4x32x1xf32>
    %20 = vector.broadcast %19 : vector<4x32x1xf32> to vector<4x32x32xf32>
    %21 = arith.mulf %16, %20 : vector<4x32x32xf32>
    %22 = arith.truncf %21 : vector<4x32x32xf32> to vector<4x32x32xbf16>
    %cst_14 = arith.constant dense<0.000000e+00> : vector<4x32x8xf32>
    %23 = tpu.matmul %22, %8, %cst_14 {dimension_numbers = #tpu.dot_dimension_numbers<[2], [1], [1], [2], [0, 0, 0, 1, 1, 2], [0], [0]>} : vector<4x32x32xbf16>, vector<4x32x8xbf16>, vector<4x32x8xf32> -> vector<4x32x8xf32>
    %c0_15 = arith.constant 0 : index
    %c0_16 = arith.constant 0 : index
    %c0_17 = arith.constant 0 : index
    %c0_18 = arith.constant 0 : index
    %24 = vector.load %arg4[%c0_15, %c0_16, %c0_17, %c0_18] : memref<1x4x32x8xf32, #tpu.memory_space<vmem>>, vector<1x4x32x8xf32>
    %25 = vector.shape_cast %24 : vector<1x4x32x8xf32> to vector<4x32x8xf32>
    %26 = vector.shape_cast %23 : vector<4x32x8xf32> to vector<1x4x32x8xf32>
    tpu.vector_store %arg4[%c0_15, %c0_16, %c0_17, %c0_18], %26 {strides = array<i32>} : memref<1x4x32x8xf32, #tpu.memory_space<vmem>>, vector<1x4x32x8xf32>,
    return
  }
  func.func @transform_0(%arg0: i32) -> (i32, i32, i32, i32) {
    %c0_i32 = arith.constant 0 : i32
    %c0_i32_0 = arith.constant 0 : i32
    %c0_i32_1 = arith.constant 0 : i32
    %c0_i32_2 = arith.constant 0 : i32
    return %arg0, %c0_i32, %c0_i32_0, %c0_i32_1 : i32, i32, i32, i32
  }
  func.func @transform_1(%arg0: i32) -> (i32, i32, i32, i32) {
    %c0_i32 = arith.constant 0 : i32
    %c0_i32_0 = arith.constant 0 : i32
    %c0_i32_1 = arith.constant 0 : i32
    %c0_i32_2 = arith.constant 0 : i32
    return %arg0, %c0_i32, %c0_i32_0, %c0_i32_1 : i32, i32, i32, i32
  }
  func.func @transform_2(%arg0: i32) -> (i32, i32, i32, i32) {
    %c0_i32 = arith.constant 0 : i32
    %c0_i32_0 = arith.constant 0 : i32
    %c0_i32_1 = arith.constant 0 : i32
    %c0_i32_2 = arith.constant 0 : i32
    return %arg0, %c0_i32, %c0_i32_0, %c0_i32_1 : i32, i32, i32, i32
  }
  func.func @transform_3(%arg0: i32) -> (i32, i32, i32, i32) {
    %c0_i32 = arith.constant 0 : i32
    %c0_i32_0 = arith.constant 0 : i32
    %c0_i32_1 = arith.constant 0 : i32
    %c0_i32_2 = arith.constant 0 : i32
    return %arg0, %c0_i32, %c0_i32_0, %c0_i32_1 : i32, i32, i32, i32
  }
}

module attributes {stable_mosaic.version = 11 : i64} {
  func.func @_mm_bias_kernel(%arg0: i32, %arg1: memref<64x32xf32, #tpu.memory_space<vmem>>, %arg2: memref<32x512xf32, #tpu.memory_space<vmem>>, %arg3: memref<1x512xf32, #tpu.memory_space<vmem>>, %arg4: memref<64x512xf32, #tpu.memory_space<vmem>>) attributes {dimension_semantics = [#tpu.dimension_semantics<parallel>], iteration_bounds = array<i64: 1>, scalar_prefetch = 0 : i64, scratch_operands = 0 : i64, tpu.core_type = #tpu.core_type<tc>, window_params = [{transform_indices = @transform_0, window_bounds = array<i64: 64, 32>}, {pipeline_mode = #tpu.pipeline_mode<synchronous>, transform_indices = @transform_1, window_bounds = array<i64: 32, 512>}, {pipeline_mode = #tpu.pipeline_mode<synchronous>, transform_indices = @transform_2, window_bounds = array<i64: 1, 512>}, {transform_indices = @transform_3, window_bounds = array<i64: 64, 512>}]} {
    %c0 = arith.constant 0 : index
    %c0_0 = arith.constant 0 : index
    %0 = vector.load %arg1[%c0, %c0_0] : memref<64x32xf32, #tpu.memory_space<vmem>>, vector<64x32xf32>
    %1 = arith.truncf %0 : vector<64x32xf32> to vector<64x32xbf16>
    %c0_1 = arith.constant 0 : index
    %c0_2 = arith.constant 0 : index
    %2 = vector.load %arg2[%c0_1, %c0_2] : memref<32x512xf32, #tpu.memory_space<vmem>>, vector<32x512xf32>
    %3 = arith.truncf %2 : vector<32x512xf32> to vector<32x512xbf16>
    %cst = arith.constant dense<0.000000e+00> : vector<64x512xf32>
    %4 = tpu.matmul %1, %3, %cst {dimension_numbers = #tpu.dot_dimension_numbers<[1], [0], [0], [1], [0, 0, 1, 1], [], []>} : vector<64x32xbf16>, vector<32x512xbf16>, vector<64x512xf32> -> vector<64x512xf32>
    %c0_3 = arith.constant 0 : index
    %c0_4 = arith.constant 0 : index
    %5 = vector.load %arg3[%c0_3, %c0_4] : memref<1x512xf32, #tpu.memory_space<vmem>>, vector<1x512xf32>
    %6 = vector.broadcast %5 : vector<1x512xf32> to vector<64x512xf32>
    %7 = arith.addf %4, %6 : vector<64x512xf32>
    %cst_5 = arith.constant 0.000000e+00 : f32
    %8 = vector.broadcast %cst_5 : f32 to vector<64x512xf32>
    %9 = arith.maximumf %7, %8 : vector<64x512xf32>
    %c0_6 = arith.constant 0 : index
    %c0_7 = arith.constant 0 : index
    %10 = vector.load %arg4[%c0_6, %c0_7] : memref<64x512xf32, #tpu.memory_space<vmem>>, vector<64x512xf32>
    tpu.vector_store %arg4[%c0_6, %c0_7], %9 {strides = array<i32>} : memref<64x512xf32, #tpu.memory_space<vmem>>, vector<64x512xf32>,
    return
  }
  func.func @transform_0(%arg0: i32) -> (i32, i32) {
    %c0_i32 = arith.constant 0 : i32
    %c0_i32_0 = arith.constant 0 : i32
    return %arg0, %c0_i32 : i32, i32
  }
  func.func @transform_1(%arg0: i32) -> (i32, i32) {
    %c0_i32 = arith.constant 0 : i32
    %c0_i32_0 = arith.constant 0 : i32
    %c0_i32_1 = arith.constant 0 : i32
    return %c0_i32, %c0_i32_0 : i32, i32
  }
  func.func @transform_2(%arg0: i32) -> (i32, i32) {
    %c0_i32 = arith.constant 0 : i32
    %c0_i32_0 = arith.constant 0 : i32
    %c0_i32_1 = arith.constant 0 : i32
    return %c0_i32, %c0_i32_0 : i32, i32
  }
  func.func @transform_3(%arg0: i32) -> (i32, i32) {
    %c0_i32 = arith.constant 0 : i32
    %c0_i32_0 = arith.constant 0 : i32
    return %arg0, %c0_i32 : i32, i32
  }
}

module attributes {stable_mosaic.version = 11 : i64} {
  func.func @_mm_bias_res_ln_kernel(%arg0: i32, %arg1: memref<64x32xf32, #tpu.memory_space<vmem>>, %arg2: memref<32x32xf32, #tpu.memory_space<vmem>>, %arg3: memref<1x32xf32, #tpu.memory_space<vmem>>, %arg4: memref<64x32xf32, #tpu.memory_space<vmem>>, %arg5: memref<1x32xf32, #tpu.memory_space<vmem>>, %arg6: memref<1x32xf32, #tpu.memory_space<vmem>>, %arg7: memref<64x32xf32, #tpu.memory_space<vmem>>) attributes {dimension_semantics = [#tpu.dimension_semantics<parallel>], iteration_bounds = array<i64: 1>, scalar_prefetch = 0 : i64, scratch_operands = 0 : i64, tpu.core_type = #tpu.core_type<tc>, window_params = [{transform_indices = @transform_0, window_bounds = array<i64: 64, 32>}, {pipeline_mode = #tpu.pipeline_mode<synchronous>, transform_indices = @transform_1, window_bounds = array<i64: 32, 32>}, {pipeline_mode = #tpu.pipeline_mode<synchronous>, transform_indices = @transform_2, window_bounds = array<i64: 1, 32>}, {transform_indices = @transform_3, window_bounds = array<i64: 64, 32>}, {pipeline_mode = #tpu.pipeline_mode<synchronous>, transform_indices = @transform_4, window_bounds = array<i64: 1, 32>}, {pipeline_mode = #tpu.pipeline_mode<synchronous>, transform_indices = @transform_5, window_bounds = array<i64: 1, 32>}, {transform_indices = @transform_6, window_bounds = array<i64: 64, 32>}]} {
    %c0 = arith.constant 0 : index
    %c0_0 = arith.constant 0 : index
    %0 = vector.load %arg1[%c0, %c0_0] : memref<64x32xf32, #tpu.memory_space<vmem>>, vector<64x32xf32>
    %1 = arith.truncf %0 : vector<64x32xf32> to vector<64x32xbf16>
    %c0_1 = arith.constant 0 : index
    %c0_2 = arith.constant 0 : index
    %2 = vector.load %arg2[%c0_1, %c0_2] : memref<32x32xf32, #tpu.memory_space<vmem>>, vector<32x32xf32>
    %3 = arith.truncf %2 : vector<32x32xf32> to vector<32x32xbf16>
    %cst = arith.constant dense<0.000000e+00> : vector<64x32xf32>
    %4 = tpu.matmul %1, %3, %cst {dimension_numbers = #tpu.dot_dimension_numbers<[1], [0], [0], [1], [0, 0, 1, 1], [], []>} : vector<64x32xbf16>, vector<32x32xbf16>, vector<64x32xf32> -> vector<64x32xf32>
    %c0_3 = arith.constant 0 : index
    %c0_4 = arith.constant 0 : index
    %5 = vector.load %arg3[%c0_3, %c0_4] : memref<1x32xf32, #tpu.memory_space<vmem>>, vector<1x32xf32>
    %6 = vector.broadcast %5 : vector<1x32xf32> to vector<64x32xf32>
    %7 = arith.addf %4, %6 : vector<64x32xf32>
    %c0_5 = arith.constant 0 : index
    %c0_6 = arith.constant 0 : index
    %8 = vector.load %arg4[%c0_5, %c0_6] : memref<64x32xf32, #tpu.memory_space<vmem>>, vector<64x32xf32>
    %9 = arith.addf %7, %8 : vector<64x32xf32>
    %cst_7 = arith.constant dense<0.000000e+00> : vector<64xf32>
    %10 = vector.multi_reduction <add>, %9, %cst_7 [1] : vector<64x32xf32> to vector<64xf32>
    %11 = vector.shape_cast %10 : vector<64xf32> to vector<64x1xf32>
    %cst_8 = arith.constant 3.200000e+01 : f32
    %12 = vector.broadcast %cst_8 : f32 to vector<64x1xf32>
    %13 = arith.divf %11, %12 : vector<64x1xf32>
    %14 = vector.broadcast %13 : vector<64x1xf32> to vector<64x32xf32>
    %15 = arith.subf %9, %14 : vector<64x32xf32>
    %16 = arith.mulf %15, %15 : vector<64x32xf32>
    %cst_9 = arith.constant dense<0.000000e+00> : vector<64xf32>
    %17 = vector.multi_reduction <add>, %16, %cst_9 [1] : vector<64x32xf32> to vector<64xf32>
    %18 = vector.shape_cast %17 : vector<64xf32> to vector<64x1xf32>
    %cst_10 = arith.constant 3.200000e+01 : f32
    %19 = vector.broadcast %cst_10 : f32 to vector<64x1xf32>
    %20 = arith.divf %18, %19 : vector<64x1xf32>
    %21 = vector.broadcast %13 : vector<64x1xf32> to vector<64x32xf32>
    %22 = arith.subf %9, %21 : vector<64x32xf32>
    %cst_11 = arith.constant 9.99999974E-6 : f32
    %23 = vector.broadcast %cst_11 : f32 to vector<64x1xf32>
    %24 = arith.addf %20, %23 : vector<64x1xf32>
    %25 = math.rsqrt %24 : vector<64x1xf32>
    %26 = vector.broadcast %25 : vector<64x1xf32> to vector<64x32xf32>
    %27 = arith.mulf %22, %26 : vector<64x32xf32>
    %c0_12 = arith.constant 0 : index
    %c0_13 = arith.constant 0 : index
    %28 = vector.load %arg5[%c0_12, %c0_13] : memref<1x32xf32, #tpu.memory_space<vmem>>, vector<1x32xf32>
    %29 = vector.broadcast %28 : vector<1x32xf32> to vector<64x32xf32>
    %30 = arith.mulf %27, %29 : vector<64x32xf32>
    %c0_14 = arith.constant 0 : index
    %c0_15 = arith.constant 0 : index
    %31 = vector.load %arg6[%c0_14, %c0_15] : memref<1x32xf32, #tpu.memory_space<vmem>>, vector<1x32xf32>
    %32 = vector.broadcast %31 : vector<1x32xf32> to vector<64x32xf32>
    %33 = arith.addf %30, %32 : vector<64x32xf32>
    %c0_16 = arith.constant 0 : index
    %c0_17 = arith.constant 0 : index
    %34 = vector.load %arg7[%c0_16, %c0_17] : memref<64x32xf32, #tpu.memory_space<vmem>>, vector<64x32xf32>
    tpu.vector_store %arg7[%c0_16, %c0_17], %33 {strides = array<i32>} : memref<64x32xf32, #tpu.memory_space<vmem>>, vector<64x32xf32>,
    return
  }
  func.func @transform_0(%arg0: i32) -> (i32, i32) {
    %c0_i32 = arith.constant 0 : i32
    %c0_i32_0 = arith.constant 0 : i32
    return %arg0, %c0_i32 : i32, i32
  }
  func.func @transform_1(%arg0: i32) -> (i32, i32) {
    %c0_i32 = arith.constant 0 : i32
    %c0_i32_0 = arith.constant 0 : i32
    %c0_i32_1 = arith.constant 0 : i32
    return %c0_i32, %c0_i32_0 : i32, i32
  }
  func.func @transform_2(%arg0: i32) -> (i32, i32) {
    %c0_i32 = arith.constant 0 : i32
    %c0_i32_0 = arith.constant 0 : i32
    %c0_i32_1 = arith.constant 0 : i32
    return %c0_i32, %c0_i32_0 : i32, i32
  }
  func.func @transform_3(%arg0: i32) -> (i32, i32) {
    %c0_i32 = arith.constant 0 : i32
    %c0_i32_0 = arith.constant 0 : i32
    return %arg0, %c0_i32 : i32, i32
  }
  func.func @transform_4(%arg0: i32) -> (i32, i32) {
    %c0_i32 = arith.constant 0 : i32
    %c0_i32_0 = arith.constant 0 : i32
    %c0_i32_1 = arith.constant 0 : i32
    return %c0_i32, %c0_i32_0 : i32, i32
  }
  func.func @transform_5(%arg0: i32) -> (i32, i32) {
    %c0_i32 = arith.constant 0 : i32
    %c0_i32_0 = arith.constant 0 : i32
    %c0_i32_1 = arith.constant 0 : i32
    return %c0_i32, %c0_i32_0 : i32, i32
  }
  func.func @transform_6(%arg0: i32) -> (i32, i32) {
    %c0_i32 = arith.constant 0 : i32
    %c0_i32_0 = arith.constant 0 : i32
    return %arg0, %c0_i32 : i32, i32
  }
}

module attributes {stable_mosaic.version = 11 : i64} {
  func.func @_mm_bias_res_ln_kernel(%arg0: i32, %arg1: memref<64x512xf32, #tpu.memory_space<vmem>>, %arg2: memref<512x32xf32, #tpu.memory_space<vmem>>, %arg3: memref<1x32xf32, #tpu.memory_space<vmem>>, %arg4: memref<64x32xf32, #tpu.memory_space<vmem>>, %arg5: memref<1x32xf32, #tpu.memory_space<vmem>>, %arg6: memref<1x32xf32, #tpu.memory_space<vmem>>, %arg7: memref<64x32xf32, #tpu.memory_space<vmem>>) attributes {dimension_semantics = [#tpu.dimension_semantics<parallel>], iteration_bounds = array<i64: 1>, scalar_prefetch = 0 : i64, scratch_operands = 0 : i64, tpu.core_type = #tpu.core_type<tc>, window_params = [{transform_indices = @transform_0, window_bounds = array<i64: 64, 512>}, {pipeline_mode = #tpu.pipeline_mode<synchronous>, transform_indices = @transform_1, window_bounds = array<i64: 512, 32>}, {pipeline_mode = #tpu.pipeline_mode<synchronous>, transform_indices = @transform_2, window_bounds = array<i64: 1, 32>}, {transform_indices = @transform_3, window_bounds = array<i64: 64, 32>}, {pipeline_mode = #tpu.pipeline_mode<synchronous>, transform_indices = @transform_4, window_bounds = array<i64: 1, 32>}, {pipeline_mode = #tpu.pipeline_mode<synchronous>, transform_indices = @transform_5, window_bounds = array<i64: 1, 32>}, {transform_indices = @transform_6, window_bounds = array<i64: 64, 32>}]} {
    %c0 = arith.constant 0 : index
    %c0_0 = arith.constant 0 : index
    %0 = vector.load %arg1[%c0, %c0_0] : memref<64x512xf32, #tpu.memory_space<vmem>>, vector<64x512xf32>
    %1 = arith.truncf %0 : vector<64x512xf32> to vector<64x512xbf16>
    %c0_1 = arith.constant 0 : index
    %c0_2 = arith.constant 0 : index
    %2 = vector.load %arg2[%c0_1, %c0_2] : memref<512x32xf32, #tpu.memory_space<vmem>>, vector<512x32xf32>
    %3 = arith.truncf %2 : vector<512x32xf32> to vector<512x32xbf16>
    %cst = arith.constant dense<0.000000e+00> : vector<64x32xf32>
    %4 = tpu.matmul %1, %3, %cst {dimension_numbers = #tpu.dot_dimension_numbers<[1], [0], [0], [1], [0, 0, 1, 1], [], []>} : vector<64x512xbf16>, vector<512x32xbf16>, vector<64x32xf32> -> vector<64x32xf32>
    %c0_3 = arith.constant 0 : index
    %c0_4 = arith.constant 0 : index
    %5 = vector.load %arg3[%c0_3, %c0_4] : memref<1x32xf32, #tpu.memory_space<vmem>>, vector<1x32xf32>
    %6 = vector.broadcast %5 : vector<1x32xf32> to vector<64x32xf32>
    %7 = arith.addf %4, %6 : vector<64x32xf32>
    %c0_5 = arith.constant 0 : index
    %c0_6 = arith.constant 0 : index
    %8 = vector.load %arg4[%c0_5, %c0_6] : memref<64x32xf32, #tpu.memory_space<vmem>>, vector<64x32xf32>
    %9 = arith.addf %7, %8 : vector<64x32xf32>
    %cst_7 = arith.constant dense<0.000000e+00> : vector<64xf32>
    %10 = vector.multi_reduction <add>, %9, %cst_7 [1] : vector<64x32xf32> to vector<64xf32>
    %11 = vector.shape_cast %10 : vector<64xf32> to vector<64x1xf32>
    %cst_8 = arith.constant 3.200000e+01 : f32
    %12 = vector.broadcast %cst_8 : f32 to vector<64x1xf32>
    %13 = arith.divf %11, %12 : vector<64x1xf32>
    %14 = vector.broadcast %13 : vector<64x1xf32> to vector<64x32xf32>
    %15 = arith.subf %9, %14 : vector<64x32xf32>
    %16 = arith.mulf %15, %15 : vector<64x32xf32>
    %cst_9 = arith.constant dense<0.000000e+00> : vector<64xf32>
    %17 = vector.multi_reduction <add>, %16, %cst_9 [1] : vector<64x32xf32> to vector<64xf32>
    %18 = vector.shape_cast %17 : vector<64xf32> to vector<64x1xf32>
    %cst_10 = arith.constant 3.200000e+01 : f32
    %19 = vector.broadcast %cst_10 : f32 to vector<64x1xf32>
    %20 = arith.divf %18, %19 : vector<64x1xf32>
    %21 = vector.broadcast %13 : vector<64x1xf32> to vector<64x32xf32>
    %22 = arith.subf %9, %21 : vector<64x32xf32>
    %cst_11 = arith.constant 9.99999974E-6 : f32
    %23 = vector.broadcast %cst_11 : f32 to vector<64x1xf32>
    %24 = arith.addf %20, %23 : vector<64x1xf32>
    %25 = math.rsqrt %24 : vector<64x1xf32>
    %26 = vector.broadcast %25 : vector<64x1xf32> to vector<64x32xf32>
    %27 = arith.mulf %22, %26 : vector<64x32xf32>
    %c0_12 = arith.constant 0 : index
    %c0_13 = arith.constant 0 : index
    %28 = vector.load %arg5[%c0_12, %c0_13] : memref<1x32xf32, #tpu.memory_space<vmem>>, vector<1x32xf32>
    %29 = vector.broadcast %28 : vector<1x32xf32> to vector<64x32xf32>
    %30 = arith.mulf %27, %29 : vector<64x32xf32>
    %c0_14 = arith.constant 0 : index
    %c0_15 = arith.constant 0 : index
    %31 = vector.load %arg6[%c0_14, %c0_15] : memref<1x32xf32, #tpu.memory_space<vmem>>, vector<1x32xf32>
    %32 = vector.broadcast %31 : vector<1x32xf32> to vector<64x32xf32>
    %33 = arith.addf %30, %32 : vector<64x32xf32>
    %c0_16 = arith.constant 0 : index
    %c0_17 = arith.constant 0 : index
    %34 = vector.load %arg7[%c0_16, %c0_17] : memref<64x32xf32, #tpu.memory_space<vmem>>, vector<64x32xf32>
    tpu.vector_store %arg7[%c0_16, %c0_17], %33 {strides = array<i32>} : memref<64x32xf32, #tpu.memory_space<vmem>>, vector<64x32xf32>,
    return
  }
  func.func @transform_0(%arg0: i32) -> (i32, i32) {
    %c0_i32 = arith.constant 0 : i32
    %c0_i32_0 = arith.constant 0 : i32
    return %arg0, %c0_i32 : i32, i32
  }
  func.func @transform_1(%arg0: i32) -> (i32, i32) {
    %c0_i32 = arith.constant 0 : i32
    %c0_i32_0 = arith.constant 0 : i32
    %c0_i32_1 = arith.constant 0 : i32
    return %c0_i32, %c0_i32_0 : i32, i32
  }
  func.func @transform_2(%arg0: i32) -> (i32, i32) {
    %c0_i32 = arith.constant 0 : i32
    %c0_i32_0 = arith.constant 0 : i32
    %c0_i32_1 = arith.constant 0 : i32
    return %c0_i32, %c0_i32_0 : i32, i32
  }
  func.func @transform_3(%arg0: i32) -> (i32, i32) {
    %c0_i32 = arith.constant 0 : i32
    %c0_i32_0 = arith.constant 0 : i32
    return %arg0, %c0_i32 : i32, i32
  }
  func.func @transform_4(%arg0: i32) -> (i32, i32) {
    %c0_i32 = arith.constant 0 : i32
    %c0_i32_0 = arith.constant 0 : i32
    %c0_i32_1 = arith.constant 0 : i32
    return %c0_i32, %c0_i32_0 : i32, i32
  }
  func.func @transform_5(%arg0: i32) -> (i32, i32) {
    %c0_i32 = arith.constant 0 : i32
    %c0_i32_0 = arith.constant 0 : i32
    %c0_i32_1 = arith.constant 0 : i32
    return %c0_i32, %c0_i32_0 : i32, i32
  }
  func.func @transform_6(%arg0: i32) -> (i32, i32) {
    %c0_i32 = arith.constant 0 : i32
    %c0_i32_0 = arith.constant 0 : i32
    return %arg0, %c0_i32 : i32, i32
  }
}

module attributes {stable_mosaic.version = 11 : i64} {
  func.func @_mm_bias_kernel(%arg0: i32, %arg1: memref<64x32xf32, #tpu.memory_space<vmem>>, %arg2: memref<32x4xf32, #tpu.memory_space<vmem>>, %arg3: memref<1x4xf32, #tpu.memory_space<vmem>>, %arg4: memref<64x4xf32, #tpu.memory_space<vmem>>) attributes {dimension_semantics = [#tpu.dimension_semantics<parallel>], iteration_bounds = array<i64: 1>, scalar_prefetch = 0 : i64, scratch_operands = 0 : i64, tpu.core_type = #tpu.core_type<tc>, window_params = [{transform_indices = @transform_0, window_bounds = array<i64: 64, 32>}, {pipeline_mode = #tpu.pipeline_mode<synchronous>, transform_indices = @transform_1, window_bounds = array<i64: 32, 4>}, {pipeline_mode = #tpu.pipeline_mode<synchronous>, transform_indices = @transform_2, window_bounds = array<i64: 1, 4>}, {transform_indices = @transform_3, window_bounds = array<i64: 64, 4>}]} {
    %c0 = arith.constant 0 : index
    %c0_0 = arith.constant 0 : index
    %0 = vector.load %arg1[%c0, %c0_0] : memref<64x32xf32, #tpu.memory_space<vmem>>, vector<64x32xf32>
    %1 = arith.truncf %0 : vector<64x32xf32> to vector<64x32xbf16>
    %c0_1 = arith.constant 0 : index
    %c0_2 = arith.constant 0 : index
    %2 = vector.load %arg2[%c0_1, %c0_2] : memref<32x4xf32, #tpu.memory_space<vmem>>, vector<32x4xf32>
    %3 = arith.truncf %2 : vector<32x4xf32> to vector<32x4xbf16>
    %cst = arith.constant dense<0.000000e+00> : vector<64x4xf32>
    %4 = tpu.matmul %1, %3, %cst {dimension_numbers = #tpu.dot_dimension_numbers<[1], [0], [0], [1], [0, 0, 1, 1], [], []>} : vector<64x32xbf16>, vector<32x4xbf16>, vector<64x4xf32> -> vector<64x4xf32>
    %c0_3 = arith.constant 0 : index
    %c0_4 = arith.constant 0 : index
    %5 = vector.load %arg3[%c0_3, %c0_4] : memref<1x4xf32, #tpu.memory_space<vmem>>, vector<1x4xf32>
    %6 = vector.broadcast %5 : vector<1x4xf32> to vector<64x4xf32>
    %7 = arith.addf %4, %6 : vector<64x4xf32>
    %c0_5 = arith.constant 0 : index
    %c0_6 = arith.constant 0 : index
    %8 = vector.load %arg4[%c0_5, %c0_6] : memref<64x4xf32, #tpu.memory_space<vmem>>, vector<64x4xf32>
    tpu.vector_store %arg4[%c0_5, %c0_6], %7 {strides = array<i32>} : memref<64x4xf32, #tpu.memory_space<vmem>>, vector<64x4xf32>,
    return
  }
  func.func @transform_0(%arg0: i32) -> (i32, i32) {
    %c0_i32 = arith.constant 0 : i32
    %c0_i32_0 = arith.constant 0 : i32
    return %arg0, %c0_i32 : i32, i32
  }
  func.func @transform_1(%arg0: i32) -> (i32, i32) {
    %c0_i32 = arith.constant 0 : i32
    %c0_i32_0 = arith.constant 0 : i32
    %c0_i32_1 = arith.constant 0 : i32
    return %c0_i32, %c0_i32_0 : i32, i32
  }
  func.func @transform_2(%arg0: i32) -> (i32, i32) {
    %c0_i32 = arith.constant 0 : i32
    %c0_i32_0 = arith.constant 0 : i32
    %c0_i32_1 = arith.constant 0 : i32
    return %c0_i32, %c0_i32_0 : i32, i32
  }
  func.func @transform_3(%arg0: i32) -> (i32, i32) {
    %c0_i32 = arith.constant 0 : i32
    %c0_i32_0 = arith.constant 0 : i32
    return %arg0, %c0_i32 : i32, i32
  }
}

module attributes {stable_mosaic.version = 11 : i64} {
  func.func @_mm_bias_kernel(%arg0: i32, %arg1: memref<64x8xf32, #tpu.memory_space<vmem>>, %arg2: memref<8x16xf32, #tpu.memory_space<vmem>>, %arg3: memref<1x16xf32, #tpu.memory_space<vmem>>, %arg4: memref<64x16xf32, #tpu.memory_space<vmem>>) attributes {dimension_semantics = [#tpu.dimension_semantics<parallel>], iteration_bounds = array<i64: 1>, scalar_prefetch = 0 : i64, scratch_operands = 0 : i64, tpu.core_type = #tpu.core_type<tc>, window_params = [{transform_indices = @transform_0, window_bounds = array<i64: 64, 8>}, {pipeline_mode = #tpu.pipeline_mode<synchronous>, transform_indices = @transform_1, window_bounds = array<i64: 8, 16>}, {pipeline_mode = #tpu.pipeline_mode<synchronous>, transform_indices = @transform_2, window_bounds = array<i64: 1, 16>}, {transform_indices = @transform_3, window_bounds = array<i64: 64, 16>}]} {
    %c0 = arith.constant 0 : index
    %c0_0 = arith.constant 0 : index
    %0 = vector.load %arg1[%c0, %c0_0] : memref<64x8xf32, #tpu.memory_space<vmem>>, vector<64x8xf32>
    %1 = arith.truncf %0 : vector<64x8xf32> to vector<64x8xbf16>
    %c0_1 = arith.constant 0 : index
    %c0_2 = arith.constant 0 : index
    %2 = vector.load %arg2[%c0_1, %c0_2] : memref<8x16xf32, #tpu.memory_space<vmem>>, vector<8x16xf32>
    %3 = arith.truncf %2 : vector<8x16xf32> to vector<8x16xbf16>
    %cst = arith.constant dense<0.000000e+00> : vector<64x16xf32>
    %4 = tpu.matmul %1, %3, %cst {dimension_numbers = #tpu.dot_dimension_numbers<[1], [0], [0], [1], [0, 0, 1, 1], [], []>} : vector<64x8xbf16>, vector<8x16xbf16>, vector<64x16xf32> -> vector<64x16xf32>
    %c0_3 = arith.constant 0 : index
    %c0_4 = arith.constant 0 : index
    %5 = vector.load %arg3[%c0_3, %c0_4] : memref<1x16xf32, #tpu.memory_space<vmem>>, vector<1x16xf32>
    %6 = vector.broadcast %5 : vector<1x16xf32> to vector<64x16xf32>
    %7 = arith.addf %4, %6 : vector<64x16xf32>
    %c0_5 = arith.constant 0 : index
    %c0_6 = arith.constant 0 : index
    %8 = vector.load %arg4[%c0_5, %c0_6] : memref<64x16xf32, #tpu.memory_space<vmem>>, vector<64x16xf32>
    tpu.vector_store %arg4[%c0_5, %c0_6], %7 {strides = array<i32>} : memref<64x16xf32, #tpu.memory_space<vmem>>, vector<64x16xf32>,
    return
  }
  func.func @transform_0(%arg0: i32) -> (i32, i32) {
    %c0_i32 = arith.constant 0 : i32
    %c0_i32_0 = arith.constant 0 : i32
    return %arg0, %c0_i32 : i32, i32
  }
  func.func @transform_1(%arg0: i32) -> (i32, i32) {
    %c0_i32 = arith.constant 0 : i32
    %c0_i32_0 = arith.constant 0 : i32
    %c0_i32_1 = arith.constant 0 : i32
    return %c0_i32, %c0_i32_0 : i32, i32
  }
  func.func @transform_2(%arg0: i32) -> (i32, i32) {
    %c0_i32 = arith.constant 0 : i32
    %c0_i32_0 = arith.constant 0 : i32
    %c0_i32_1 = arith.constant 0 : i32
    return %c0_i32, %c0_i32_0 : i32, i32
  }
  func.func @transform_3(%arg0: i32) -> (i32, i32) {
    %c0_i32 = arith.constant 0 : i32
    %c0_i32_0 = arith.constant 0 : i32
    return %arg0, %c0_i32 : i32, i32
  }
}

module attributes {stable_mosaic.version = 11 : i64} {
  func.func @_mm_bias_kernel(%arg0: i32, %arg1: memref<64x16xf32, #tpu.memory_space<vmem>>, %arg2: memref<16x4xf32, #tpu.memory_space<vmem>>, %arg3: memref<1x4xf32, #tpu.memory_space<vmem>>, %arg4: memref<64x4xf32, #tpu.memory_space<vmem>>) attributes {dimension_semantics = [#tpu.dimension_semantics<parallel>], iteration_bounds = array<i64: 1>, scalar_prefetch = 0 : i64, scratch_operands = 0 : i64, tpu.core_type = #tpu.core_type<tc>, window_params = [{transform_indices = @transform_0, window_bounds = array<i64: 64, 16>}, {pipeline_mode = #tpu.pipeline_mode<synchronous>, transform_indices = @transform_1, window_bounds = array<i64: 16, 4>}, {pipeline_mode = #tpu.pipeline_mode<synchronous>, transform_indices = @transform_2, window_bounds = array<i64: 1, 4>}, {transform_indices = @transform_3, window_bounds = array<i64: 64, 4>}]} {
    %c0 = arith.constant 0 : index
    %c0_0 = arith.constant 0 : index
    %0 = vector.load %arg1[%c0, %c0_0] : memref<64x16xf32, #tpu.memory_space<vmem>>, vector<64x16xf32>
    %1 = arith.truncf %0 : vector<64x16xf32> to vector<64x16xbf16>
    %c0_1 = arith.constant 0 : index
    %c0_2 = arith.constant 0 : index
    %2 = vector.load %arg2[%c0_1, %c0_2] : memref<16x4xf32, #tpu.memory_space<vmem>>, vector<16x4xf32>
    %3 = arith.truncf %2 : vector<16x4xf32> to vector<16x4xbf16>
    %cst = arith.constant dense<0.000000e+00> : vector<64x4xf32>
    %4 = tpu.matmul %1, %3, %cst {dimension_numbers = #tpu.dot_dimension_numbers<[1], [0], [0], [1], [0, 0, 1, 1], [], []>} : vector<64x16xbf16>, vector<16x4xbf16>, vector<64x4xf32> -> vector<64x4xf32>
    %c0_3 = arith.constant 0 : index
    %c0_4 = arith.constant 0 : index
    %5 = vector.load %arg3[%c0_3, %c0_4] : memref<1x4xf32, #tpu.memory_space<vmem>>, vector<1x4xf32>
    %6 = vector.broadcast %5 : vector<1x4xf32> to vector<64x4xf32>
    %7 = arith.addf %4, %6 : vector<64x4xf32>
    %c0_5 = arith.constant 0 : index
    %c0_6 = arith.constant 0 : index
    %8 = vector.load %arg4[%c0_5, %c0_6] : memref<64x4xf32, #tpu.memory_space<vmem>>, vector<64x4xf32>
    tpu.vector_store %arg4[%c0_5, %c0_6], %7 {strides = array<i32>} : memref<64x4xf32, #tpu.memory_space<vmem>>, vector<64x4xf32>,
    return
  }
  func.func @transform_0(%arg0: i32) -> (i32, i32) {
    %c0_i32 = arith.constant 0 : i32
    %c0_i32_0 = arith.constant 0 : i32
    return %arg0, %c0_i32 : i32, i32
  }
  func.func @transform_1(%arg0: i32) -> (i32, i32) {
    %c0_i32 = arith.constant 0 : i32
    %c0_i32_0 = arith.constant 0 : i32
    %c0_i32_1 = arith.constant 0 : i32
    return %c0_i32, %c0_i32_0 : i32, i32
  }
  func.func @transform_2(%arg0: i32) -> (i32, i32) {
    %c0_i32 = arith.constant 0 : i32
    %c0_i32_0 = arith.constant 0 : i32
    %c0_i32_1 = arith.constant 0 : i32
    return %c0_i32, %c0_i32_0 : i32, i32
  }
  func.func @transform_3(%arg0: i32) -> (i32, i32) {
    %c0_i32 = arith.constant 0 : i32
    %c0_i32_0 = arith.constant 0 : i32
    return %arg0, %c0_i32 : i32, i32
  }
}

</mosaic_0001>

<llo_original>
// kernel: hybrid_forward.25
$region0: #{hybrid_forward.25}
  #allocation0 [shape = 'u32[]', space=smem, size = 0x4, offset = 0x4, fixed_abs, tag = 'smem constant byte address 0x4 - core index']
  #allocation1 [shape = 'u32[144,128]{1,0:T(1,128)}', space=vmem, size = 0x12000, scoped, tag = 'internal scratch']
  %s0 = inlined_call_operand.vmem [shape: f32[64,28], index: 0, kind: input, shape index: {}]
  %s1 = inlined_call_operand.vmem [shape: f32[28,16], index: 1, kind: input, shape index: {}]
  %s2 = inlined_call_operand.vmem [shape: f32[1,16], index: 2, kind: input, shape index: {}]
  %s3 = inlined_call_operand.vmem [shape: f32[64,16], index: 3, kind: output, shape index: {}]
  %s4 = sld [smem:[#allocation0]]
  $region22: #{hybrid_forward.25} parent=0
    _
  %s6 = ssub.s32 1, %s4
  %s7 = scalar_select 0, %s6, %s4
  // Predicated region
  $region2: #{hybrid_forward.25} parent=0 // pred_check
    _
  $region3: #{hybrid_forward.25} parent=0 // pred_check_branch
    %9 = sbr.rel (0) target = $region5
  $region4: #{hybrid_forward.25} parent=0 // pred_region
    _
  $region5: #{hybrid_forward.25} parent=0 // pred_fallthru
    _
  // Predicated region
  $region6: #{hybrid_forward.25} parent=0 // pred_check
    _
  $region7: #{hybrid_forward.25} parent=0 // pred_check_branch
    %11 = sbr.rel (0) target = $region9
  $region8: #{hybrid_forward.25} parent=0 // pred_region
    _
  $region9: #{hybrid_forward.25} parent=0 // pred_fallthru
    _
  // Predicated region
  $region10: #{hybrid_forward.25} parent=0 // pred_check
    _
  $region11: #{hybrid_forward.25} parent=0 // pred_check_branch
    %13 = sbr.rel (0) target = $region13
  $region12: #{hybrid_forward.25} parent=0 // pred_region
    _
  $region13: #{hybrid_forward.25} parent=0 // pred_fallthru
    _
  %v15 = vld [vmem:[%s0] sm:$0xff]
  %v16 = vld [vmem:[%s0 + $0x8] sm:$0xff]
  %v17 = vld [vmem:[%s0 + $0x10] sm:$0xff]
  %v18 = vld [vmem:[%s0 + $0x18] sm:$0xff]
  %v19 = vld [vmem:[%s0 + $0x20] sm:$0xff]
  %v20 = vld [vmem:[%s0 + $0x28] sm:$0xff]
  %v21 = vld [vmem:[%s0 + $0x30] sm:$0xff]
  %v22 = vld [vmem:[%s0 + $0x38] sm:$0xff]
  %v23 = vpack.c.bf16 %v16, %v15
  %v24 = vpack.c.bf16 %v18, %v17
  %v25 = vpack.c.bf16 %v20, %v19
  %v26 = vpack.c.bf16 %v22, %v21
  %v27 = vld [vmem:[%s1] sm:$0xff]
  %v28 = vld [vmem:[%s1 + $0x8] sm:$0xff]
  %v29 = vld [vmem:[%s1 + $0x10] sm:$0xff]
  %v30 = vld [vmem:[%s1 + $0x18] sm:$0xf]
  %v31 = vpack.c.bf16 %v28, %v27
  %v32 = vpack.c.bf16 %v30, %v29
  %v33 = vld [vmem:[%s2] sm:$0x1]
  %v35 = vlaneseq
  %v36 = vshrl.u32 %v35, 7
  %v37 = vsub.s32 0, %v36
  %v38 = vrot.slane %v33, %v37
  %vm40 = vcmask 228352
  %v42 = vsel %vm40, %v23, 0
  %v45 = vsel %vm40, %v24, 0
  %v48 = vsel %vm40, %v25, 0
  %v51 = vsel %vm40, %v26, 0
  %vm53 = vcmask 1045504
  %v55 = vsel %vm53, %v32, 0
  %57 = vmatprep.subr.bf16.mxu0 0
  %58 = vmatpush1.bf16.msra.mxu0 %v31
  %59 = vmatprep.subr.bf16.mxu0 0
  %60 = vmatpush1.bf16.msra.mxu0 %v55
  %61 = vmatprep.subr.bf16.mxu0 0
  %62 = vmatpush1.bf16.msra.mxu0 0
  %63 = vmatprep.subr.bf16.mxu0 0
  %64 = vmatpush1.bf16.msra.mxu0 0
  %65 = vmatprep.subr.bf16.mxu0 0
  %66 = vmatpush1.bf16.msra.mxu0 0
  %67 = vmatprep.subr.bf16.mxu0 0
  %68 = vmatpush1.bf16.msra.mxu0 0
  %69 = vmatprep.subr.bf16.mxu0 0
  %70 = vmatpush1.bf16.msra.mxu0 0
  %71 = vmatprep.subr.bf16.mxu0 0
  %72 = vmatpush1.bf16.msra.mxu0 0
  %73 = vmatprep.subr.bf16.mxu0 0
  %74 = vmatpush1.bf16.msra.mxu0 0
  %75 = vmatprep.subr.bf16.mxu0 0
  %76 = vmatpush1.bf16.msra.mxu0 0
  %77 = vmatprep.subr.bf16.mxu0 0
  %78 = vmatpush1.bf16.msra.mxu0 0
  %79 = vmatprep.subr.bf16.mxu0 0
  %80 = vmatpush1.bf16.msra.mxu0 0
  %81 = vmatprep.subr.bf16.mxu0 0
  %82 = vmatpush1.bf16.msra.mxu0 0
  %83 = vmatprep.subr.bf16.mxu0 0
  %84 = vmatpush1.bf16.msra.mxu0 0
  %85 = vmatprep.subr.bf16.mxu0 0
  %86 = vmatpush1.bf16.msra.mxu0 0
  %87 = vmatprep.subr.bf16.mxu0 0
  %88 = vmatpush1.bf16.msra.mxu0 0
  %89 = vmatprep.mubr.bf16.mxu0 0
  %90 = vmatmul.mubr.bf16.gmra.mrb[0].mxu0 %v42
  %v91 = vpop.f32.mrb[0].mxu0
  %v92 = vadd.f32 %v38, %v91
  %v93 = vpop.f32.mrb[0].mxu0
  %v94 = vpop.f32.mrb[0].mxu0
  %v95 = vadd.f32 %v38, %v94
  %v96 = vpop.f32.mrb[0].mxu0
  %97 = vmatprep.mubr.bf16.mxu0 0
  %98 = vmatmul.mubr.bf16.gmra.mrb[0].mxu0 %v45
  %v99 = vpop.f32.mrb[0].mxu0
  %v100 = vadd.f32 %v38, %v99
  %v101 = vpop.f32.mrb[0].mxu0
  %v102 = vpop.f32.mrb[0].mxu0
  %v103 = vadd.f32 %v38, %v102
  %v104 = vpop.f32.mrb[0].mxu0
  %105 = vmatprep.mubr.bf16.mxu0 0
  %106 = vmatmul.mubr.bf16.gmra.mrb[0].mxu0 %v48
  %v107 = vpop.f32.mrb[0].mxu0
  %v108 = vadd.f32 %v38, %v107
  %v109 = vpop.f32.mrb[0].mxu0
  %v110 = vpop.f32.mrb[0].mxu0
  %v111 = vadd.f32 %v38, %v110
  %v112 = vpop.f32.mrb[0].mxu0
  %113 = vmatprep.mubr.bf16.mxu0 0
  %114 = vmatmul.mubr.bf16.gmra.mrb[0].mxu0 %v51
  %v115 = vpop.f32.mrb[0].mxu0
  %v116 = vadd.f32 %v38, %v115
  %v117 = vpop.f32.mrb[0].mxu0
  %v118 = vpop.f32.mrb[0].mxu0
  %v119 = vadd.f32 %v38, %v118
  %v120 = vpop.f32.mrb[0].mxu0
  %121 = vdwg.mxu0
  %vm122 = vcmask 130048
  %123 = vst.msk [vmem:[%s3] sm:$0xff] %vm122, %v92
  %124 = vst.msk [vmem:[%s3 + $0x8] sm:$0xff] %vm122, %v95
  %125 = vst.msk [vmem:[%s3 + $0x10] sm:$0xff] %vm122, %v100
  %126 = vst.msk [vmem:[%s3 + $0x18] sm:$0xff] %vm122, %v103
  %127 = vst.msk [vmem:[%s3 + $0x20] sm:$0xff] %vm122, %v108
  %128 = vst.msk [vmem:[%s3 + $0x28] sm:$0xff] %vm122, %v111
  %129 = vst.msk [vmem:[%s3 + $0x30] sm:$0xff] %vm122, %v116
  %130 = vst.msk [vmem:[%s3 + $0x38] sm:$0xff] %vm122, %v119
  // Predicated region
  $region14: #{hybrid_forward.25} parent=0 // pred_check
    _
  $region15: #{hybrid_forward.25} parent=0 // pred_check_branch
    %132 = sbr.rel (0) target = $region17
  $region16: #{hybrid_forward.25} parent=0 // pred_region
    _
  $region17: #{hybrid_forward.25} parent=0 // pred_fallthru
    _
  // Predicated region
  $region18: #{hybrid_forward.25} parent=0 // pred_check
    _
  $region19: #{hybrid_forward.25} parent=0 // pred_check_branch
    %134 = sbr.rel (0) target = $region21
  $region20: #{hybrid_forward.25} parent=0 // pred_region
    _
  $region21: #{hybrid_forward.25} parent=0 // pred_fallthru
    _

// kernel: hybrid_forward.26
$region0: #{hybrid_forward.26}
  #allocation0 [shape = 'u32[]', space=smem, size = 0x4, offset = 0x4, fixed_abs, tag = 'smem constant byte address 0x4 - core index']
  #allocation1 [shape = 'u32[144,128]{1,0:T(1,128)}', space=vmem, size = 0x12000, scoped, tag = 'internal scratch']
  %s0 = inlined_call_operand.vmem [shape: f32[64,112], index: 0, kind: input, shape index: {}]
  %s1 = inlined_call_operand.vmem [shape: f32[112,16], index: 1, kind: input, shape index: {}]
  %s2 = inlined_call_operand.vmem [shape: f32[1,16], index: 2, kind: input, shape index: {}]
  %s3 = inlined_call_operand.vmem [shape: f32[64,16], index: 3, kind: output, shape index: {}]
  %s4 = sld [smem:[#allocation0]]
  $region22: #{hybrid_forward.26} parent=0
    _
  %s6 = ssub.s32 1, %s4
  %s7 = scalar_select 0, %s6, %s4
  // Predicated region
  $region2: #{hybrid_forward.26} parent=0 // pred_check
    _
  $region3: #{hybrid_forward.26} parent=0 // pred_check_branch
    %9 = sbr.rel (0) target = $region5
  $region4: #{hybrid_forward.26} parent=0 // pred_region
    _
  $region5: #{hybrid_forward.26} parent=0 // pred_fallthru
    _
  // Predicated region
  $region6: #{hybrid_forward.26} parent=0 // pred_check
    _
  $region7: #{hybrid_forward.26} parent=0 // pred_check_branch
    %11 = sbr.rel (0) target = $region9
  $region8: #{hybrid_forward.26} parent=0 // pred_region
    _
  $region9: #{hybrid_forward.26} parent=0 // pred_fallthru
    _
  // Predicated region
  $region10: #{hybrid_forward.26} parent=0 // pred_check
    _
  $region11: #{hybrid_forward.26} parent=0 // pred_check_branch
    %13 = sbr.rel (0) target = $region13
  $region12: #{hybrid_forward.26} parent=0 // pred_region
    _
  $region13: #{hybrid_forward.26} parent=0 // pred_fallthru
    _
  %v15 = vld [vmem:[%s0] sm:$0xff]
  %v16 = vld [vmem:[%s0 + $0x8] sm:$0xff]
  %v17 = vld [vmem:[%s0 + $0x10] sm:$0xff]
  %v18 = vld [vmem:[%s0 + $0x18] sm:$0xff]
  %v19 = vld [vmem:[%s0 + $0x20] sm:$0xff]
  %v20 = vld [vmem:[%s0 + $0x28] sm:$0xff]
  %v21 = vld [vmem:[%s0 + $0x30] sm:$0xff]
  %v22 = vld [vmem:[%s0 + $0x38] sm:$0xff]
  %v23 = vpack.c.bf16 %v16, %v15
  %v24 = vpack.c.bf16 %v18, %v17
  %v25 = vpack.c.bf16 %v20, %v19
  %v26 = vpack.c.bf16 %v22, %v21
  %v27 = vld [vmem:[%s1] sm:$0xff]
  %v28 = vld [vmem:[%s1 + $0x8] sm:$0xff]
  %v29 = vld [vmem:[%s1 + $0x10] sm:$0xff]
  %v30 = vld [vmem:[%s1 + $0x18] sm:$0xff]
  %v31 = vld [vmem:[%s1 + $0x20] sm:$0xff]
  %v32 = vld [vmem:[%s1 + $0x28] sm:$0xff]
  %v33 = vld [vmem:[%s1 + $0x30] sm:$0xff]
  %v34 = vld [vmem:[%s1 + $0x38] sm:$0xff]
  %v35 = vld [vmem:[%s1 + $0x40] sm:$0xff]
  %v36 = vld [vmem:[%s1 + $0x48] sm:$0xff]
  %v37 = vld [vmem:[%s1 + $0x50] sm:$0xff]
  %v38 = vld [vmem:[%s1 + $0x58] sm:$0xff]
  %v39 = vld [vmem:[%s1 + $0x60] sm:$0xff]
  %v40 = vld [vmem:[%s1 + $0x68] sm:$0xff]
  %v41 = vpack.c.bf16 %v28, %v27
  %v42 = vpack.c.bf16 %v30, %v29
  %v43 = vpack.c.bf16 %v32, %v31
  %v44 = vpack.c.bf16 %v34, %v33
  %v45 = vpack.c.bf16 %v36, %v35
  %v46 = vpack.c.bf16 %v38, %v37
  %v47 = vpack.c.bf16 %v40, %v39
  %v48 = vld [vmem:[%s2] sm:$0x1]
  %v50 = vlaneseq
  %v51 = vshrl.u32 %v50, 7
  %v52 = vsub.s32 0, %v51
  %v53 = vrot.slane %v48, %v52
  %vm55 = vcmask 916480
  %v57 = vsel %vm55, %v23, 0
  %v60 = vsel %vm55, %v24, 0
  %v63 = vsel %vm55, %v25, 0
  %v66 = vsel %vm55, %v26, 0
  %68 = vmatprep.subr.bf16.mxu0 0
  %69 = vmatpush1.bf16.msra.mxu0 %v41
  %70 = vmatprep.subr.bf16.mxu0 0
  %71 = vmatpush1.bf16.msra.mxu0 %v42
  %72 = vmatprep.subr.bf16.mxu0 0
  %73 = vmatpush1.bf16.msra.mxu0 %v43
  %74 = vmatprep.subr.bf16.mxu0 0
  %75 = vmatpush1.bf16.msra.mxu0 %v44
  %76 = vmatprep.subr.bf16.mxu0 0
  %77 = vmatpush1.bf16.msra.mxu0 %v45
  %78 = vmatprep.subr.bf16.mxu0 0
  %79 = vmatpush1.bf16.msra.mxu0 %v46
  %80 = vmatprep.subr.bf16.mxu0 0
  %81 = vmatpush1.bf16.msra.mxu0 %v47
  %82 = vmatprep.subr.bf16.mxu0 0
  %83 = vmatpush1.bf16.msra.mxu0 0
  %84 = vmatprep.subr.bf16.mxu0 0
  %85 = vmatpush1.bf16.msra.mxu0 0
  %86 = vmatprep.subr.bf16.mxu0 0
  %87 = vmatpush1.bf16.msra.mxu0 0
  %88 = vmatprep.subr.bf16.mxu0 0
  %89 = vmatpush1.bf16.msra.mxu0 0
  %90 = vmatprep.subr.bf16.mxu0 0
  %91 = vmatpush1.bf16.msra.mxu0 0
  %92 = vmatprep.subr.bf16.mxu0 0
  %93 = vmatpush1.bf16.msra.mxu0 0
  %94 = vmatprep.subr.bf16.mxu0 0
  %95 = vmatpush1.bf16.msra.mxu0 0
  %96 = vmatprep.subr.bf16.mxu0 0
  %97 = vmatpush1.bf16.msra.mxu0 0
  %98 = vmatprep.subr.bf16.mxu0 0
  %99 = vmatpush1.bf16.msra.mxu0 0
  %100 = vmatprep.mubr.bf16.mxu0 0
  %101 = vmatmul.mubr.bf16.gmra.mrb[0].mxu0 %v57
  %v102 = vpop.f32.mrb[0].mxu0
  %v103 = vadd.f32 %v53, %v102
  %v104 = vpop.f32.mrb[0].mxu0
  %v105 = vpop.f32.mrb[0].mxu0
  %v106 = vadd.f32 %v53, %v105
  %v107 = vpop.f32.mrb[0].mxu0
  %108 = vmatprep.mubr.bf16.mxu0 0
  %109 = vmatmul.mubr.bf16.gmra.mrb[0].mxu0 %v60
  %v110 = vpop.f32.mrb[0].mxu0
  %v111 = vadd.f32 %v53, %v110
  %v112 = vpop.f32.mrb[0].mxu0
  %v113 = vpop.f32.mrb[0].mxu0
  %v114 = vadd.f32 %v53, %v113
  %v115 = vpop.f32.mrb[0].mxu0
  %116 = vmatprep.mubr.bf16.mxu0 0
  %117 = vmatmul.mubr.bf16.gmra.mrb[0].mxu0 %v63
  %v118 = vpop.f32.mrb[0].mxu0
  %v119 = vadd.f32 %v53, %v118
  %v120 = vpop.f32.mrb[0].mxu0
  %v121 = vpop.f32.mrb[0].mxu0
  %v122 = vadd.f32 %v53, %v121
  %v123 = vpop.f32.mrb[0].mxu0
  %124 = vmatprep.mubr.bf16.mxu0 0
  %125 = vmatmul.mubr.bf16.gmra.mrb[0].mxu0 %v66
  %v126 = vpop.f32.mrb[0].mxu0
  %v127 = vadd.f32 %v53, %v126
  %v128 = vpop.f32.mrb[0].mxu0
  %v129 = vpop.f32.mrb[0].mxu0
  %v130 = vadd.f32 %v53, %v129
  %v131 = vpop.f32.mrb[0].mxu0
  %132 = vdwg.mxu0
  %vm133 = vcmask 130048
  %134 = vst.msk [vmem:[%s3] sm:$0xff] %vm133, %v103
  %135 = vst.msk [vmem:[%s3 + $0x8] sm:$0xff] %vm133, %v106
  %136 = vst.msk [vmem:[%s3 + $0x10] sm:$0xff] %vm133, %v111
  %137 = vst.msk [vmem:[%s3 + $0x18] sm:$0xff] %vm133, %v114
  %138 = vst.msk [vmem:[%s3 + $0x20] sm:$0xff] %vm133, %v119
  %139 = vst.msk [vmem:[%s3 + $0x28] sm:$0xff] %vm133, %v122
  %140 = vst.msk [vmem:[%s3 + $0x30] sm:$0xff] %vm133, %v127
  %141 = vst.msk [vmem:[%s3 + $0x38] sm:$0xff] %vm133, %v130
  // Predicated region
  $region14: #{hybrid_forward.26} parent=0 // pred_check
    _
  $region15: #{hybrid_forward.26} parent=0 // pred_check_branch
    %143 = sbr.rel (0) target = $region17
  $region16: #{hybrid_forward.26} parent=0 // pred_region
    _
  $region17: #{hybrid_forward.26} parent=0 // pred_fallthru
    _
  // Predicated region
  $region18: #{hybrid_forward.26} parent=0 // pred_check
    _
  $region19: #{hybrid_forward.26} parent=0 // pred_check_branch
    %145 = sbr.rel (0) target = $region21
  $region20: #{hybrid_forward.26} parent=0 // pred_region
    _
  $region21: #{hybrid_forward.26} parent=0 // pred_fallthru
    _

// kernel: hybrid_forward.27
$region0: #{hybrid_forward.27}
  #allocation0 [shape = 'u32[]', space=smem, size = 0x4, offset = 0x4, fixed_abs, tag = 'smem constant byte address 0x4 - core index']
  #allocation1 [shape = 'u32[144,128]{1,0:T(1,128)}', space=vmem, size = 0x12000, scoped, tag = 'internal scratch']
  %s0 = inlined_call_operand.vmem [shape: f32[32,32], index: 0, kind: input, shape index: {}]
  %s1 = inlined_call_operand.vmem [shape: f32[32,32], index: 1, kind: input, shape index: {}]
  %s2 = inlined_call_operand.vmem [shape: f32[1,32], index: 2, kind: input, shape index: {}]
  %s3 = inlined_call_operand.vmem [shape: f32[32,32], index: 3, kind: output, shape index: {}]
  %s4 = sld [smem:[#allocation0]]
  $region22: #{hybrid_forward.27} parent=0
    _
  %s6 = ssub.s32 1, %s4
  %s7 = scalar_select 0, %s6, %s4
  // Predicated region
  $region2: #{hybrid_forward.27} parent=0 // pred_check
    _
  $region3: #{hybrid_forward.27} parent=0 // pred_check_branch
    %9 = sbr.rel (0) target = $region5
  $region4: #{hybrid_forward.27} parent=0 // pred_region
    _
  $region5: #{hybrid_forward.27} parent=0 // pred_fallthru
    _
  // Predicated region
  $region6: #{hybrid_forward.27} parent=0 // pred_check
    _
  $region7: #{hybrid_forward.27} parent=0 // pred_check_branch
    %11 = sbr.rel (0) target = $region9
  $region8: #{hybrid_forward.27} parent=0 // pred_region
    _
  $region9: #{hybrid_forward.27} parent=0 // pred_fallthru
    _
  // Predicated region
  $region10: #{hybrid_forward.27} parent=0 // pred_check
    _
  $region11: #{hybrid_forward.27} parent=0 // pred_check_branch
    %13 = sbr.rel (0) target = $region13
  $region12: #{hybrid_forward.27} parent=0 // pred_region
    _
  $region13: #{hybrid_forward.27} parent=0 // pred_fallthru
    _
  %v15 = vld [vmem:[%s0] sm:$0xff]
  %v16 = vld [vmem:[%s0 + $0x8] sm:$0xff]
  %v17 = vld [vmem:[%s0 + $0x10] sm:$0xff]
  %v18 = vld [vmem:[%s0 + $0x18] sm:$0xff]
  %v19 = vpack.c.bf16 %v16, %v15
  %v20 = vpack.c.bf16 %v18, %v17
  %v21 = vld [vmem:[%s1] sm:$0xff]
  %v22 = vld [vmem:[%s1 + $0x8] sm:$0xff]
  %v23 = vld [vmem:[%s1 + $0x10] sm:$0xff]
  %v24 = vld [vmem:[%s1 + $0x18] sm:$0xff]
  %v25 = vpack.c.bf16 %v22, %v21
  %v26 = vpack.c.bf16 %v24, %v23
  %v27 = vld [vmem:[%s2] sm:$0x1]
  %v29 = vlaneseq
  %v30 = vshrl.u32 %v29, 7
  %v31 = vsub.s32 0, %v30
  %v32 = vrot.slane %v27, %v31
  %vm34 = vcmask 261120
  %v36 = vsel %vm34, %v19, 0
  %v39 = vsel %vm34, %v20, 0
  %41 = vmatprep.subr.bf16.mxu0 0
  %42 = vmatpush1.bf16.msra.mxu0 %v25
  %43 = vmatprep.subr.bf16.mxu0 0
  %44 = vmatpush1.bf16.msra.mxu0 %v26
  %45 = vmatprep.subr.bf16.mxu0 0
  %46 = vmatpush1.bf16.msra.mxu0 0
  %47 = vmatprep.subr.bf16.mxu0 0
  %48 = vmatpush1.bf16.msra.mxu0 0
  %49 = vmatprep.subr.bf16.mxu0 0
  %50 = vmatpush1.bf16.msra.mxu0 0
  %51 = vmatprep.subr.bf16.mxu0 0
  %52 = vmatpush1.bf16.msra.mxu0 0
  %53 = vmatprep.subr.bf16.mxu0 0
  %54 = vmatpush1.bf16.msra.mxu0 0
  %55 = vmatprep.subr.bf16.mxu0 0
  %56 = vmatpush1.bf16.msra.mxu0 0
  %57 = vmatprep.subr.bf16.mxu0 0
  %58 = vmatpush1.bf16.msra.mxu0 0
  %59 = vmatprep.subr.bf16.mxu0 0
  %60 = vmatpush1.bf16.msra.mxu0 0
  %61 = vmatprep.subr.bf16.mxu0 0
  %62 = vmatpush1.bf16.msra.mxu0 0
  %63 = vmatprep.subr.bf16.mxu0 0
  %64 = vmatpush1.bf16.msra.mxu0 0
  %65 = vmatprep.subr.bf16.mxu0 0
  %66 = vmatpush1.bf16.msra.mxu0 0
  %67 = vmatprep.subr.bf16.mxu0 0
  %68 = vmatpush1.bf16.msra.mxu0 0
  %69 = vmatprep.subr.bf16.mxu0 0
  %70 = vmatpush1.bf16.msra.mxu0 0
  %71 = vmatprep.subr.bf16.mxu0 0
  %72 = vmatpush1.bf16.msra.mxu0 0
  %73 = vmatprep.mubr.bf16.mxu0 0
  %74 = vmatmul.mubr.bf16.gmra.mrb[0].mxu0 %v36
  %v75 = vpop.f32.mrb[0].mxu0
  %v76 = vadd.f32 %v32, %v75
  %v77 = vpop.f32.mrb[0].mxu0
  %v78 = vpop.f32.mrb[0].mxu0
  %v79 = vadd.f32 %v32, %v78
  %v80 = vpop.f32.mrb[0].mxu0
  %81 = vmatprep.mubr.bf16.mxu0 0
  %82 = vmatmul.mubr.bf16.gmra.mrb[0].mxu0 %v39
  %v83 = vpop.f32.mrb[0].mxu0
  %v84 = vadd.f32 %v32, %v83
  %v85 = vpop.f32.mrb[0].mxu0
  %v86 = vpop.f32.mrb[0].mxu0
  %v87 = vadd.f32 %v32, %v86
  %v88 = vpop.f32.mrb[0].mxu0
  %89 = vdwg.mxu0
  %90 = vst.msk [vmem:[%s3] sm:$0xff] %vm34, %v76
  %91 = vst.msk [vmem:[%s3 + $0x8] sm:$0xff] %vm34, %v79
  %92 = vst.msk [vmem:[%s3 + $0x10] sm:$0xff] %vm34, %v84
  %93 = vst.msk [vmem:[%s3 + $0x18] sm:$0xff] %vm34, %v87
  // Predicated region
  $region14: #{hybrid_forward.27} parent=0 // pred_check
    _
  $region15: #{hybrid_forward.27} parent=0 // pred_check_branch
    %95 = sbr.rel (0) target = $region17
  $region16: #{hybrid_forward.27} parent=0 // pred_region
    _
  $region17: #{hybrid_forward.27} parent=0 // pred_fallthru
    _
  // Predicated region
  $region18: #{hybrid_forward.27} parent=0 // pred_check
    _
  $region19: #{hybrid_forward.27} parent=0 // pred_check_branch
    %97 = sbr.rel (0) target = $region21
  $region20: #{hybrid_forward.27} parent=0 // pred_region
    _
  $region21: #{hybrid_forward.27} parent=0 // pred_fallthru
    _

// kernel: hybrid_forward.28
$region0: #{hybrid_forward.28}
  #allocation0 [shape = 'u32[]', space=smem, size = 0x4, offset = 0x4, fixed_abs, tag = 'smem constant byte address 0x4 - core index']
  #allocation1 [shape = 'u32[144,128]{1,0:T(1,128)}', space=vmem, size = 0x12000, scoped, tag = 'internal scratch']
  %s0 = inlined_call_operand.vmem [shape: f32[32,224], index: 0, kind: input, shape index: {}]
  %s1 = inlined_call_operand.vmem [shape: f32[224,32], index: 1, kind: input, shape index: {}]
  %s2 = inlined_call_operand.vmem [shape: f32[1,32], index: 2, kind: input, shape index: {}]
  %s3 = inlined_call_operand.vmem [shape: f32[32,32], index: 3, kind: output, shape index: {}]
  %s4 = sld [smem:[#allocation0]]
  $region22: #{hybrid_forward.28} parent=0
    _
  %s6 = ssub.s32 1, %s4
  %s7 = scalar_select 0, %s6, %s4
  // Predicated region
  $region2: #{hybrid_forward.28} parent=0 // pred_check
    _
  $region3: #{hybrid_forward.28} parent=0 // pred_check_branch
    %9 = sbr.rel (0) target = $region5
  $region4: #{hybrid_forward.28} parent=0 // pred_region
    _
  $region5: #{hybrid_forward.28} parent=0 // pred_fallthru
    _
  // Predicated region
  $region6: #{hybrid_forward.28} parent=0 // pred_check
    _
  $region7: #{hybrid_forward.28} parent=0 // pred_check_branch
    %11 = sbr.rel (0) target = $region9
  $region8: #{hybrid_forward.28} parent=0 // pred_region
    _
  $region9: #{hybrid_forward.28} parent=0 // pred_fallthru
    _
  // Predicated region
  $region10: #{hybrid_forward.28} parent=0 // pred_check
    _
  $region11: #{hybrid_forward.28} parent=0 // pred_check_branch
    %13 = sbr.rel (0) target = $region13
  $region12: #{hybrid_forward.28} parent=0 // pred_region
    _
  $region13: #{hybrid_forward.28} parent=0 // pred_fallthru
    _
  %v15 = vld [vmem:[%s0] sm:$0xff]
  %v16 = vld [vmem:[%s0 + $0x8] sm:$0xff]
  %v17 = vld [vmem:[%s0 + $0x10] sm:$0xff]
  %v18 = vld [vmem:[%s0 + $0x18] sm:$0xff]
  %v19 = vld [vmem:[%s0 + $0x20] sm:$0xff]
  %v20 = vld [vmem:[%s0 + $0x28] sm:$0xff]
  %v21 = vld [vmem:[%s0 + $0x30] sm:$0xff]
  %v22 = vld [vmem:[%s0 + $0x38] sm:$0xff]
  %v23 = vpack.c.bf16 %v17, %v15
  %v24 = vpack.c.bf16 %v18, %v16
  %v25 = vpack.c.bf16 %v21, %v19
  %v26 = vpack.c.bf16 %v22, %v20
  %v27 = vld [vmem:[%s1] sm:$0xff]
  %v28 = vld [vmem:[%s1 + $0x8] sm:$0xff]
  %v29 = vld [vmem:[%s1 + $0x10] sm:$0xff]
  %v30 = vld [vmem:[%s1 + $0x18] sm:$0xff]
  %v31 = vld [vmem:[%s1 + $0x20] sm:$0xff]
  %v32 = vld [vmem:[%s1 + $0x28] sm:$0xff]
  %v33 = vld [vmem:[%s1 + $0x30] sm:$0xff]
  %v34 = vld [vmem:[%s1 + $0x38] sm:$0xff]
  %v35 = vld [vmem:[%s1 + $0x40] sm:$0xff]
  %v36 = vld [vmem:[%s1 + $0x48] sm:$0xff]
  %v37 = vld [vmem:[%s1 + $0x50] sm:$0xff]
  %v38 = vld [vmem:[%s1 + $0x58] sm:$0xff]
  %v39 = vld [vmem:[%s1 + $0x60] sm:$0xff]
  %v40 = vld [vmem:[%s1 + $0x68] sm:$0xff]
  %v41 = vld [vmem:[%s1 + $0x70] sm:$0xff]
  %v42 = vld [vmem:[%s1 + $0x78] sm:$0xff]
  %v43 = vld [vmem:[%s1 + $0x80] sm:$0xff]
  %v44 = vld [vmem:[%s1 + $0x88] sm:$0xff]
  %v45 = vld [vmem:[%s1 + $0x90] sm:$0xff]
  %v46 = vld [vmem:[%s1 + $0x98] sm:$0xff]
  %v47 = vld [vmem:[%s1 + $0xa0] sm:$0xff]
  %v48 = vld [vmem:[%s1 + $0xa8] sm:$0xff]
  %v49 = vld [vmem:[%s1 + $0xb0] sm:$0xff]
  %v50 = vld [vmem:[%s1 + $0xb8] sm:$0xff]
  %v51 = vld [vmem:[%s1 + $0xc0] sm:$0xff]
  %v52 = vld [vmem:[%s1 + $0xc8] sm:$0xff]
  %v53 = vld [vmem:[%s1 + $0xd0] sm:$0xff]
  %v54 = vld [vmem:[%s1 + $0xd8] sm:$0xff]
  %v55 = vpack.c.bf16 %v28, %v27
  %v56 = vpack.c.bf16 %v30, %v29
  %v57 = vpack.c.bf16 %v32, %v31
  %v58 = vpack.c.bf16 %v34, %v33
  %v59 = vpack.c.bf16 %v36, %v35
  %v60 = vpack.c.bf16 %v38, %v37
  %v61 = vpack.c.bf16 %v40, %v39
  %v62 = vpack.c.bf16 %v42, %v41
  %v63 = vpack.c.bf16 %v44, %v43
  %v64 = vpack.c.bf16 %v46, %v45
  %v65 = vpack.c.bf16 %v48, %v47
  %v66 = vpack.c.bf16 %v50, %v49
  %v67 = vpack.c.bf16 %v52, %v51
  %v68 = vpack.c.bf16 %v54, %v53
  %v69 = vld [vmem:[%s2] sm:$0x1]
  %v71 = vlaneseq
  %v72 = vshrl.u32 %v71, 7
  %v73 = vsub.s32 0, %v72
  %v74 = vrot.slane %v69, %v73
  %vm76 = vcmask 785408
  %v78 = vsel %vm76, %v24, 0
  %v81 = vsel %vm76, %v26, 0
  %83 = vmatprep.subr.bf16.mxu0 0
  %84 = vmatpush1.bf16.msra.mxu0 %v55
  %85 = vmatprep.subr.bf16.mxu0 0
  %86 = vmatpush1.bf16.msra.mxu0 %v56
  %87 = vmatprep.subr.bf16.mxu0 0
  %88 = vmatpush1.bf16.msra.mxu0 %v57
  %89 = vmatprep.subr.bf16.mxu0 0
  %90 = vmatpush1.bf16.msra.mxu0 %v58
  %91 = vmatprep.subr.bf16.mxu0 0
  %92 = vmatpush1.bf16.msra.mxu0 %v59
  %93 = vmatprep.subr.bf16.mxu0 0
  %94 = vmatpush1.bf16.msra.mxu0 %v60
  %95 = vmatprep.subr.bf16.mxu0 0
  %96 = vmatpush1.bf16.msra.mxu0 %v61
  %97 = vmatprep.subr.bf16.mxu0 0
  %98 = vmatpush1.bf16.msra.mxu0 %v62
  %99 = vmatprep.subr.bf16.mxu0 0
  %100 = vmatpush1.bf16.msra.mxu0 %v63
  %101 = vmatprep.subr.bf16.mxu0 0
  %102 = vmatpush1.bf16.msra.mxu0 %v64
  %103 = vmatprep.subr.bf16.mxu0 0
  %104 = vmatpush1.bf16.msra.mxu0 %v65
  %105 = vmatprep.subr.bf16.mxu0 0
  %106 = vmatpush1.bf16.msra.mxu0 %v66
  %107 = vmatprep.subr.bf16.mxu0 0
  %108 = vmatpush1.bf16.msra.mxu0 %v67
  %109 = vmatprep.subr.bf16.mxu0 0
  %110 = vmatpush1.bf16.msra.mxu0 %v68
  %111 = vmatprep.subr.bf16.mxu0 0
  %112 = vmatpush1.bf16.msra.mxu0 0
  %113 = vmatprep.subr.bf16.mxu0 0
  %114 = vmatpush1.bf16.msra.mxu0 0
  %115 = vmatprep.mubr.bf16.mxu0 %v78
  %116 = vmatmul.mubr.bf16.gmra.mrb[0].mxu0 %v23
  %v117 = vpop.f32.mrb[0].mxu0
  %v118 = vadd.f32 %v74, %v117
  %v119 = vpop.f32.mrb[0].mxu0
  %v120 = vpop.f32.mrb[0].mxu0
  %v121 = vadd.f32 %v74, %v120
  %v122 = vpop.f32.mrb[0].mxu0
  %123 = vmatprep.mubr.bf16.mxu0 %v81
  %124 = vmatmul.mubr.bf16.gmra.mrb[0].mxu0 %v25
  %v125 = vpop.f32.mrb[0].mxu0
  %v126 = vadd.f32 %v74, %v125
  %v127 = vpop.f32.mrb[0].mxu0
  %v128 = vpop.f32.mrb[0].mxu0
  %v129 = vadd.f32 %v74, %v128
  %v130 = vpop.f32.mrb[0].mxu0
  %131 = vdwg.mxu0
  %vm132 = vcmask 261120
  %133 = vst.msk [vmem:[%s3] sm:$0xff] %vm132, %v118
  %134 = vst.msk [vmem:[%s3 + $0x8] sm:$0xff] %vm132, %v121
  %135 = vst.msk [vmem:[%s3 + $0x10] sm:$0xff] %vm132, %v126
  %136 = vst.msk [vmem:[%s3 + $0x18] sm:$0xff] %vm132, %v129
  // Predicated region
  $region14: #{hybrid_forward.28} parent=0 // pred_check
    _
  $region15: #{hybrid_forward.28} parent=0 // pred_check_branch
    %138 = sbr.rel (0) target = $region17
  $region16: #{hybrid_forward.28} parent=0 // pred_region
    _
  $region17: #{hybrid_forward.28} parent=0 // pred_fallthru
    _
  // Predicated region
  $region18: #{hybrid_forward.28} parent=0 // pred_check
    _
  $region19: #{hybrid_forward.28} parent=0 // pred_check_branch
    %140 = sbr.rel (0) target = $region21
  $region20: #{hybrid_forward.28} parent=0 // pred_region
    _
  $region21: #{hybrid_forward.28} parent=0 // pred_fallthru
    _

// kernel: hybrid_forward.29
$region0: #{hybrid_forward.29}
  #allocation0 [shape = 'u32[]', space=smem, size = 0x4, offset = 0x4, fixed_abs, tag = 'smem constant byte address 0x4 - core index']
  #allocation1 [shape = 'u32[144,128]{1,0:T(1,128)}', space=vmem, size = 0x12000, scoped, tag = 'internal scratch']
  %s0 = inlined_call_operand.vmem [shape: f32[16,64], index: 0, kind: input, shape index: {}]
  %s1 = inlined_call_operand.vmem [shape: f32[64,64], index: 1, kind: input, shape index: {}]
  %s2 = inlined_call_operand.vmem [shape: f32[1,64], index: 2, kind: input, shape index: {}]
  %s3 = inlined_call_operand.vmem [shape: f32[16,64], index: 3, kind: output, shape index: {}]
  %s4 = sld [smem:[#allocation0]]
  $region22: #{hybrid_forward.29} parent=0
    _
  %s6 = ssub.s32 1, %s4
  %s7 = scalar_select 0, %s6, %s4
  // Predicated region
  $region2: #{hybrid_forward.29} parent=0 // pred_check
    _
  $region3: #{hybrid_forward.29} parent=0 // pred_check_branch
    %9 = sbr.rel (0) target = $region5
  $region4: #{hybrid_forward.29} parent=0 // pred_region
    _
  $region5: #{hybrid_forward.29} parent=0 // pred_fallthru
    _
  // Predicated region
  $region6: #{hybrid_forward.29} parent=0 // pred_check
    _
  $region7: #{hybrid_forward.29} parent=0 // pred_check_branch
    %11 = sbr.rel (0) target = $region9
  $region8: #{hybrid_forward.29} parent=0 // pred_region
    _
  $region9: #{hybrid_forward.29} parent=0 // pred_fallthru
    _
  // Predicated region
  $region10: #{hybrid_forward.29} parent=0 // pred_check
    _
  $region11: #{hybrid_forward.29} parent=0 // pred_check_branch
    %13 = sbr.rel (0) target = $region13
  $region12: #{hybrid_forward.29} parent=0 // pred_region
    _
  $region13: #{hybrid_forward.29} parent=0 // pred_fallthru
    _
  %v15 = vld [vmem:[%s0] sm:$0xff]
  %v16 = vld [vmem:[%s0 + $0x8] sm:$0xff]
  %v17 = vpack.c.bf16 %v16, %v15
  %v18 = vld [vmem:[%s1] sm:$0xff]
  %v19 = vld [vmem:[%s1 + $0x8] sm:$0xff]
  %v20 = vld [vmem:[%s1 + $0x10] sm:$0xff]
  %v21 = vld [vmem:[%s1 + $0x18] sm:$0xff]
  %v22 = vld [vmem:[%s1 + $0x20] sm:$0xff]
  %v23 = vld [vmem:[%s1 + $0x28] sm:$0xff]
  %v24 = vld [vmem:[%s1 + $0x30] sm:$0xff]
  %v25 = vld [vmem:[%s1 + $0x38] sm:$0xff]
  %v26 = vpack.c.bf16 %v19, %v18
  %v27 = vpack.c.bf16 %v21, %v20
  %v28 = vpack.c.bf16 %v23, %v22
  %v29 = vpack.c.bf16 %v25, %v24
  %v30 = vld [vmem:[%s2] sm:$0x1]
  %v32 = vlaneseq
  %v33 = vshrl.u32 %v32, 7
  %v34 = vsub.s32 0, %v33
  %v35 = vrot.slane %v30, %v34
  %vm37 = vcmask 523264
  %v39 = vsel %vm37, %v17, 0
  %41 = vmatprep.subr.bf16.mxu0 0
  %42 = vmatpush1.bf16.msra.mxu0 %v26
  %43 = vmatprep.subr.bf16.mxu0 0
  %44 = vmatpush1.bf16.msra.mxu0 %v27
  %45 = vmatprep.subr.bf16.mxu0 0
  %46 = vmatpush1.bf16.msra.mxu0 %v28
  %47 = vmatprep.subr.bf16.mxu0 0
  %48 = vmatpush1.bf16.msra.mxu0 %v29
  %49 = vmatprep.subr.bf16.mxu0 0
  %50 = vmatpush1.bf16.msra.mxu0 0
  %51 = vmatprep.subr.bf16.mxu0 0
  %52 = vmatpush1.bf16.msra.mxu0 0
  %53 = vmatprep.subr.bf16.mxu0 0
  %54 = vmatpush1.bf16.msra.mxu0 0
  %55 = vmatprep.subr.bf16.mxu0 0
  %56 = vmatpush1.bf16.msra.mxu0 0
  %57 = vmatprep.subr.bf16.mxu0 0
  %58 = vmatpush1.bf16.msra.mxu0 0
  %59 = vmatprep.subr.bf16.mxu0 0
  %60 = vmatpush1.bf16.msra.mxu0 0
  %61 = vmatprep.subr.bf16.mxu0 0
  %62 = vmatpush1.bf16.msra.mxu0 0
  %63 = vmatprep.subr.bf16.mxu0 0
  %64 = vmatpush1.bf16.msra.mxu0 0
  %65 = vmatprep.subr.bf16.mxu0 0
  %66 = vmatpush1.bf16.msra.mxu0 0
  %67 = vmatprep.subr.bf16.mxu0 0
  %68 = vmatpush1.bf16.msra.mxu0 0
  %69 = vmatprep.subr.bf16.mxu0 0
  %70 = vmatpush1.bf16.msra.mxu0 0
  %71 = vmatprep.subr.bf16.mxu0 0
  %72 = vmatpush1.bf16.msra.mxu0 0
  %73 = vmatprep.mubr.bf16.mxu0 0
  %74 = vmatmul.mubr.bf16.gmra.mrb[0].mxu0 %v39
  %v75 = vpop.f32.mrb[0].mxu0
  %v76 = vadd.f32 %v35, %v75
  %v77 = vpop.f32.mrb[0].mxu0
  %v78 = vpop.f32.mrb[0].mxu0
  %v79 = vadd.f32 %v35, %v78
  %v80 = vpop.f32.mrb[0].mxu0
  %81 = vdwg.mxu0
  %82 = vst.msk [vmem:[%s3] sm:$0xff] %vm37, %v76
  %83 = vst.msk [vmem:[%s3 + $0x8] sm:$0xff] %vm37, %v79
  // Predicated region
  $region14: #{hybrid_forward.29} parent=0 // pred_check
    _
  $region15: #{hybrid_forward.29} parent=0 // pred_check_branch
    %85 = sbr.rel (0) target = $region17
  $region16: #{hybrid_forward.29} parent=0 // pred_region
    _
  $region17: #{hybrid_forward.29} parent=0 // pred_fallthru
    _
  // Predicated region
  $region18: #{hybrid_forward.29} parent=0 // pred_check
    _
  $region19: #{hybrid_forward.29} parent=0 // pred_check_branch
    %87 = sbr.rel (0) target = $region21
  $region20: #{hybrid_forward.29} parent=0 // pred_region
    _
  $region21: #{hybrid_forward.29} parent=0 // pred_fallthru
    _

// kernel: hybrid_forward.30
$region0: #{hybrid_forward.30}
  #allocation0 [shape = 'u32[]', space=smem, size = 0x4, offset = 0x4, fixed_abs, tag = 'smem constant byte address 0x4 - core index']
  #allocation1 [shape = 'u32[144,128]{1,0:T(1,128)}', space=vmem, size = 0x12000, scoped, tag = 'internal scratch']
  %s0 = inlined_call_operand.vmem [shape: f32[16,448], index: 0, kind: input, shape index: {}]
  %s1 = inlined_call_operand.vmem [shape: f32[448,64], index: 1, kind: input, shape index: {}]
  %s2 = inlined_call_operand.vmem [shape: f32[1,64], index: 2, kind: input, shape index: {}]
  %s3 = inlined_call_operand.vmem [shape: f32[16,64], index: 3, kind: output, shape index: {}]
  %s4 = sld [smem:[#allocation0]]
  $region22: #{hybrid_forward.30} parent=0
    _
  %s6 = ssub.s32 1, %s4
  %s7 = scalar_select 0, %s6, %s4
  // Predicated region
  $region2: #{hybrid_forward.30} parent=0 // pred_check
    _
  $region3: #{hybrid_forward.30} parent=0 // pred_check_branch
    %9 = sbr.rel (0) target = $region5
  $region4: #{hybrid_forward.30} parent=0 // pred_region
    _
  $region5: #{hybrid_forward.30} parent=0 // pred_fallthru
    _
  // Predicated region
  $region6: #{hybrid_forward.30} parent=0 // pred_check
    _
  $region7: #{hybrid_forward.30} parent=0 // pred_check_branch
    %11 = sbr.rel (0) target = $region9
  $region8: #{hybrid_forward.30} parent=0 // pred_region
    _
  $region9: #{hybrid_forward.30} parent=0 // pred_fallthru
    _
  // Predicated region
  $region10: #{hybrid_forward.30} parent=0 // pred_check
    _
  $region11: #{hybrid_forward.30} parent=0 // pred_check_branch
    %13 = sbr.rel (0) target = $region13
  $region12: #{hybrid_forward.30} parent=0 // pred_region
    _
  $region13: #{hybrid_forward.30} parent=0 // pred_fallthru
    _
  %v15 = vld [vmem:[%s0] sm:$0xff]
  %v16 = vld [vmem:[%s0 + $0x8] sm:$0xff]
  %v17 = vld [vmem:[%s0 + $0x10] sm:$0xff]
  %v18 = vld [vmem:[%s0 + $0x18] sm:$0xff]
  %v19 = vld [vmem:[%s0 + $0x20] sm:$0xff]
  %v20 = vld [vmem:[%s0 + $0x28] sm:$0xff]
  %v21 = vld [vmem:[%s0 + $0x30] sm:$0xff]
  %v22 = vld [vmem:[%s0 + $0x38] sm:$0xff]
  %v23 = vpack.c.bf16 %v19, %v15
  %v24 = vpack.c.bf16 %v20, %v16
  %v25 = vpack.c.bf16 %v21, %v17
  %v26 = vpack.c.bf16 %v22, %v18
  %v27 = vld [vmem:[%s1] sm:$0xff]
  %v28 = vld [vmem:[%s1 + $0x8] sm:$0xff]
  %v29 = vld [vmem:[%s1 + $0x10] sm:$0xff]
  %v30 = vld [vmem:[%s1 + $0x18] sm:$0xff]
  %v31 = vld [vmem:[%s1 + $0x20] sm:$0xff]
  %v32 = vld [vmem:[%s1 + $0x28] sm:$0xff]
  %v33 = vld [vmem:[%s1 + $0x30] sm:$0xff]
  %v34 = vld [vmem:[%s1 + $0x38] sm:$0xff]
  %v35 = vld [vmem:[%s1 + $0x40] sm:$0xff]
  %v36 = vld [vmem:[%s1 + $0x48] sm:$0xff]
  %v37 = vld [vmem:[%s1 + $0x50] sm:$0xff]
  %v38 = vld [vmem:[%s1 + $0x58] sm:$0xff]
  %v39 = vld [vmem:[%s1 + $0x60] sm:$0xff]
  %v40 = vld [vmem:[%s1 + $0x68] sm:$0xff]
  %v41 = vld [vmem:[%s1 + $0x70] sm:$0xff]
  %v42 = vld [vmem:[%s1 + $0x78] sm:$0xff]
  %v43 = vld [vmem:[%s1 + $0x80] sm:$0xff]
  %v44 = vld [vmem:[%s1 + $0x88] sm:$0xff]
  %v45 = vld [vmem:[%s1 + $0x90] sm:$0xff]
  %v46 = vld [vmem:[%s1 + $0x98] sm:$0xff]
  %v47 = vld [vmem:[%s1 + $0xa0] sm:$0xff]
  %v48 = vld [vmem:[%s1 + $0xa8] sm:$0xff]
  %v49 = vld [vmem:[%s1 + $0xb0] sm:$0xff]
  %v50 = vld [vmem:[%s1 + $0xb8] sm:$0xff]
  %v51 = vld [vmem:[%s1 + $0xc0] sm:$0xff]
  %v52 = vld [vmem:[%s1 + $0xc8] sm:$0xff]
  %v53 = vld [vmem:[%s1 + $0xd0] sm:$0xff]
  %v54 = vld [vmem:[%s1 + $0xd8] sm:$0xff]
  %v55 = vld [vmem:[%s1 + $0xe0] sm:$0xff]
  %v56 = vld [vmem:[%s1 + $0xe8] sm:$0xff]
  %v57 = vld [vmem:[%s1 + $0xf0] sm:$0xff]
  %v58 = vld [vmem:[%s1 + $0xf8] sm:$0xff]
  %v59 = vld [vmem:[%s1 + $0x100] sm:$0xff]
  %v60 = vld [vmem:[%s1 + $0x108] sm:$0xff]
  %v61 = vld [vmem:[%s1 + $0x110] sm:$0xff]
  %v62 = vld [vmem:[%s1 + $0x118] sm:$0xff]
  %v63 = vld [vmem:[%s1 + $0x120] sm:$0xff]
  %v64 = vld [vmem:[%s1 + $0x128] sm:$0xff]
  %v65 = vld [vmem:[%s1 + $0x130] sm:$0xff]
  %v66 = vld [vmem:[%s1 + $0x138] sm:$0xff]
  %v67 = vld [vmem:[%s1 + $0x140] sm:$0xff]
  %v68 = vld [vmem:[%s1 + $0x148] sm:$0xff]
  %v69 = vld [vmem:[%s1 + $0x150] sm:$0xff]
  %v70 = vld [vmem:[%s1 + $0x158] sm:$0xff]
  %v71 = vld [vmem:[%s1 + $0x160] sm:$0xff]
  %v72 = vld [vmem:[%s1 + $0x168] sm:$0xff]
  %v73 = vld [vmem:[%s1 + $0x170] sm:$0xff]
  %v74 = vld [vmem:[%s1 + $0x178] sm:$0xff]
  %v75 = vld [vmem:[%s1 + $0x180] sm:$0xff]
  %v76 = vld [vmem:[%s1 + $0x188] sm:$0xff]
  %v77 = vld [vmem:[%s1 + $0x190] sm:$0xff]
  %v78 = vld [vmem:[%s1 + $0x198] sm:$0xff]
  %v79 = vld [vmem:[%s1 + $0x1a0] sm:$0xff]
  %v80 = vld [vmem:[%s1 + $0x1a8] sm:$0xff]
  %v81 = vld [vmem:[%s1 + $0x1b0] sm:$0xff]
  %v82 = vld [vmem:[%s1 + $0x1b8] sm:$0xff]
  %v83 = vpack.c.bf16 %v28, %v27
  %v84 = vpack.c.bf16 %v30, %v29
  %v85 = vpack.c.bf16 %v32, %v31
  %v86 = vpack.c.bf16 %v34, %v33
  %v87 = vpack.c.bf16 %v36, %v35
  %v88 = vpack.c.bf16 %v38, %v37
  %v89 = vpack.c.bf16 %v40, %v39
  %v90 = vpack.c.bf16 %v42, %v41
  %v91 = vpack.c.bf16 %v44, %v43
  %v92 = vpack.c.bf16 %v46, %v45
  %v93 = vpack.c.bf16 %v48, %v47
  %v94 = vpack.c.bf16 %v50, %v49
  %v95 = vpack.c.bf16 %v52, %v51
  %v96 = vpack.c.bf16 %v54, %v53
  %v97 = vpack.c.bf16 %v56, %v55
  %v98 = vpack.c.bf16 %v58, %v57
  %v99 = vpack.c.bf16 %v60, %v59
  %v100 = vpack.c.bf16 %v62, %v61
  %v101 = vpack.c.bf16 %v64, %v63
  %v102 = vpack.c.bf16 %v66, %v65
  %v103 = vpack.c.bf16 %v68, %v67
  %v104 = vpack.c.bf16 %v70, %v69
  %v105 = vpack.c.bf16 %v72, %v71
  %v106 = vpack.c.bf16 %v74, %v73
  %v107 = vpack.c.bf16 %v76, %v75
  %v108 = vpack.c.bf16 %v78, %v77
  %v109 = vpack.c.bf16 %v80, %v79
  %v110 = vpack.c.bf16 %v82, %v81
  %v111 = vld [vmem:[%s2] sm:$0x1]
  %v113 = vlaneseq
  %v114 = vshrl.u32 %v113, 7
  %v115 = vsub.s32 0, %v114
  %v116 = vrot.slane %v111, %v115
  %vm118 = vcmask 523264
  %v120 = vsel %vm118, %v26, 0
  %122 = vmatprep.subr.bf16.mxu0 0
  %123 = vmatpush1.bf16.msra.mxu0 %v83
  %124 = vmatprep.subr.bf16.mxu0 0
  %125 = vmatpush1.bf16.msra.mxu0 %v84
  %126 = vmatprep.subr.bf16.mxu0 0
  %127 = vmatpush1.bf16.msra.mxu0 %v85
  %128 = vmatprep.subr.bf16.mxu0 0
  %129 = vmatpush1.bf16.msra.mxu0 %v86
  %130 = vmatprep.subr.bf16.mxu0 0
  %131 = vmatpush1.bf16.msra.mxu0 %v87
  %132 = vmatprep.subr.bf16.mxu0 0
  %133 = vmatpush1.bf16.msra.mxu0 %v88
  %134 = vmatprep.subr.bf16.mxu0 0
  %135 = vmatpush1.bf16.msra.mxu0 %v89
  %136 = vmatprep.subr.bf16.mxu0 0
  %137 = vmatpush1.bf16.msra.mxu0 %v90
  %138 = vmatprep.subr.bf16.mxu0 0
  %139 = vmatpush1.bf16.msra.mxu0 %v91
  %140 = vmatprep.subr.bf16.mxu0 0
  %141 = vmatpush1.bf16.msra.mxu0 %v92
  %142 = vmatprep.subr.bf16.mxu0 0
  %143 = vmatpush1.bf16.msra.mxu0 %v93
  %144 = vmatprep.subr.bf16.mxu0 0
  %145 = vmatpush1.bf16.msra.mxu0 %v94
  %146 = vmatprep.subr.bf16.mxu0 0
  %147 = vmatpush1.bf16.msra.mxu0 %v95
  %148 = vmatprep.subr.bf16.mxu0 0
  %149 = vmatpush1.bf16.msra.mxu0 %v96
  %150 = vmatprep.subr.bf16.mxu0 0
  %151 = vmatpush1.bf16.msra.mxu0 %v97
  %152 = vmatprep.subr.bf16.mxu0 0
  %153 = vmatpush1.bf16.msra.mxu0 %v98
  %154 = vmatprep.mubr.bf16.mxu0 %v24
  %155 = vmatmul.mubr.bf16.gmra.mrb[0].mxu0 %v23
  %v156 = vpop.f32.mrb[0].mxu0
  %v157 = vadd.f32 %v116, %v156
  %v158 = vpop.f32.mrb[0].mxu0
  %v159 = vpop.f32.mrb[0].mxu0
  %v160 = vadd.f32 %v116, %v159
  %v161 = vpop.f32.mrb[0].mxu0
  %162 = vdwg.mxu0
  %163 = vmatprep.subr.bf16.mxu0 0
  %164 = vmatpush1.bf16.msra.mxu0 %v99
  %165 = vmatprep.subr.bf16.mxu0 0
  %166 = vmatpush1.bf16.msra.mxu0 %v100
  %167 = vmatprep.subr.bf16.mxu0 0
  %168 = vmatpush1.bf16.msra.mxu0 %v101
  %169 = vmatprep.subr.bf16.mxu0 0
  %170 = vmatpush1.bf16.msra.mxu0 %v102
  %171 = vmatprep.subr.bf16.mxu0 0
  %172 = vmatpush1.bf16.msra.mxu0 %v103
  %173 = vmatprep.subr.bf16.mxu0 0
  %174 = vmatpush1.bf16.msra.mxu0 %v104
  %175 = vmatprep.subr.bf16.mxu0 0
  %176 = vmatpush1.bf16.msra.mxu0 %v105
  %177 = vmatprep.subr.bf16.mxu0 0
  %178 = vmatpush1.bf16.msra.mxu0 %v106
  %179 = vmatprep.subr.bf16.mxu0 0
  %180 = vmatpush1.bf16.msra.mxu0 %v107
  %181 = vmatprep.subr.bf16.mxu0 0
  %182 = vmatpush1.bf16.msra.mxu0 %v108
  %183 = vmatprep.subr.bf16.mxu0 0
  %184 = vmatpush1.bf16.msra.mxu0 %v109
  %185 = vmatprep.subr.bf16.mxu0 0
  %186 = vmatpush1.bf16.msra.mxu0 %v110
  %187 = vmatprep.subr.bf16.mxu0 0
  %188 = vmatpush1.bf16.msra.mxu0 0
  %189 = vmatprep.subr.bf16.mxu0 0
  %190 = vmatpush1.bf16.msra.mxu0 0
  %191 = vmatprep.subr.bf16.mxu0 0
  %192 = vmatpush1.bf16.msra.mxu0 0
  %193 = vmatprep.subr.bf16.mxu0 0
  %194 = vmatpush1.bf16.msra.mxu0 0
  %195 = vmatprep.mubr.bf16.mxu0 %v120
  %196 = vmatmul.mubr.bf16.gmra.mrb[0].mxu0 %v25
  %v197 = vpop.f32.mrb[0].mxu0
  %v198 = vadd.f32 %v157, %v197
  %v199 = vpop.f32.mrb[0].mxu0
  %v200 = vpop.f32.mrb[0].mxu0
  %v201 = vadd.f32 %v160, %v200
  %v202 = vpop.f32.mrb[0].mxu0
  %203 = vdwg.mxu0
  %204 = vst.msk [vmem:[%s3] sm:$0xff] %vm118, %v198
  %205 = vst.msk [vmem:[%s3 + $0x8] sm:$0xff] %vm118, %v201
  // Predicated region
  $region14: #{hybrid_forward.30} parent=0 // pred_check
    _
  $region15: #{hybrid_forward.30} parent=0 // pred_check_branch
    %207 = sbr.rel (0) target = $region17
  $region16: #{hybrid_forward.30} parent=0 // pred_region
    _
  $region17: #{hybrid_forward.30} parent=0 // pred_fallthru
    _
  // Predicated region
  $region18: #{hybrid_forward.30} parent=0 // pred_check
    _
  $region19: #{hybrid_forward.30} parent=0 // pred_check_branch
    %209 = sbr.rel (0) target = $region21
  $region20: #{hybrid_forward.30} parent=0 // pred_region
    _
  $region21: #{hybrid_forward.30} parent=0 // pred_fallthru
    _

// kernel: hybrid_forward.35
$region0: #{hybrid_forward.35}
  #allocation0 [shape = 'u32[]', space=smem, size = 0x4, offset = 0x4, fixed_abs, tag = 'smem constant byte address 0x4 - core index']
  #allocation1 [shape = 'u32[144,128]{1,0:T(1,128)}', space=vmem, size = 0x12000, scoped, tag = 'internal scratch']
  %s0 = inlined_call_operand.vmem [shape: f32[64,112], index: 0, kind: input, shape index: {}]
  %s1 = inlined_call_operand.vmem [shape: f32[112,4], index: 1, kind: input, shape index: {}]
  %s2 = inlined_call_operand.vmem [shape: f32[1,4], index: 2, kind: input, shape index: {}]
  %s3 = inlined_call_operand.vmem [shape: f32[64,4], index: 3, kind: output, shape index: {}]
  %s4 = sld [smem:[#allocation0]]
  $region22: #{hybrid_forward.35} parent=0
    _
  %s6 = ssub.s32 1, %s4
  %s7 = scalar_select 0, %s6, %s4
  // Predicated region
  $region2: #{hybrid_forward.35} parent=0 // pred_check
    _
  $region3: #{hybrid_forward.35} parent=0 // pred_check_branch
    %9 = sbr.rel (0) target = $region5
  $region4: #{hybrid_forward.35} parent=0 // pred_region
    _
  $region5: #{hybrid_forward.35} parent=0 // pred_fallthru
    _
  // Predicated region
  $region6: #{hybrid_forward.35} parent=0 // pred_check
    _
  $region7: #{hybrid_forward.35} parent=0 // pred_check_branch
    %11 = sbr.rel (0) target = $region9
  $region8: #{hybrid_forward.35} parent=0 // pred_region
    _
  $region9: #{hybrid_forward.35} parent=0 // pred_fallthru
    _
  // Predicated region
  $region10: #{hybrid_forward.35} parent=0 // pred_check
    _
  $region11: #{hybrid_forward.35} parent=0 // pred_check_branch
    %13 = sbr.rel (0) target = $region13
  $region12: #{hybrid_forward.35} parent=0 // pred_region
    _
  $region13: #{hybrid_forward.35} parent=0 // pred_fallthru
    _
  %v15 = vld [vmem:[%s0] sm:$0xff]
  %v16 = vld [vmem:[%s0 + $0x8] sm:$0xff]
  %v17 = vld [vmem:[%s0 + $0x10] sm:$0xff]
  %v18 = vld [vmem:[%s0 + $0x18] sm:$0xff]
  %v19 = vld [vmem:[%s0 + $0x20] sm:$0xff]
  %v20 = vld [vmem:[%s0 + $0x28] sm:$0xff]
  %v21 = vld [vmem:[%s0 + $0x30] sm:$0xff]
  %v22 = vld [vmem:[%s0 + $0x38] sm:$0xff]
  %v23 = vpack.c.bf16 %v16, %v15
  %v24 = vpack.c.bf16 %v18, %v17
  %v25 = vpack.c.bf16 %v20, %v19
  %v26 = vpack.c.bf16 %v22, %v21
  %v27 = vld [vmem:[%s1] sm:$0xff]
  %v28 = vld [vmem:[%s1 + $0x8] sm:$0xff]
  %v29 = vld [vmem:[%s1 + $0x10] sm:$0xff]
  %v30 = vld [vmem:[%s1 + $0x18] sm:$0xff]
  %v31 = vld [vmem:[%s1 + $0x20] sm:$0xff]
  %v32 = vld [vmem:[%s1 + $0x28] sm:$0xff]
  %v33 = vld [vmem:[%s1 + $0x30] sm:$0xff]
  %v34 = vld [vmem:[%s1 + $0x38] sm:$0xff]
  %v35 = vld [vmem:[%s1 + $0x40] sm:$0xff]
  %v36 = vld [vmem:[%s1 + $0x48] sm:$0xff]
  %v37 = vld [vmem:[%s1 + $0x50] sm:$0xff]
  %v38 = vld [vmem:[%s1 + $0x58] sm:$0xff]
  %v39 = vld [vmem:[%s1 + $0x60] sm:$0xff]
  %v40 = vld [vmem:[%s1 + $0x68] sm:$0xff]
  %v41 = vpack.c.bf16 %v28, %v27
  %v42 = vpack.c.bf16 %v30, %v29
  %v43 = vpack.c.bf16 %v32, %v31
  %v44 = vpack.c.bf16 %v34, %v33
  %v45 = vpack.c.bf16 %v36, %v35
  %v46 = vpack.c.bf16 %v38, %v37
  %v47 = vpack.c.bf16 %v40, %v39
  %v48 = vld [vmem:[%s2] sm:$0x1]
  %v50 = vlaneseq
  %v51 = vshrl.u32 %v50, 7
  %v52 = vsub.s32 0, %v51
  %v53 = vrot.slane %v48, %v52
  %vm55 = vcmask 916480
  %v57 = vsel %vm55, %v23, 0
  %v60 = vsel %vm55, %v24, 0
  %v63 = vsel %vm55, %v25, 0
  %v66 = vsel %vm55, %v26, 0
  %68 = vmatprep.subr.bf16.mxu0 0
  %69 = vmatpush1.bf16.msra.mxu0 %v41
  %70 = vmatprep.subr.bf16.mxu0 0
  %71 = vmatpush1.bf16.msra.mxu0 %v42
  %72 = vmatprep.subr.bf16.mxu0 0
  %73 = vmatpush1.bf16.msra.mxu0 %v43
  %74 = vmatprep.subr.bf16.mxu0 0
  %75 = vmatpush1.bf16.msra.mxu0 %v44
  %76 = vmatprep.subr.bf16.mxu0 0
  %77 = vmatpush1.bf16.msra.mxu0 %v45
  %78 = vmatprep.subr.bf16.mxu0 0
  %79 = vmatpush1.bf16.msra.mxu0 %v46
  %80 = vmatprep.subr.bf16.mxu0 0
  %81 = vmatpush1.bf16.msra.mxu0 %v47
  %82 = vmatprep.subr.bf16.mxu0 0
  %83 = vmatpush1.bf16.msra.mxu0 0
  %84 = vmatprep.subr.bf16.mxu0 0
  %85 = vmatpush1.bf16.msra.mxu0 0
  %86 = vmatprep.subr.bf16.mxu0 0
  %87 = vmatpush1.bf16.msra.mxu0 0
  %88 = vmatprep.subr.bf16.mxu0 0
  %89 = vmatpush1.bf16.msra.mxu0 0
  %90 = vmatprep.subr.bf16.mxu0 0
  %91 = vmatpush1.bf16.msra.mxu0 0
  %92 = vmatprep.subr.bf16.mxu0 0
  %93 = vmatpush1.bf16.msra.mxu0 0
  %94 = vmatprep.subr.bf16.mxu0 0
  %95 = vmatpush1.bf16.msra.mxu0 0
  %96 = vmatprep.subr.bf16.mxu0 0
  %97 = vmatpush1.bf16.msra.mxu0 0
  %98 = vmatprep.subr.bf16.mxu0 0
  %99 = vmatpush1.bf16.msra.mxu0 0
  %100 = vmatprep.mubr.bf16.mxu0 0
  %101 = vmatmul.mubr.bf16.gmra.mrb[0].mxu0 %v57
  %v102 = vpop.f32.mrb[0].mxu0
  %v103 = vadd.f32 %v53, %v102
  %v104 = vpop.f32.mrb[0].mxu0
  %v105 = vpop.f32.mrb[0].mxu0
  %v106 = vadd.f32 %v53, %v105
  %v107 = vpop.f32.mrb[0].mxu0
  %108 = vmatprep.mubr.bf16.mxu0 0
  %109 = vmatmul.mubr.bf16.gmra.mrb[0].mxu0 %v60
  %v110 = vpop.f32.mrb[0].mxu0
  %v111 = vadd.f32 %v53, %v110
  %v112 = vpop.f32.mrb[0].mxu0
  %v113 = vpop.f32.mrb[0].mxu0
  %v114 = vadd.f32 %v53, %v113
  %v115 = vpop.f32.mrb[0].mxu0
  %116 = vmatprep.mubr.bf16.mxu0 0
  %117 = vmatmul.mubr.bf16.gmra.mrb[0].mxu0 %v63
  %v118 = vpop.f32.mrb[0].mxu0
  %v119 = vadd.f32 %v53, %v118
  %v120 = vpop.f32.mrb[0].mxu0
  %v121 = vpop.f32.mrb[0].mxu0
  %v122 = vadd.f32 %v53, %v121
  %v123 = vpop.f32.mrb[0].mxu0
  %124 = vmatprep.mubr.bf16.mxu0 0
  %125 = vmatmul.mubr.bf16.gmra.mrb[0].mxu0 %v66
  %v126 = vpop.f32.mrb[0].mxu0
  %v127 = vadd.f32 %v53, %v126
  %v128 = vpop.f32.mrb[0].mxu0
  %v129 = vpop.f32.mrb[0].mxu0
  %v130 = vadd.f32 %v53, %v129
  %v131 = vpop.f32.mrb[0].mxu0
  %132 = vdwg.mxu0
  %vm133 = vcmask 31744
  %134 = vst.msk [vmem:[%s3] sm:$0xff] %vm133, %v103
  %135 = vst.msk [vmem:[%s3 + $0x8] sm:$0xff] %vm133, %v106
  %136 = vst.msk [vmem:[%s3 + $0x10] sm:$0xff] %vm133, %v111
  %137 = vst.msk [vmem:[%s3 + $0x18] sm:$0xff] %vm133, %v114
  %138 = vst.msk [vmem:[%s3 + $0x20] sm:$0xff] %vm133, %v119
  %139 = vst.msk [vmem:[%s3 + $0x28] sm:$0xff] %vm133, %v122
  %140 = vst.msk [vmem:[%s3 + $0x30] sm:$0xff] %vm133, %v127
  %141 = vst.msk [vmem:[%s3 + $0x38] sm:$0xff] %vm133, %v130
  // Predicated region
  $region14: #{hybrid_forward.35} parent=0 // pred_check
    _
  $region15: #{hybrid_forward.35} parent=0 // pred_check_branch
    %143 = sbr.rel (0) target = $region17
  $region16: #{hybrid_forward.35} parent=0 // pred_region
    _
  $region17: #{hybrid_forward.35} parent=0 // pred_fallthru
    _
  // Predicated region
  $region18: #{hybrid_forward.35} parent=0 // pred_check
    _
  $region19: #{hybrid_forward.35} parent=0 // pred_check_branch
    %145 = sbr.rel (0) target = $region21
  $region20: #{hybrid_forward.35} parent=0 // pred_region
    _
  $region21: #{hybrid_forward.35} parent=0 // pred_fallthru
    _

// kernel: hybrid_forward.36
$region0: #{hybrid_forward.36}
  #allocation0 [shape = 'u32[]', space=smem, size = 0x4, offset = 0x4, fixed_abs, tag = 'smem constant byte address 0x4 - core index']
  #allocation1 [shape = 'u32[144,128]{1,0:T(1,128)}', space=vmem, size = 0x12000, scoped, tag = 'internal scratch']
  %s0 = inlined_call_operand.vmem [shape: f32[64,4], index: 0, kind: input, shape index: {}]
  %s1 = inlined_call_operand.vmem [shape: f32[4,32], index: 1, kind: input, shape index: {}]
  %s2 = inlined_call_operand.vmem [shape: f32[1,32], index: 2, kind: input, shape index: {}]
  %s3 = inlined_call_operand.vmem [shape: f32[64,32], index: 3, kind: output, shape index: {}]
  %s4 = sld [smem:[#allocation0]]
  $region22: #{hybrid_forward.36} parent=0
    _
  %s6 = ssub.s32 1, %s4
  %s7 = scalar_select 0, %s6, %s4
  // Predicated region
  $region2: #{hybrid_forward.36} parent=0 // pred_check
    _
  $region3: #{hybrid_forward.36} parent=0 // pred_check_branch
    %9 = sbr.rel (0) target = $region5
  $region4: #{hybrid_forward.36} parent=0 // pred_region
    _
  $region5: #{hybrid_forward.36} parent=0 // pred_fallthru
    _
  // Predicated region
  $region6: #{hybrid_forward.36} parent=0 // pred_check
    _
  $region7: #{hybrid_forward.36} parent=0 // pred_check_branch
    %11 = sbr.rel (0) target = $region9
  $region8: #{hybrid_forward.36} parent=0 // pred_region
    _
  $region9: #{hybrid_forward.36} parent=0 // pred_fallthru
    _
  // Predicated region
  $region10: #{hybrid_forward.36} parent=0 // pred_check
    _
  $region11: #{hybrid_forward.36} parent=0 // pred_check_branch
    %13 = sbr.rel (0) target = $region13
  $region12: #{hybrid_forward.36} parent=0 // pred_region
    _
  $region13: #{hybrid_forward.36} parent=0 // pred_fallthru
    _
  %v15 = vld [vmem:[%s0] sm:$0xff]
  %v16 = vld [vmem:[%s0 + $0x8] sm:$0xff]
  %v17 = vld [vmem:[%s0 + $0x10] sm:$0xff]
  %v18 = vld [vmem:[%s0 + $0x18] sm:$0xff]
  %v19 = vld [vmem:[%s0 + $0x20] sm:$0xff]
  %v20 = vld [vmem:[%s0 + $0x28] sm:$0xff]
  %v21 = vld [vmem:[%s0 + $0x30] sm:$0xff]
  %v22 = vld [vmem:[%s0 + $0x38] sm:$0xff]
  %v23 = vpack.c.bf16 %v16, %v15
  %v24 = vpack.c.bf16 %v18, %v17
  %v25 = vpack.c.bf16 %v20, %v19
  %v26 = vpack.c.bf16 %v22, %v21
  %v27 = vld [vmem:[%s1] sm:$0xf]
  %v28 = vpack.c.bf16 %v27, %v27
  %v29 = vld [vmem:[%s2] sm:$0x1]
  %v31 = vlaneseq
  %v32 = vshrl.u32 %v31, 7
  %v33 = vsub.s32 0, %v32
  %v34 = vrot.slane %v29, %v33
  %vm36 = vcmask 31744
  %v38 = vsel %vm36, %v23, 0
  %v41 = vsel %vm36, %v24, 0
  %v44 = vsel %vm36, %v25, 0
  %v47 = vsel %vm36, %v26, 0
  %vm49 = vcmask 1041408
  %v51 = vsel %vm49, %v28, 0
  %53 = vmatprep.subr.bf16.mxu0 0
  %54 = vmatpush1.bf16.msra.mxu0 %v51
  %55 = vmatprep.subr.bf16.mxu0 0
  %56 = vmatpush1.bf16.msra.mxu0 0
  %57 = vmatprep.subr.bf16.mxu0 0
  %58 = vmatpush1.bf16.msra.mxu0 0
  %59 = vmatprep.subr.bf16.mxu0 0
  %60 = vmatpush1.bf16.msra.mxu0 0
  %61 = vmatprep.subr.bf16.mxu0 0
  %62 = vmatpush1.bf16.msra.mxu0 0
  %63 = vmatprep.subr.bf16.mxu0 0
  %64 = vmatpush1.bf16.msra.mxu0 0
  %65 = vmatprep.subr.bf16.mxu0 0
  %66 = vmatpush1.bf16.msra.mxu0 0
  %67 = vmatprep.subr.bf16.mxu0 0
  %68 = vmatpush1.bf16.msra.mxu0 0
  %69 = vmatprep.subr.bf16.mxu0 0
  %70 = vmatpush1.bf16.msra.mxu0 0
  %71 = vmatprep.subr.bf16.mxu0 0
  %72 = vmatpush1.bf16.msra.mxu0 0
  %73 = vmatprep.subr.bf16.mxu0 0
  %74 = vmatpush1.bf16.msra.mxu0 0
  %75 = vmatprep.subr.bf16.mxu0 0
  %76 = vmatpush1.bf16.msra.mxu0 0
  %77 = vmatprep.subr.bf16.mxu0 0
  %78 = vmatpush1.bf16.msra.mxu0 0
  %79 = vmatprep.subr.bf16.mxu0 0
  %80 = vmatpush1.bf16.msra.mxu0 0
  %81 = vmatprep.subr.bf16.mxu0 0
  %82 = vmatpush1.bf16.msra.mxu0 0
  %83 = vmatprep.subr.bf16.mxu0 0
  %84 = vmatpush1.bf16.msra.mxu0 0
  %85 = vmatprep.mubr.bf16.mxu0 0
  %86 = vmatmul.mubr.bf16.gmra.mrb[0].mxu0 %v38
  %v87 = vpop.f32.mrb[0].mxu0
  %v88 = vadd.f32 %v34, %v87
  %v89 = vpop.f32.mrb[0].mxu0
  %v90 = vpop.f32.mrb[0].mxu0
  %v91 = vadd.f32 %v34, %v90
  %v92 = vpop.f32.mrb[0].mxu0
  %93 = vmatprep.mubr.bf16.mxu0 0
  %94 = vmatmul.mubr.bf16.gmra.mrb[0].mxu0 %v41
  %v95 = vpop.f32.mrb[0].mxu0
  %v96 = vadd.f32 %v34, %v95
  %v97 = vpop.f32.mrb[0].mxu0
  %v98 = vpop.f32.mrb[0].mxu0
  %v99 = vadd.f32 %v34, %v98
  %v100 = vpop.f32.mrb[0].mxu0
  %101 = vmatprep.mubr.bf16.mxu0 0
  %102 = vmatmul.mubr.bf16.gmra.mrb[0].mxu0 %v44
  %v103 = vpop.f32.mrb[0].mxu0
  %v104 = vadd.f32 %v34, %v103
  %v105 = vpop.f32.mrb[0].mxu0
  %v106 = vpop.f32.mrb[0].mxu0
  %v107 = vadd.f32 %v34, %v106
  %v108 = vpop.f32.mrb[0].mxu0
  %109 = vmatprep.mubr.bf16.mxu0 0
  %110 = vmatmul.mubr.bf16.gmra.mrb[0].mxu0 %v47
  %v111 = vpop.f32.mrb[0].mxu0
  %v112 = vadd.f32 %v34, %v111
  %v113 = vpop.f32.mrb[0].mxu0
  %v114 = vpop.f32.mrb[0].mxu0
  %v115 = vadd.f32 %v34, %v114
  %v116 = vpop.f32.mrb[0].mxu0
  %117 = vdwg.mxu0
  %vm118 = vcmask 261120
  %119 = vst.msk [vmem:[%s3] sm:$0xff] %vm118, %v88
  %120 = vst.msk [vmem:[%s3 + $0x8] sm:$0xff] %vm118, %v91
  %121 = vst.msk [vmem:[%s3 + $0x10] sm:$0xff] %vm118, %v96
  %122 = vst.msk [vmem:[%s3 + $0x18] sm:$0xff] %vm118, %v99
  %123 = vst.msk [vmem:[%s3 + $0x20] sm:$0xff] %vm118, %v104
  %124 = vst.msk [vmem:[%s3 + $0x28] sm:$0xff] %vm118, %v107
  %125 = vst.msk [vmem:[%s3 + $0x30] sm:$0xff] %vm118, %v112
  %126 = vst.msk [vmem:[%s3 + $0x38] sm:$0xff] %vm118, %v115
  // Predicated region
  $region14: #{hybrid_forward.36} parent=0 // pred_check
    _
  $region15: #{hybrid_forward.36} parent=0 // pred_check_branch
    %128 = sbr.rel (0) target = $region17
  $region16: #{hybrid_forward.36} parent=0 // pred_region
    _
  $region17: #{hybrid_forward.36} parent=0 // pred_fallthru
    _
  // Predicated region
  $region18: #{hybrid_forward.36} parent=0 // pred_check
    _
  $region19: #{hybrid_forward.36} parent=0 // pred_check_branch
    %130 = sbr.rel (0) target = $region21
  $region20: #{hybrid_forward.36} parent=0 // pred_region
    _
  $region21: #{hybrid_forward.36} parent=0 // pred_fallthru
    _

// kernel: hybrid_forward.37
$region0: #{hybrid_forward.37}
  #allocation0 [shape = 'u32[]', space=smem, size = 0x4, offset = 0x4, fixed_abs, tag = 'smem constant byte address 0x4 - core index']
  #allocation1 [shape = 'u32[144,128]{1,0:T(1,128)}', space=vmem, size = 0x12000, scoped, tag = 'internal scratch']
  %s0 = inlined_call_operand.vmem [shape: f32[64,32], index: 0, kind: input, shape index: {}]
  %s1 = inlined_call_operand.vmem [shape: f32[32,96], index: 1, kind: input, shape index: {}]
  %s2 = inlined_call_operand.vmem [shape: f32[1,96], index: 2, kind: input, shape index: {}]
  %s3 = inlined_call_operand.vmem [shape: f32[64,96], index: 3, kind: output, shape index: {}]
  %s4 = sld [smem:[#allocation0]]
  $region22: #{hybrid_forward.37} parent=0
    _
  %s6 = ssub.s32 1, %s4
  %s7 = scalar_select 0, %s6, %s4
  // Predicated region
  $region2: #{hybrid_forward.37} parent=0 // pred_check
    _
  $region3: #{hybrid_forward.37} parent=0 // pred_check_branch
    %9 = sbr.rel (0) target = $region5
  $region4: #{hybrid_forward.37} parent=0 // pred_region
    _
  $region5: #{hybrid_forward.37} parent=0 // pred_fallthru
    _
  // Predicated region
  $region6: #{hybrid_forward.37} parent=0 // pred_check
    _
  $region7: #{hybrid_forward.37} parent=0 // pred_check_branch
    %11 = sbr.rel (0) target = $region9
  $region8: #{hybrid_forward.37} parent=0 // pred_region
    _
  $region9: #{hybrid_forward.37} parent=0 // pred_fallthru
    _
  // Predicated region
  $region10: #{hybrid_forward.37} parent=0 // pred_check
    _
  $region11: #{hybrid_forward.37} parent=0 // pred_check_branch
    %13 = sbr.rel (0) target = $region13
  $region12: #{hybrid_forward.37} parent=0 // pred_region
    _
  $region13: #{hybrid_forward.37} parent=0 // pred_fallthru
    _
  %v15 = vld [vmem:[%s0] sm:$0xff]
  %v16 = vld [vmem:[%s0 + $0x8] sm:$0xff]
  %v17 = vld [vmem:[%s0 + $0x10] sm:$0xff]
  %v18 = vld [vmem:[%s0 + $0x18] sm:$0xff]
  %v19 = vld [vmem:[%s0 + $0x20] sm:$0xff]
  %v20 = vld [vmem:[%s0 + $0x28] sm:$0xff]
  %v21 = vld [vmem:[%s0 + $0x30] sm:$0xff]
  %v22 = vld [vmem:[%s0 + $0x38] sm:$0xff]
  %v23 = vpack.c.bf16 %v16, %v15
  %v24 = vpack.c.bf16 %v18, %v17
  %v25 = vpack.c.bf16 %v20, %v19
  %v26 = vpack.c.bf16 %v22, %v21
  %v27 = vld [vmem:[%s1] sm:$0xff]
  %v28 = vld [vmem:[%s1 + $0x8] sm:$0xff]
  %v29 = vld [vmem:[%s1 + $0x10] sm:$0xff]
  %v30 = vld [vmem:[%s1 + $0x18] sm:$0xff]
  %v31 = vpack.c.bf16 %v28, %v27
  %v32 = vpack.c.bf16 %v30, %v29
  %v33 = vld [vmem:[%s2] sm:$0x1]
  %v35 = vlaneseq
  %v36 = vshrl.u32 %v35, 7
  %v37 = vsub.s32 0, %v36
  %v38 = vrot.slane %v33, %v37
  %vm40 = vcmask 261120
  %v42 = vsel %vm40, %v23, 0
  %v45 = vsel %vm40, %v24, 0
  %v48 = vsel %vm40, %v25, 0
  %v51 = vsel %vm40, %v26, 0
  %53 = vmatprep.subr.bf16.mxu0 0
  %54 = vmatpush1.bf16.msra.mxu0 %v31
  %55 = vmatprep.subr.bf16.mxu0 0
  %56 = vmatpush1.bf16.msra.mxu0 %v32
  %57 = vmatprep.subr.bf16.mxu0 0
  %58 = vmatpush1.bf16.msra.mxu0 0
  %59 = vmatprep.subr.bf16.mxu0 0
  %60 = vmatpush1.bf16.msra.mxu0 0
  %61 = vmatprep.subr.bf16.mxu0 0
  %62 = vmatpush1.bf16.msra.mxu0 0
  %63 = vmatprep.subr.bf16.mxu0 0
  %64 = vmatpush1.bf16.msra.mxu0 0
  %65 = vmatprep.subr.bf16.mxu0 0
  %66 = vmatpush1.bf16.msra.mxu0 0
  %67 = vmatprep.subr.bf16.mxu0 0
  %68 = vmatpush1.bf16.msra.mxu0 0
  %69 = vmatprep.subr.bf16.mxu0 0
  %70 = vmatpush1.bf16.msra.mxu0 0
  %71 = vmatprep.subr.bf16.mxu0 0
  %72 = vmatpush1.bf16.msra.mxu0 0
  %73 = vmatprep.subr.bf16.mxu0 0
  %74 = vmatpush1.bf16.msra.mxu0 0
  %75 = vmatprep.subr.bf16.mxu0 0
  %76 = vmatpush1.bf16.msra.mxu0 0
  %77 = vmatprep.subr.bf16.mxu0 0
  %78 = vmatpush1.bf16.msra.mxu0 0
  %79 = vmatprep.subr.bf16.mxu0 0
  %80 = vmatpush1.bf16.msra.mxu0 0
  %81 = vmatprep.subr.bf16.mxu0 0
  %82 = vmatpush1.bf16.msra.mxu0 0
  %83 = vmatprep.subr.bf16.mxu0 0
  %84 = vmatpush1.bf16.msra.mxu0 0
  %85 = vmatprep.mubr.bf16.mxu0 0
  %86 = vmatmul.mubr.bf16.gmra.mrb[0].mxu0 %v42
  %v87 = vpop.f32.mrb[0].mxu0
  %v88 = vadd.f32 %v38, %v87
  %v89 = vpop.f32.mrb[0].mxu0
  %v90 = vpop.f32.mrb[0].mxu0
  %v91 = vadd.f32 %v38, %v90
  %v92 = vpop.f32.mrb[0].mxu0
  %93 = vmatprep.mubr.bf16.mxu0 0
  %94 = vmatmul.mubr.bf16.gmra.mrb[0].mxu0 %v45
  %v95 = vpop.f32.mrb[0].mxu0
  %v96 = vadd.f32 %v38, %v95
  %v97 = vpop.f32.mrb[0].mxu0
  %v98 = vpop.f32.mrb[0].mxu0
  %v99 = vadd.f32 %v38, %v98
  %v100 = vpop.f32.mrb[0].mxu0
  %101 = vmatprep.mubr.bf16.mxu0 0
  %102 = vmatmul.mubr.bf16.gmra.mrb[0].mxu0 %v48
  %v103 = vpop.f32.mrb[0].mxu0
  %v104 = vadd.f32 %v38, %v103
  %v105 = vpop.f32.mrb[0].mxu0
  %v106 = vpop.f32.mrb[0].mxu0
  %v107 = vadd.f32 %v38, %v106
  %v108 = vpop.f32.mrb[0].mxu0
  %109 = vmatprep.mubr.bf16.mxu0 0
  %110 = vmatmul.mubr.bf16.gmra.mrb[0].mxu0 %v51
  %v111 = vpop.f32.mrb[0].mxu0
  %v112 = vadd.f32 %v38, %v111
  %v113 = vpop.f32.mrb[0].mxu0
  %v114 = vpop.f32.mrb[0].mxu0
  %v115 = vadd.f32 %v38, %v114
  %v116 = vpop.f32.mrb[0].mxu0
  %117 = vdwg.mxu0
  %vm118 = vcmask 785408
  %119 = vst.msk [vmem:[%s3] sm:$0xff] %vm118, %v88
  %120 = vst.msk [vmem:[%s3 + $0x8] sm:$0xff] %vm118, %v91
  %121 = vst.msk [vmem:[%s3 + $0x10] sm:$0xff] %vm118, %v96
  %122 = vst.msk [vmem:[%s3 + $0x18] sm:$0xff] %vm118, %v99
  %123 = vst.msk [vmem:[%s3 + $0x20] sm:$0xff] %vm118, %v104
  %124 = vst.msk [vmem:[%s3 + $0x28] sm:$0xff] %vm118, %v107
  %125 = vst.msk [vmem:[%s3 + $0x30] sm:$0xff] %vm118, %v112
  %126 = vst.msk [vmem:[%s3 + $0x38] sm:$0xff] %vm118, %v115
  // Predicated region
  $region14: #{hybrid_forward.37} parent=0 // pred_check
    _
  $region15: #{hybrid_forward.37} parent=0 // pred_check_branch
    %128 = sbr.rel (0) target = $region17
  $region16: #{hybrid_forward.37} parent=0 // pred_region
    _
  $region17: #{hybrid_forward.37} parent=0 // pred_fallthru
    _
  // Predicated region
  $region18: #{hybrid_forward.37} parent=0 // pred_check
    _
  $region19: #{hybrid_forward.37} parent=0 // pred_check_branch
    %130 = sbr.rel (0) target = $region21
  $region20: #{hybrid_forward.37} parent=0 // pred_region
    _
  $region21: #{hybrid_forward.37} parent=0 // pred_fallthru
    _

// kernel: hybrid_forward.40
$region0: #{hybrid_forward.40}
  #allocation0 [shape = 'u32[]', space=smem, size = 0x4, offset = 0x4, fixed_abs, tag = 'smem constant byte address 0x4 - core index']
  #allocation1 [shape = 'u32[144,128]{1,0:T(1,128)}', space=vmem, size = 0x12000, scoped, tag = 'internal scratch']
  %s0 = inlined_call_operand.vmem [shape: f32[64,32], index: 0, kind: input, shape index: {}]
  %s1 = inlined_call_operand.vmem [shape: f32[32,512], index: 1, kind: input, shape index: {}]
  %s2 = inlined_call_operand.vmem [shape: f32[1,512], index: 2, kind: input, shape index: {}]
  %s3 = inlined_call_operand.vmem [shape: f32[64,512], index: 3, kind: output, shape index: {}]
  %s4 = sld [smem:[#allocation0]]
  $region22: #{hybrid_forward.40} parent=0
    _
  %s6 = ssub.s32 1, %s4
  %s7 = scalar_select 0, %s6, %s4
  // Predicated region
  $region2: #{hybrid_forward.40} parent=0 // pred_check
    _
  $region3: #{hybrid_forward.40} parent=0 // pred_check_branch
    %9 = sbr.rel (0) target = $region5
  $region4: #{hybrid_forward.40} parent=0 // pred_region
    _
  $region5: #{hybrid_forward.40} parent=0 // pred_fallthru
    _
  // Predicated region
  $region6: #{hybrid_forward.40} parent=0 // pred_check
    _
  $region7: #{hybrid_forward.40} parent=0 // pred_check_branch
    %11 = sbr.rel (0) target = $region9
  $region8: #{hybrid_forward.40} parent=0 // pred_region
    _
  $region9: #{hybrid_forward.40} parent=0 // pred_fallthru
    _
  // Predicated region
  $region10: #{hybrid_forward.40} parent=0 // pred_check
    _
  $region11: #{hybrid_forward.40} parent=0 // pred_check_branch
    %13 = sbr.rel (0) target = $region13
  $region12: #{hybrid_forward.40} parent=0 // pred_region
    _
  $region13: #{hybrid_forward.40} parent=0 // pred_fallthru
    _
  %v15 = vld [vmem:[%s0] sm:$0xff]
  %v16 = vld [vmem:[%s0 + $0x8] sm:$0xff]
  %v17 = vld [vmem:[%s0 + $0x10] sm:$0xff]
  %v18 = vld [vmem:[%s0 + $0x18] sm:$0xff]
  %v19 = vld [vmem:[%s0 + $0x20] sm:$0xff]
  %v20 = vld [vmem:[%s0 + $0x28] sm:$0xff]
  %v21 = vld [vmem:[%s0 + $0x30] sm:$0xff]
  %v22 = vld [vmem:[%s0 + $0x38] sm:$0xff]
  %v23 = vpack.c.bf16 %v16, %v15
  %v24 = vpack.c.bf16 %v18, %v17
  %v25 = vpack.c.bf16 %v20, %v19
  %v26 = vpack.c.bf16 %v22, %v21
  %v27 = vld [vmem:[%s1] sm:$0xff]
  %v28 = vld [vmem:[%s1 + $0x8] sm:$0xff]
  %v29 = vld [vmem:[%s1 + $0x10] sm:$0xff]
  %v30 = vld [vmem:[%s1 + $0x18] sm:$0xff]
  %v31 = vld [vmem:[%s1 + $0x20] sm:$0xff]
  %v32 = vld [vmem:[%s1 + $0x28] sm:$0xff]
  %v33 = vld [vmem:[%s1 + $0x30] sm:$0xff]
  %v34 = vld [vmem:[%s1 + $0x38] sm:$0xff]
  %v35 = vld [vmem:[%s1 + $0x40] sm:$0xff]
  %v36 = vld [vmem:[%s1 + $0x48] sm:$0xff]
  %v37 = vld [vmem:[%s1 + $0x50] sm:$0xff]
  %v38 = vld [vmem:[%s1 + $0x58] sm:$0xff]
  %v39 = vld [vmem:[%s1 + $0x60] sm:$0xff]
  %v40 = vld [vmem:[%s1 + $0x68] sm:$0xff]
  %v41 = vld [vmem:[%s1 + $0x70] sm:$0xff]
  %v42 = vld [vmem:[%s1 + $0x78] sm:$0xff]
  %v43 = vpack.c.bf16 %v31, %v27
  %v44 = vpack.c.bf16 %v32, %v28
  %v45 = vpack.c.bf16 %v33, %v29
  %v46 = vpack.c.bf16 %v34, %v30
  %v47 = vpack.c.bf16 %v39, %v35
  %v48 = vpack.c.bf16 %v40, %v36
  %v49 = vpack.c.bf16 %v41, %v37
  %v50 = vpack.c.bf16 %v42, %v38
  %v51 = vld [vmem:[%s2] sm:$0xf]
  %v53 = vlaneseq
  %v54 = vshrl.u32 %v53, 7
  %v55 = vsub.s32 0, %v54
  %v56 = vrot.slane %v51, %v55
  %v57 = vlaneseq
  %v58 = vshrl.u32 %v57, 7
  %v59 = vsub.s32 1, %v58
  %v60 = vrot.slane %v51, %v59
  %v61 = vlaneseq
  %v62 = vshrl.u32 %v61, 7
  %v63 = vsub.s32 2, %v62
  %v64 = vrot.slane %v51, %v63
  %v65 = vlaneseq
  %v66 = vshrl.u32 %v65, 7
  %v67 = vsub.s32 3, %v66
  %v68 = vrot.slane %v51, %v67
  %vm73 = vcmask 261120
  %v75 = vsel %vm73, %v23, 0
  %v78 = vsel %vm73, %v24, 0
  %v81 = vsel %vm73, %v25, 0
  %v84 = vsel %vm73, %v26, 0
  %86 = vmatprep.subr.bf16.mxu0 %v44
  %87 = vmatpush1.bf16.msra.mxu0 %v43
  %88 = vmatprep.subr.bf16.mxu0 %v48
  %89 = vmatpush1.bf16.msra.mxu0 %v47
  %90 = vmatprep.subr.bf16.mxu0 0
  %91 = vmatpush1.bf16.msra.mxu0 0
  %92 = vmatprep.subr.bf16.mxu0 0
  %93 = vmatpush1.bf16.msra.mxu0 0
  %94 = vmatprep.subr.bf16.mxu0 0
  %95 = vmatpush1.bf16.msra.mxu0 0
  %96 = vmatprep.subr.bf16.mxu0 0
  %97 = vmatpush1.bf16.msra.mxu0 0
  %98 = vmatprep.subr.bf16.mxu0 0
  %99 = vmatpush1.bf16.msra.mxu0 0
  %100 = vmatprep.subr.bf16.mxu0 0
  %101 = vmatpush1.bf16.msra.mxu0 0
  %102 = vmatprep.subr.bf16.mxu0 0
  %103 = vmatpush1.bf16.msra.mxu0 0
  %104 = vmatprep.subr.bf16.mxu0 0
  %105 = vmatpush1.bf16.msra.mxu0 0
  %106 = vmatprep.subr.bf16.mxu0 0
  %107 = vmatpush1.bf16.msra.mxu0 0
  %108 = vmatprep.subr.bf16.mxu0 0
  %109 = vmatpush1.bf16.msra.mxu0 0
  %110 = vmatprep.subr.bf16.mxu0 0
  %111 = vmatpush1.bf16.msra.mxu0 0
  %112 = vmatprep.subr.bf16.mxu0 0
  %113 = vmatpush1.bf16.msra.mxu0 0
  %114 = vmatprep.subr.bf16.mxu0 0
  %115 = vmatpush1.bf16.msra.mxu0 0
  %116 = vmatprep.subr.bf16.mxu0 0
  %117 = vmatpush1.bf16.msra.mxu0 0
  %118 = vmatprep.mubr.bf16.mxu0 0
  %119 = vmatmul.mubr.bf16.gmra.mrb[0].mxu0 %v75
  %v120 = vpop.f32.mrb[0].mxu0
  %v121 = vadd.f32 %v56, %v120
  %v122 = vpop.f32.mrb[0].mxu0
  %v123 = vadd.f32 %v60, %v122
  %v124 = vpop.f32.mrb[0].mxu0
  %v125 = vadd.f32 %v56, %v124
  %v126 = vpop.f32.mrb[0].mxu0
  %v127 = vadd.f32 %v60, %v126
  %128 = vmatprep.mubr.bf16.mxu0 0
  %129 = vmatmul.mubr.bf16.gmra.mrb[0].mxu0 %v78
  %v130 = vpop.f32.mrb[0].mxu0
  %v131 = vadd.f32 %v56, %v130
  %v132 = vpop.f32.mrb[0].mxu0
  %v133 = vadd.f32 %v60, %v132
  %v134 = vpop.f32.mrb[0].mxu0
  %v135 = vadd.f32 %v56, %v134
  %v136 = vpop.f32.mrb[0].mxu0
  %v137 = vadd.f32 %v60, %v136
  %138 = vmatprep.mubr.bf16.mxu0 0
  %139 = vmatmul.mubr.bf16.gmra.mrb[0].mxu0 %v81
  %v140 = vpop.f32.mrb[0].mxu0
  %v141 = vadd.f32 %v56, %v140
  %v142 = vpop.f32.mrb[0].mxu0
  %v143 = vadd.f32 %v60, %v142
  %v144 = vpop.f32.mrb[0].mxu0
  %v145 = vadd.f32 %v56, %v144
  %v146 = vpop.f32.mrb[0].mxu0
  %v147 = vadd.f32 %v60, %v146
  %148 = vmatprep.mubr.bf16.mxu0 0
  %149 = vmatmul.mubr.bf16.gmra.mrb[0].mxu0 %v84
  %v150 = vpop.f32.mrb[0].mxu0
  %v151 = vadd.f32 %v56, %v150
  %v152 = vpop.f32.mrb[0].mxu0
  %v153 = vadd.f32 %v60, %v152
  %v154 = vpop.f32.mrb[0].mxu0
  %v155 = vadd.f32 %v56, %v154
  %v156 = vpop.f32.mrb[0].mxu0
  %v157 = vadd.f32 %v60, %v156
  %158 = vdwg.mxu0
  %159 = vmatprep.subr.bf16.mxu0 %v46
  %160 = vmatpush1.bf16.msra.mxu0 %v45
  %161 = vmatprep.subr.bf16.mxu0 %v50
  %162 = vmatpush1.bf16.msra.mxu0 %v49
  %163 = vmatprep.subr.bf16.mxu0 0
  %164 = vmatpush1.bf16.msra.mxu0 0
  %165 = vmatprep.subr.bf16.mxu0 0
  %166 = vmatpush1.bf16.msra.mxu0 0
  %167 = vmatprep.subr.bf16.mxu0 0
  %168 = vmatpush1.bf16.msra.mxu0 0
  %169 = vmatprep.subr.bf16.mxu0 0
  %170 = vmatpush1.bf16.msra.mxu0 0
  %171 = vmatprep.subr.bf16.mxu0 0
  %172 = vmatpush1.bf16.msra.mxu0 0
  %173 = vmatprep.subr.bf16.mxu0 0
  %174 = vmatpush1.bf16.msra.mxu0 0
  %175 = vmatprep.subr.bf16.mxu0 0
  %176 = vmatpush1.bf16.msra.mxu0 0
  %177 = vmatprep.subr.bf16.mxu0 0
  %178 = vmatpush1.bf16.msra.mxu0 0
  %179 = vmatprep.subr.bf16.mxu0 0
  %180 = vmatpush1.bf16.msra.mxu0 0
  %181 = vmatprep.subr.bf16.mxu0 0
  %182 = vmatpush1.bf16.msra.mxu0 0
  %183 = vmatprep.subr.bf16.mxu0 0
  %184 = vmatpush1.bf16.msra.mxu0 0
  %185 = vmatprep.subr.bf16.mxu0 0
  %186 = vmatpush1.bf16.msra.mxu0 0
  %187 = vmatprep.subr.bf16.mxu0 0
  %188 = vmatpush1.bf16.msra.mxu0 0
  %189 = vmatprep.subr.bf16.mxu0 0
  %190 = vmatpush1.bf16.msra.mxu0 0
  %191 = vmatprep.mubr.bf16.mxu0 0
  %192 = vmatmul.mubr.bf16.gmra.mrb[0].mxu0 %v75
  %v193 = vpop.f32.mrb[0].mxu0
  %v194 = vadd.f32 %v64, %v193
  %v195 = vpop.f32.mrb[0].mxu0
  %v196 = vadd.f32 %v68, %v195
  %v197 = vpop.f32.mrb[0].mxu0
  %v198 = vadd.f32 %v64, %v197
  %v199 = vpop.f32.mrb[0].mxu0
  %v200 = vadd.f32 %v68, %v199
  %201 = vmatprep.mubr.bf16.mxu0 0
  %202 = vmatmul.mubr.bf16.gmra.mrb[0].mxu0 %v78
  %v203 = vpop.f32.mrb[0].mxu0
  %v204 = vadd.f32 %v64, %v203
  %v205 = vpop.f32.mrb[0].mxu0
  %v206 = vadd.f32 %v68, %v205
  %v207 = vpop.f32.mrb[0].mxu0
  %v208 = vadd.f32 %v64, %v207
  %v209 = vpop.f32.mrb[0].mxu0
  %v210 = vadd.f32 %v68, %v209
  %211 = vmatprep.mubr.bf16.mxu0 0
  %212 = vmatmul.mubr.bf16.gmra.mrb[0].mxu0 %v81
  %v213 = vpop.f32.mrb[0].mxu0
  %v214 = vadd.f32 %v64, %v213
  %v215 = vpop.f32.mrb[0].mxu0
  %v216 = vadd.f32 %v68, %v215
  %v217 = vpop.f32.mrb[0].mxu0
  %v218 = vadd.f32 %v64, %v217
  %v219 = vpop.f32.mrb[0].mxu0
  %v220 = vadd.f32 %v68, %v219
  %221 = vmatprep.mubr.bf16.mxu0 0
  %222 = vmatmul.mubr.bf16.gmra.mrb[0].mxu0 %v84
  %v223 = vpop.f32.mrb[0].mxu0
  %v224 = vadd.f32 %v64, %v223
  %v225 = vpop.f32.mrb[0].mxu0
  %v226 = vadd.f32 %v68, %v225
  %v227 = vpop.f32.mrb[0].mxu0
  %v228 = vadd.f32 %v64, %v227
  %v229 = vpop.f32.mrb[0].mxu0
  %v230 = vadd.f32 %v68, %v229
  %231 = vdwg.mxu0
  %v232 = vmax.f32 %v121, 0.0
  %v233 = vmax.f32 %v123, 0.0
  %v234 = vmax.f32 %v194, 0.0
  %v235 = vmax.f32 %v196, 0.0
  %v236 = vmax.f32 %v125, 0.0
  %v237 = vmax.f32 %v127, 0.0
  %v238 = vmax.f32 %v198, 0.0
  %v239 = vmax.f32 %v200, 0.0
  %v240 = vmax.f32 %v131, 0.0
  %v241 = vmax.f32 %v133, 0.0
  %v242 = vmax.f32 %v204, 0.0
  %v243 = vmax.f32 %v206, 0.0
  %v244 = vmax.f32 %v135, 0.0
  %v245 = vmax.f32 %v137, 0.0
  %v246 = vmax.f32 %v208, 0.0
  %v247 = vmax.f32 %v210, 0.0
  %v248 = vmax.f32 %v141, 0.0
  %v249 = vmax.f32 %v143, 0.0
  %v250 = vmax.f32 %v214, 0.0
  %v251 = vmax.f32 %v216, 0.0
  %v252 = vmax.f32 %v145, 0.0
  %v253 = vmax.f32 %v147, 0.0
  %v254 = vmax.f32 %v218, 0.0
  %v255 = vmax.f32 %v220, 0.0
  %v256 = vmax.f32 %v151, 0.0
  %v257 = vmax.f32 %v153, 0.0
  %v258 = vmax.f32 %v224, 0.0
  %v259 = vmax.f32 %v226, 0.0
  %v260 = vmax.f32 %v155, 0.0
  %v261 = vmax.f32 %v157, 0.0
  %v262 = vmax.f32 %v228, 0.0
  %v263 = vmax.f32 %v230, 0.0
  %264 = vst [vmem:[%s3] sm:$0xff] %v232
  %265 = vst [vmem:[%s3 + $0x8] sm:$0xff] %v233
  %266 = vst [vmem:[%s3 + $0x10] sm:$0xff] %v234
  %267 = vst [vmem:[%s3 + $0x18] sm:$0xff] %v235
  %268 = vst [vmem:[%s3 + $0x20] sm:$0xff] %v236
  %269 = vst [vmem:[%s3 + $0x28] sm:$0xff] %v237
  %270 = vst [vmem:[%s3 + $0x30] sm:$0xff] %v238
  %271 = vst [vmem:[%s3 + $0x38] sm:$0xff] %v239
  %272 = vst [vmem:[%s3 + $0x40] sm:$0xff] %v240
  %273 = vst [vmem:[%s3 + $0x48] sm:$0xff] %v241
  %274 = vst [vmem:[%s3 + $0x50] sm:$0xff] %v242
  %275 = vst [vmem:[%s3 + $0x58] sm:$0xff] %v243
  %276 = vst [vmem:[%s3 + $0x60] sm:$0xff] %v244
  %277 = vst [vmem:[%s3 + $0x68] sm:$0xff] %v245
  %278 = vst [vmem:[%s3 + $0x70] sm:$0xff] %v246
  %279 = vst [vmem:[%s3 + $0x78] sm:$0xff] %v247
  %280 = vst [vmem:[%s3 + $0x80] sm:$0xff] %v248
  %281 = vst [vmem:[%s3 + $0x88] sm:$0xff] %v249
  %282 = vst [vmem:[%s3 + $0x90] sm:$0xff] %v250
  %283 = vst [vmem:[%s3 + $0x98] sm:$0xff] %v251
  %284 = vst [vmem:[%s3 + $0xa0] sm:$0xff] %v252
  %285 = vst [vmem:[%s3 + $0xa8] sm:$0xff] %v253
  %286 = vst [vmem:[%s3 + $0xb0] sm:$0xff] %v254
  %287 = vst [vmem:[%s3 + $0xb8] sm:$0xff] %v255
  %288 = vst [vmem:[%s3 + $0xc0] sm:$0xff] %v256
  %289 = vst [vmem:[%s3 + $0xc8] sm:$0xff] %v257
  %290 = vst [vmem:[%s3 + $0xd0] sm:$0xff] %v258
  %291 = vst [vmem:[%s3 + $0xd8] sm:$0xff] %v259
  %292 = vst [vmem:[%s3 + $0xe0] sm:$0xff] %v260
  %293 = vst [vmem:[%s3 + $0xe8] sm:$0xff] %v261
  %294 = vst [vmem:[%s3 + $0xf0] sm:$0xff] %v262
  %295 = vst [vmem:[%s3 + $0xf8] sm:$0xff] %v263
  // Predicated region
  $region14: #{hybrid_forward.40} parent=0 // pred_check
    _
  $region15: #{hybrid_forward.40} parent=0 // pred_check_branch
    %297 = sbr.rel (0) target = $region17
  $region16: #{hybrid_forward.40} parent=0 // pred_region
    _
  $region17: #{hybrid_forward.40} parent=0 // pred_fallthru
    _
  // Predicated region
  $region18: #{hybrid_forward.40} parent=0 // pred_check
    _
  $region19: #{hybrid_forward.40} parent=0 // pred_check_branch
    %299 = sbr.rel (0) target = $region21
  $region20: #{hybrid_forward.40} parent=0 // pred_region
    _
  $region21: #{hybrid_forward.40} parent=0 // pred_fallthru
    _

// kernel: hybrid_forward.38
$region0: #{hybrid_forward.38}
  #allocation0 [shape = 'u32[]', space=smem, size = 0x4, offset = 0x4, fixed_abs, tag = 'smem constant byte address 0x4 - core index']
  #allocation1 [shape = 'u32[144,128]{1,0:T(1,128)}', space=vmem, size = 0x12000, scoped, tag = 'internal scratch']
  %s0 = inlined_call_operand.vmem [shape: f32[2,4,32,8], index: 0, kind: input, shape index: {}]
  %s1 = inlined_call_operand.vmem [shape: f32[2,4,32,8], index: 1, kind: input, shape index: {}]
  %s2 = inlined_call_operand.vmem [shape: f32[2,4,32,8], index: 2, kind: input, shape index: {}]
  %s3 = inlined_call_operand.vmem [shape: f32[2,4,32,8], index: 3, kind: output, shape index: {}]
  %s4 = sld [smem:[#allocation0]]
  $region45: #{hybrid_forward.38} parent=0
    _
  %s6 = ssub.s32 1, %s4
  %s7 = scalar_select 0, %s6, %s4
  loop: start=0, step=1, limit=4
  $region2: #{hybrid_forward.38} parent=0 // loop_pre_header
    _
  $region3: #{hybrid_forward.38} parent=0 // loop_header
    %s9 = sphi 0, %s13
    %p10 = scmp.ge.s32.totalorder %s9, 4
    %s19 = sphi 0, %s21
    %s22 = sphi 0, %s19
    %s23 = sphi 0, %s22
    %s39 = sphi 0, %s23
    %s45 = sphi 0, %s47
    %s48 = sphi 0, %s45
    %s49 = sphi 0, %s48
    %s65 = sphi 0, %s49
    %s71 = sphi 0, %s73
    %s74 = sphi 0, %s71
    %s75 = sphi 0, %s74
    %s91 = sphi 0, %s75
    %s97 = sphi 0, %s99
    %s100 = sphi 0, %s97
    %s101 = sphi 0, %s100
    %s117 = sphi 0, %s101
  $region4: #{hybrid_forward.38} parent=0 // loop_header_branch
    %12 = sbr.rel (%p10) target = $region8
  $region5: #{hybrid_forward.38} parent=0 // loop_body
    %s14 = ssub.s32 %s9, 1
    %s15 = ssub.s32 %s9, 2
    %s16 = sadd.s32 %s9, 1
    %s17 = ssub.s32 %s9, %s16
    %p18 = scmp.eq.s32.totalorder %s17, 0
    %s20 = sadd.s32 %s19, 1
    %s21 = scalar_select %p18, %s19, %s20
    %p24 = pneg %p18
    %p25 = scmp.eq.s32.totalorder %s9, 1
    %p26 = por %p24, %p25
    %p27 = scmp.ne.s32.totalorder %s19, %s22
    %p28 = scmp.eq.s32.totalorder %s9, 0
    %p29 = por %p27, %p28
    %p30 = scmp.ne.s32.totalorder %s19, %s22
    %p31 = scmp.eq.s32.totalorder %s14, 1
    %p32 = por %p30, %p31
    %p33 = scmp.ne.s32.totalorder %s22, %s23
    %p34 = scmp.eq.s32.totalorder %s14, 0
    %p35 = por %p33, %p34
    %p36 = scmp.ne.s32.totalorder %s22, %s23
    %p37 = scmp.eq.s32.totalorder %s15, 1
    %p38 = por %p36, %p37
    %p40 = scmp.ne.s32.totalorder %s23, %s39
    %p41 = scmp.eq.s32.totalorder %s15, 0
    %p42 = por %p40, %p41
    %s43 = ssub.s32 %s9, %s16
    %p44 = scmp.eq.s32.totalorder %s43, 0
    %s46 = sadd.s32 %s45, 1
    %s47 = scalar_select %p44, %s45, %s46
    %p50 = pneg %p44
    %p51 = scmp.eq.s32.totalorder %s9, 1
    %p52 = por %p50, %p51
    %p53 = scmp.ne.s32.totalorder %s45, %s48
    %p54 = scmp.eq.s32.totalorder %s9, 0
    %p55 = por %p53, %p54
    %p56 = scmp.ne.s32.totalorder %s45, %s48
    %p57 = scmp.eq.s32.totalorder %s14, 1
    %p58 = por %p56, %p57
    %p59 = scmp.ne.s32.totalorder %s48, %s49
    %p60 = scmp.eq.s32.totalorder %s14, 0
    %p61 = por %p59, %p60
    %p62 = scmp.ne.s32.totalorder %s48, %s49
    %p63 = scmp.eq.s32.totalorder %s15, 1
    %p64 = por %p62, %p63
    %p66 = scmp.ne.s32.totalorder %s49, %s65
    %p67 = scmp.eq.s32.totalorder %s15, 0
    %p68 = por %p66, %p67
    %s69 = ssub.s32 %s9, %s16
    %p70 = scmp.eq.s32.totalorder %s69, 0
    %s72 = sadd.s32 %s71, 1
    %s73 = scalar_select %p70, %s71, %s72
    %p76 = pneg %p70
    %p77 = scmp.eq.s32.totalorder %s9, 1
    %p78 = por %p76, %p77
    %p79 = scmp.ne.s32.totalorder %s71, %s74
    %p80 = scmp.eq.s32.totalorder %s9, 0
    %p81 = por %p79, %p80
    %p82 = scmp.ne.s32.totalorder %s71, %s74
    %p83 = scmp.eq.s32.totalorder %s14, 1
    %p84 = por %p82, %p83
    %p85 = scmp.ne.s32.totalorder %s74, %s75
    %p86 = scmp.eq.s32.totalorder %s14, 0
    %p87 = por %p85, %p86
    %p88 = scmp.ne.s32.totalorder %s74, %s75
    %p89 = scmp.eq.s32.totalorder %s15, 1
    %p90 = por %p88, %p89
    %p92 = scmp.ne.s32.totalorder %s75, %s91
    %p93 = scmp.eq.s32.totalorder %s15, 0
    %p94 = por %p92, %p93
    %s95 = ssub.s32 %s9, %s16
    %p96 = scmp.eq.s32.totalorder %s95, 0
    %s98 = sadd.s32 %s97, 1
    %s99 = scalar_select %p96, %s97, %s98
    %p102 = pneg %p96
    %p103 = scmp.eq.s32.totalorder %s9, 1
    %p104 = por %p102, %p103
    %p105 = scmp.ne.s32.totalorder %s97, %s100
    %p106 = scmp.eq.s32.totalorder %s9, 0
    %p107 = por %p105, %p106
    %p108 = scmp.ne.s32.totalorder %s97, %s100
    %p109 = scmp.eq.s32.totalorder %s14, 1
    %p110 = por %p108, %p109
    %p111 = scmp.ne.s32.totalorder %s100, %s101
    %p112 = scmp.eq.s32.totalorder %s14, 0
    %p113 = por %p111, %p112
    %p114 = scmp.ne.s32.totalorder %s100, %s101
    %p115 = scmp.eq.s32.totalorder %s15, 1
    %p116 = por %p114, %p115
    %p118 = scmp.ne.s32.totalorder %s101, %s117
    %p119 = scmp.eq.s32.totalorder %s15, 0
    %p120 = por %p118, %p119
    %p121 = scmp.le.s32.totalorder 1, %s9
    %p122 = scmp.lt.s32.totalorder %s9, 3
    %p123 = pnand %p121, %p122
    %p124 = pneg %p123
    // Predicated region
    $region9: #{hybrid_forward.38} parent=5 // pred_check
      _
    $region10: #{hybrid_forward.38} parent=5 // pred_check_branch
      %126 = sbr.rel (%p123) target = $region12
    $region11: #{hybrid_forward.38} parent=5 // pred_region
      %s127 = ssub.s32 %s9, 1
    $region12: #{hybrid_forward.38} parent=5 // pred_fallthru
      _
    %p128 = scmp.lt.s32.totalorder %s9, 2
    // Predicated region
    $region13: #{hybrid_forward.38} parent=5 // pred_check
      %p129 = pneg %p128
    $region14: #{hybrid_forward.38} parent=5 // pred_check_branch
      %131 = sbr.rel (%p129) target = $region16
    $region15: #{hybrid_forward.38} parent=5 // pred_region
      // Predicated region
      $region17: #{hybrid_forward.38} parent=15 // pred_check
        %p132 = pneg %p29
      $region18: #{hybrid_forward.38} parent=15 // pred_check_branch
        %134 = sbr.rel (%p132) target = $region20
      $region19: #{hybrid_forward.38} parent=15 // pred_region
        %p135 = scmp.lt.s32.totalorder %s9, 1
        %s136 = scalar_select %p135, %s9, 1
        %s137 = smul.addr %s136, 16
        %s138 = smul.addr %s137, 8
        %s139 = scalar_lea.vmem %s0, %s138
      $region20: #{hybrid_forward.38} parent=15 // pred_fallthru
        _
      // Predicated region
      $region21: #{hybrid_forward.38} parent=15 // pred_check
        %p140 = pneg %p55
      $region22: #{hybrid_forward.38} parent=15 // pred_check_branch
        %142 = sbr.rel (%p140) target = $region24
      $region23: #{hybrid_forward.38} parent=15 // pred_region
        %p143 = scmp.lt.s32.totalorder %s9, 1
        %s144 = scalar_select %p143, %s9, 1
        %s145 = smul.addr %s144, 16
        %s146 = smul.addr %s145, 8
        %s147 = scalar_lea.vmem %s1, %s146
      $region24: #{hybrid_forward.38} parent=15 // pred_fallthru
        _
      // Predicated region
      $region25: #{hybrid_forward.38} parent=15 // pred_check
        %p148 = pneg %p81
      $region26: #{hybrid_forward.38} parent=15 // pred_check_branch
        %150 = sbr.rel (%p148) target = $region28
      $region27: #{hybrid_forward.38} parent=15 // pred_region
        %p151 = scmp.lt.s32.totalorder %s9, 1
        %s152 = scalar_select %p151, %s9, 1
        %s153 = smul.addr %s152, 16
        %s154 = smul.addr %s153, 8
        %s155 = scalar_lea.vmem %s2, %s154
      $region28: #{hybrid_forward.38} parent=15 // pred_fallthru
        _
    $region16: #{hybrid_forward.38} parent=5 // pred_fallthru
      _
    %p156 = scmp.le.s32.totalorder 1, %s9
    %p157 = scmp.lt.s32.totalorder %s9, 3
    %p158 = pnand %p156, %p157
    %p159 = pneg %p158
    // Predicated region
    $region29: #{hybrid_forward.38} parent=5 // pred_check
      _
    $region30: #{hybrid_forward.38} parent=5 // pred_check_branch
      %161 = sbr.rel (%p158) target = $region32
    $region31: #{hybrid_forward.38} parent=5 // pred_region
      %s162 = ssub.s32 %s9, 1
      %p163 = scmp.lt.s32.totalorder %s14, 1
      %s164 = scalar_select %p163, %s14, 1
      %s165 = smul.addr %s164, 16
      %s166 = smul.addr %s165, 8
      %s167 = scalar_lea.vmem %s0, %s166
      %p168 = pneg %p35
      %p169 = pneg %p32
      %p170 = scmp.lt.s32.totalorder %s14, 1
      %s171 = scalar_select %p170, %s14, 1
      %s172 = smul.addr %s171, 16
      %s173 = smul.addr %s172, 8
      %s174 = scalar_lea.vmem %s1, %s173
      %p175 = pneg %p61
      %p176 = pneg %p58
      %p177 = scmp.lt.s32.totalorder %s14, 1
      %s178 = scalar_select %p177, %s14, 1
      %s179 = smul.addr %s178, 16
      %s180 = smul.addr %s179, 8
      %s181 = scalar_lea.vmem %s2, %s180
      %p182 = pneg %p87
      %p183 = pneg %p84
      %p184 = pneg %p113
      %p185 = pneg %p110
      %p186 = scmp.lt.s32.totalorder %s14, 1
      %s187 = scalar_select %p186, %s14, 1
      %s188 = smul.addr %s187, 16
      %s189 = smul.addr %s188, 8
      %s190 = scalar_lea.vmem %s3, %s189
      %p191 = scmp.lt.s32.totalorder %s14, 1
      %s192 = scalar_select %p191, %s14, 1
      %s193 = smul.addr %s192, 16
      %s194 = smul.addr %s193, 8
      %s195 = scalar_lea.vmem %s0, %s194
      %p196 = scmp.lt.s32.totalorder %s14, 1
      %s197 = scalar_select %p196, %s14, 1
      %s198 = smul.addr %s197, 16
      %s199 = smul.addr %s198, 8
      %s200 = scalar_lea.vmem %s1, %s199
      %p201 = scmp.lt.s32.totalorder %s14, 1
      %s202 = scalar_select %p201, %s14, 1
      %s203 = smul.addr %s202, 16
      %s204 = smul.addr %s203, 8
      %s205 = scalar_lea.vmem %s2, %s204
      %p206 = scmp.lt.s32.totalorder %s14, 1
      %s207 = scalar_select %p206, %s14, 1
      %s208 = smul.addr %s207, 16
      %s209 = smul.addr %s208, 8
      %s210 = scalar_lea.vmem %s3, %s209
      %v212 = vld [vmem:[%s195] sm:$0xff]
      %v213 = vld [vmem:[%s195 + $0x8] sm:$0xff]
      %v214 = vld [vmem:[%s195 + $0x10] sm:$0xff]
      %v215 = vld [vmem:[%s195 + $0x18] sm:$0xff]
      %v216 = vld [vmem:[%s195 + $0x20] sm:$0xff]
      %v217 = vld [vmem:[%s195 + $0x28] sm:$0xff]
      %v218 = vld [vmem:[%s195 + $0x30] sm:$0xff]
      %v219 = vld [vmem:[%s195 + $0x38] sm:$0xff]
      %v220 = vld [vmem:[%s195 + $0x40] sm:$0xff]
      %v221 = vld [vmem:[%s195 + $0x48] sm:$0xff]
      %v222 = vld [vmem:[%s195 + $0x50] sm:$0xff]
      %v223 = vld [vmem:[%s195 + $0x58] sm:$0xff]
      %v224 = vld [vmem:[%s195 + $0x60] sm:$0xff]
      %v225 = vld [vmem:[%s195 + $0x68] sm:$0xff]
      %v226 = vld [vmem:[%s195 + $0x70] sm:$0xff]
      %v227 = vld [vmem:[%s195 + $0x78] sm:$0xff]
      %v228 = vpack.c.bf16 %v213, %v212
      %v229 = vpack.c.bf16 %v215, %v214
      %v230 = vpack.c.bf16 %v217, %v216
      %v231 = vpack.c.bf16 %v219, %v218
      %v232 = vpack.c.bf16 %v221, %v220
      %v233 = vpack.c.bf16 %v223, %v222
      %v234 = vpack.c.bf16 %v225, %v224
      %v235 = vpack.c.bf16 %v227, %v226
      %v236 = vld [vmem:[%s200] sm:$0xff]
      %v237 = vld [vmem:[%s200 + $0x8] sm:$0xff]
      %v238 = vld [vmem:[%s200 + $0x10] sm:$0xff]
      %v239 = vld [vmem:[%s200 + $0x18] sm:$0xff]
      %v240 = vld [vmem:[%s200 + $0x20] sm:$0xff]
      %v241 = vld [vmem:[%s200 + $0x28] sm:$0xff]
      %v242 = vld [vmem:[%s200 + $0x30] sm:$0xff]
      %v243 = vld [vmem:[%s200 + $0x38] sm:$0xff]
      %v244 = vld [vmem:[%s200 + $0x40] sm:$0xff]
      %v245 = vld [vmem:[%s200 + $0x48] sm:$0xff]
      %v246 = vld [vmem:[%s200 + $0x50] sm:$0xff]
      %v247 = vld [vmem:[%s200 + $0x58] sm:$0xff]
      %v248 = vld [vmem:[%s200 + $0x60] sm:$0xff]
      %v249 = vld [vmem:[%s200 + $0x68] sm:$0xff]
      %v250 = vld [vmem:[%s200 + $0x70] sm:$0xff]
      %v251 = vld [vmem:[%s200 + $0x78] sm:$0xff]
      %v252 = vpack.c.bf16 %v237, %v236
      %v253 = vpack.c.bf16 %v239, %v238
      %v254 = vpack.c.bf16 %v241, %v240
      %v255 = vpack.c.bf16 %v243, %v242
      %v256 = vpack.c.bf16 %v245, %v244
      %v257 = vpack.c.bf16 %v247, %v246
      %v258 = vpack.c.bf16 %v249, %v248
      %v259 = vpack.c.bf16 %v251, %v250
      %v260 = vld [vmem:[%s205] sm:$0xff]
      %v261 = vld [vmem:[%s205 + $0x8] sm:$0xff]
      %v262 = vld [vmem:[%s205 + $0x10] sm:$0xff]
      %v263 = vld [vmem:[%s205 + $0x18] sm:$0xff]
      %v264 = vld [vmem:[%s205 + $0x20] sm:$0xff]
      %v265 = vld [vmem:[%s205 + $0x28] sm:$0xff]
      %v266 = vld [vmem:[%s205 + $0x30] sm:$0xff]
      %v267 = vld [vmem:[%s205 + $0x38] sm:$0xff]
      %v268 = vld [vmem:[%s205 + $0x40] sm:$0xff]
      %v269 = vld [vmem:[%s205 + $0x48] sm:$0xff]
      %v270 = vld [vmem:[%s205 + $0x50] sm:$0xff]
      %v271 = vld [vmem:[%s205 + $0x58] sm:$0xff]
      %v272 = vld [vmem:[%s205 + $0x60] sm:$0xff]
      %v273 = vld [vmem:[%s205 + $0x68] sm:$0xff]
      %v274 = vld [vmem:[%s205 + $0x70] sm:$0xff]
      %v275 = vld [vmem:[%s205 + $0x78] sm:$0xff]
      %v276 = vpack.c.bf16 %v261, %v260
      %v277 = vpack.c.bf16 %v263, %v262
      %v278 = vpack.c.bf16 %v265, %v264
      %v279 = vpack.c.bf16 %v267, %v266
      %v280 = vpack.c.bf16 %v269, %v268
      %v281 = vpack.c.bf16 %v271, %v270
      %v282 = vpack.c.bf16 %v273, %v272
      %v283 = vpack.c.bf16 %v275, %v274
      %vm284 = vcmask 64512
      %v286 = vsel %vm284, %v228, 0
      %v289 = vsel %vm284, %v229, 0
      %v292 = vsel %vm284, %v252, 0
      %v295 = vsel %vm284, %v253, 0
      %297 = vmatprep.subr.bf16.mxu0 0
      %298 = vmatpush1.bf16.xpose.msra.mxu0 %v292
      %299 = vmatprep.subr.bf16.mxu0 0
      %300 = vmatpush1.bf16.xpose.msra.mxu0 %v295
      %301 = vmatprep.subr.bf16.mxu0 0
      %302 = vmatpush1.bf16.xpose.msra.mxu0 0
      %303 = vmatprep.subr.bf16.mxu0 0
      %304 = vmatpush1.bf16.xpose.msra.mxu0 0
      %305 = vmatprep.subr.bf16.mxu0 0
      %306 = vmatpush1.bf16.xpose.msra.mxu0 0
      %307 = vmatprep.subr.bf16.mxu0 0
      %308 = vmatpush1.bf16.xpose.msra.mxu0 0
      %309 = vmatprep.subr.bf16.mxu0 0
      %310 = vmatpush1.bf16.xpose.msra.mxu0 0
      %311 = vmatprep.subr.bf16.mxu0 0
      %312 = vmatpush1.bf16.xpose.msra.mxu0 0
      %313 = vmatprep.subr.bf16.mxu0 0
      %314 = vmatpush1.bf16.xpose.msra.mxu0 0
      %315 = vmatprep.subr.bf16.mxu0 0
      %316 = vmatpush1.bf16.xpose.msra.mxu0 0
      %317 = vmatprep.subr.bf16.mxu0 0
      %318 = vmatpush1.bf16.xpose.msra.mxu0 0
      %319 = vmatprep.subr.bf16.mxu0 0
      %320 = vmatpush1.bf16.xpose.msra.mxu0 0
      %321 = vmatprep.subr.bf16.mxu0 0
      %322 = vmatpush1.bf16.xpose.msra.mxu0 0
      %323 = vmatprep.subr.bf16.mxu0 0
      %324 = vmatpush1.bf16.xpose.msra.mxu0 0
      %325 = vmatprep.subr.bf16.mxu0 0
      %326 = vmatpush1.bf16.xpose.msra.mxu0 0
      %327 = vmatprep.subr.bf16.mxu0 0
      %328 = vmatpush1.bf16.xpose.msra.mxu0 0
      %329 = vmatprep.mubr.bf16.mxu0 0
      %330 = vmatmul.mubr.bf16.gmra.mrb[0].mxu0 %v286
      %v331 = vpop.f32.mrb[0].mxu0
      %v332 = vadd.f32 0.0, %v331
      %v333 = vpop.f32.mrb[0].mxu0
      %v334 = vpop.f32.mrb[0].mxu0
      %v335 = vadd.f32 0.0, %v334
      %v336 = vpop.f32.mrb[0].mxu0
      %337 = vmatprep.mubr.bf16.mxu0 0
      %338 = vmatmul.mubr.bf16.gmra.mrb[0].mxu0 %v289
      %v339 = vpop.f32.mrb[0].mxu0
      %v340 = vadd.f32 0.0, %v339
      %v341 = vpop.f32.mrb[0].mxu0
      %v342 = vpop.f32.mrb[0].mxu0
      %v343 = vadd.f32 0.0, %v342
      %v344 = vpop.f32.mrb[0].mxu0
      %345 = vdwg.mxu0
      %v347 = vsel %vm284, %v230, 0
      %v350 = vsel %vm284, %v231, 0
      %v353 = vsel %vm284, %v254, 0
      %v356 = vsel %vm284, %v255, 0
      %358 = vmatprep.subr.bf16.mxu0 0
      %359 = vmatpush1.bf16.xpose.msra.mxu0 %v353
      %360 = vmatprep.subr.bf16.mxu0 0
      %361 = vmatpush1.bf16.xpose.msra.mxu0 %v356
      %362 = vmatprep.subr.bf16.mxu0 0
      %363 = vmatpush1.bf16.xpose.msra.mxu0 0
      %364 = vmatprep.subr.bf16.mxu0 0
      %365 = vmatpush1.bf16.xpose.msra.mxu0 0
      %366 = vmatprep.subr.bf16.mxu0 0
      %367 = vmatpush1.bf16.xpose.msra.mxu0 0
      %368 = vmatprep.subr.bf16.mxu0 0
      %369 = vmatpush1.bf16.xpose.msra.mxu0 0
      %370 = vmatprep.subr.bf16.mxu0 0
      %371 = vmatpush1.bf16.xpose.msra.mxu0 0
      %372 = vmatprep.subr.bf16.mxu0 0
      %373 = vmatpush1.bf16.xpose.msra.mxu0 0
      %374 = vmatprep.subr.bf16.mxu0 0
      %375 = vmatpush1.bf16.xpose.msra.mxu0 0
      %376 = vmatprep.subr.bf16.mxu0 0
      %377 = vmatpush1.bf16.xpose.msra.mxu0 0
      %378 = vmatprep.subr.bf16.mxu0 0
      %379 = vmatpush1.bf16.xpose.msra.mxu0 0
      %380 = vmatprep.subr.bf16.mxu0 0
      %381 = vmatpush1.bf16.xpose.msra.mxu0 0
      %382 = vmatprep.subr.bf16.mxu0 0
      %383 = vmatpush1.bf16.xpose.msra.mxu0 0
      %384 = vmatprep.subr.bf16.mxu0 0
      %385 = vmatpush1.bf16.xpose.msra.mxu0 0
      %386 = vmatprep.subr.bf16.mxu0 0
      %387 = vmatpush1.bf16.xpose.msra.mxu0 0
      %388 = vmatprep.subr.bf16.mxu0 0
      %389 = vmatpush1.bf16.xpose.msra.mxu0 0
      %390 = vmatprep.mubr.bf16.mxu0 0
      %391 = vmatmul.mubr.bf16.gmra.mrb[0].mxu0 %v347
      %v392 = vpop.f32.mrb[0].mxu0
      %v393 = vadd.f32 0.0, %v392
      %v394 = vpop.f32.mrb[0].mxu0
      %v395 = vpop.f32.mrb[0].mxu0
      %v396 = vadd.f32 0.0, %v395
      %v397 = vpop.f32.mrb[0].mxu0
      %398 = vmatprep.mubr.bf16.mxu0 0
      %399 = vmatmul.mubr.bf16.gmra.mrb[0].mxu0 %v350
      %v400 = vpop.f32.mrb[0].mxu0
      %v401 = vadd.f32 0.0, %v400
      %v402 = vpop.f32.mrb[0].mxu0
      %v403 = vpop.f32.mrb[0].mxu0
      %v404 = vadd.f32 0.0, %v403
      %v405 = vpop.f32.mrb[0].mxu0
      %406 = vdwg.mxu0
      %v408 = vsel %vm284, %v232, 0
      %v411 = vsel %vm284, %v233, 0
      %v414 = vsel %vm284, %v256, 0
      %v417 = vsel %vm284, %v257, 0
      %419 = vmatprep.subr.bf16.mxu0 0
      %420 = vmatpush1.bf16.xpose.msra.mxu0 %v414
      %421 = vmatprep.subr.bf16.mxu0 0
      %422 = vmatpush1.bf16.xpose.msra.mxu0 %v417
      %423 = vmatprep.subr.bf16.mxu0 0
      %424 = vmatpush1.bf16.xpose.msra.mxu0 0
      %425 = vmatprep.subr.bf16.mxu0 0
      %426 = vmatpush1.bf16.xpose.msra.mxu0 0
      %427 = vmatprep.subr.bf16.mxu0 0
      %428 = vmatpush1.bf16.xpose.msra.mxu0 0
      %429 = vmatprep.subr.bf16.mxu0 0
      %430 = vmatpush1.bf16.xpose.msra.mxu0 0
      %431 = vmatprep.subr.bf16.mxu0 0
      %432 = vmatpush1.bf16.xpose.msra.mxu0 0
      %433 = vmatprep.subr.bf16.mxu0 0
      %434 = vmatpush1.bf16.xpose.msra.mxu0 0
      %435 = vmatprep.subr.bf16.mxu0 0
      %436 = vmatpush1.bf16.xpose.msra.mxu0 0
      %437 = vmatprep.subr.bf16.mxu0 0
      %438 = vmatpush1.bf16.xpose.msra.mxu0 0
      %439 = vmatprep.subr.bf16.mxu0 0
      %440 = vmatpush1.bf16.xpose.msra.mxu0 0
      %441 = vmatprep.subr.bf16.mxu0 0
      %442 = vmatpush1.bf16.xpose.msra.mxu0 0
      %443 = vmatprep.subr.bf16.mxu0 0
      %444 = vmatpush1.bf16.xpose.msra.mxu0 0
      %445 = vmatprep.subr.bf16.mxu0 0
      %446 = vmatpush1.bf16.xpose.msra.mxu0 0
      %447 = vmatprep.subr.bf16.mxu0 0
      %448 = vmatpush1.bf16.xpose.msra.mxu0 0
      %449 = vmatprep.subr.bf16.mxu0 0
      %450 = vmatpush1.bf16.xpose.msra.mxu0 0
      %451 = vmatprep.mubr.bf16.mxu0 0
      %452 = vmatmul.mubr.bf16.gmra.mrb[0].mxu0 %v408
      %v453 = vpop.f32.mrb[0].mxu0
      %v454 = vadd.f32 0.0, %v453
      %v455 = vpop.f32.mrb[0].mxu0
      %v456 = vpop.f32.mrb[0].mxu0
      %v457 = vadd.f32 0.0, %v456
      %v458 = vpop.f32.mrb[0].mxu0
      %459 = vmatprep.mubr.bf16.mxu0 0
      %460 = vmatmul.mubr.bf16.gmra.mrb[0].mxu0 %v411
      %v461 = vpop.f32.mrb[0].mxu0
      %v462 = vadd.f32 0.0, %v461
      %v463 = vpop.f32.mrb[0].mxu0
      %v464 = vpop.f32.mrb[0].mxu0
      %v465 = vadd.f32 0.0, %v464
      %v466 = vpop.f32.mrb[0].mxu0
      %467 = vdwg.mxu0
      %v469 = vsel %vm284, %v234, 0
      %v472 = vsel %vm284, %v235, 0
      %v475 = vsel %vm284, %v258, 0
      %v478 = vsel %vm284, %v259, 0
      %480 = vmatprep.subr.bf16.mxu0 0
      %481 = vmatpush1.bf16.xpose.msra.mxu0 %v475
      %482 = vmatprep.subr.bf16.mxu0 0
      %483 = vmatpush1.bf16.xpose.msra.mxu0 %v478
      %484 = vmatprep.subr.bf16.mxu0 0
      %485 = vmatpush1.bf16.xpose.msra.mxu0 0
      %486 = vmatprep.subr.bf16.mxu0 0
      %487 = vmatpush1.bf16.xpose.msra.mxu0 0
      %488 = vmatprep.subr.bf16.mxu0 0
      %489 = vmatpush1.bf16.xpose.msra.mxu0 0
      %490 = vmatprep.subr.bf16.mxu0 0
      %491 = vmatpush1.bf16.xpose.msra.mxu0 0
      %492 = vmatprep.subr.bf16.mxu0 0
      %493 = vmatpush1.bf16.xpose.msra.mxu0 0
      %494 = vmatprep.subr.bf16.mxu0 0
      %495 = vmatpush1.bf16.xpose.msra.mxu0 0
      %496 = vmatprep.subr.bf16.mxu0 0
      %497 = vmatpush1.bf16.xpose.msra.mxu0 0
      %498 = vmatprep.subr.bf16.mxu0 0
      %499 = vmatpush1.bf16.xpose.msra.mxu0 0
      %500 = vmatprep.subr.bf16.mxu0 0
      %501 = vmatpush1.bf16.xpose.msra.mxu0 0
      %502 = vmatprep.subr.bf16.mxu0 0
      %503 = vmatpush1.bf16.xpose.msra.mxu0 0
      %504 = vmatprep.subr.bf16.mxu0 0
      %505 = vmatpush1.bf16.xpose.msra.mxu0 0
      %506 = vmatprep.subr.bf16.mxu0 0
      %507 = vmatpush1.bf16.xpose.msra.mxu0 0
      %508 = vmatprep.subr.bf16.mxu0 0
      %509 = vmatpush1.bf16.xpose.msra.mxu0 0
      %510 = vmatprep.subr.bf16.mxu0 0
      %511 = vmatpush1.bf16.xpose.msra.mxu0 0
      %512 = vmatprep.mubr.bf16.mxu0 0
      %513 = vmatmul.mubr.bf16.gmra.mrb[0].mxu0 %v469
      %v514 = vpop.f32.mrb[0].mxu0
      %v515 = vadd.f32 0.0, %v514
      %v516 = vpop.f32.mrb[0].mxu0
      %v517 = vpop.f32.mrb[0].mxu0
      %v518 = vadd.f32 0.0, %v517
      %v519 = vpop.f32.mrb[0].mxu0
      %520 = vmatprep.mubr.bf16.mxu0 0
      %521 = vmatmul.mubr.bf16.gmra.mrb[0].mxu0 %v472
      %v522 = vpop.f32.mrb[0].mxu0
      %v523 = vadd.f32 0.0, %v522
      %v524 = vpop.f32.mrb[0].mxu0
      %v525 = vpop.f32.mrb[0].mxu0
      %v526 = vadd.f32 0.0, %v525
      %v527 = vpop.f32.mrb[0].mxu0
      %528 = vdwg.mxu0
      %v529 = vmul.f32 %v332, 0.35355338
      %v530 = vmul.f32 %v335, 0.35355338
      %v531 = vmul.f32 %v340, 0.35355338
      %v532 = vmul.f32 %v343, 0.35355338
      %v533 = vmul.f32 %v393, 0.35355338
      %v534 = vmul.f32 %v396, 0.35355338
      %v535 = vmul.f32 %v401, 0.35355338
      %v536 = vmul.f32 %v404, 0.35355338
      %v537 = vmul.f32 %v454, 0.35355338
      %v538 = vmul.f32 %v457, 0.35355338
      %v539 = vmul.f32 %v462, 0.35355338
      %v540 = vmul.f32 %v465, 0.35355338
      %v541 = vmul.f32 %v515, 0.35355338
      %v542 = vmul.f32 %v518, 0.35355338
      %v543 = vmul.f32 %v523, 0.35355338
      %v544 = vmul.f32 %v526, 0.35355338
      %vm545 = vcmask 261120
      %v546 = vsel %vm545, %v529, -inf
      %547 = vmax.xlane.f32.xlu0 %v546
      %v548 = vpop.xlane.xlu0 %547
      %v549 = vsel %vm545, %v530, -inf
      %550 = vmax.xlane.f32.xlu0 %v549
      %v551 = vpop.xlane.xlu0 %550
      %v552 = vsel %vm545, %v531, -inf
      %553 = vmax.xlane.f32.xlu0 %v552
      %v554 = vpop.xlane.xlu0 %553
      %v555 = vsel %vm545, %v532, -inf
      %556 = vmax.xlane.f32.xlu0 %v555
      %v557 = vpop.xlane.xlu0 %556
      %v558 = vsel %vm545, %v533, -inf
      %559 = vmax.xlane.f32.xlu0 %v558
      %v560 = vpop.xlane.xlu0 %559
      %v561 = vsel %vm545, %v534, -inf
      %562 = vmax.xlane.f32.xlu0 %v561
      %v563 = vpop.xlane.xlu0 %562
      %v564 = vsel %vm545, %v535, -inf
      %565 = vmax.xlane.f32.xlu0 %v564
      %v566 = vpop.xlane.xlu0 %565
      %v567 = vsel %vm545, %v536, -inf
      %568 = vmax.xlane.f32.xlu0 %v567
      %v569 = vpop.xlane.xlu0 %568
      %v570 = vsel %vm545, %v537, -inf
      %571 = vmax.xlane.f32.xlu0 %v570
      %v572 = vpop.xlane.xlu0 %571
      %v573 = vsel %vm545, %v538, -inf
      %574 = vmax.xlane.f32.xlu0 %v573
      %v575 = vpop.xlane.xlu0 %574
      %v576 = vsel %vm545, %v539, -inf
      %577 = vmax.xlane.f32.xlu0 %v576
      %v578 = vpop.xlane.xlu0 %577
      %v579 = vsel %vm545, %v540, -inf
      %580 = vmax.xlane.f32.xlu0 %v579
      %v581 = vpop.xlane.xlu0 %580
      %v582 = vsel %vm545, %v541, -inf
      %583 = vmax.xlane.f32.xlu0 %v582
      %v584 = vpop.xlane.xlu0 %583
      %v585 = vsel %vm545, %v542, -inf
      %586 = vmax.xlane.f32.xlu0 %v585
      %v587 = vpop.xlane.xlu0 %586
      %v588 = vsel %vm545, %v543, -inf
      %589 = vmax.xlane.f32.xlu0 %v588
      %v590 = vpop.xlane.xlu0 %589
      %v591 = vsel %vm545, %v544, -inf
      %592 = vmax.xlane.f32.xlu0 %v591
      %v593 = vpop.xlane.xlu0 %592
      %v594 = vsub.f32 %v529, %v548
      %v595 = vsub.f32 %v530, %v551
      %v596 = vsub.f32 %v531, %v554
      %v597 = vsub.f32 %v532, %v557
      %v598 = vsub.f32 %v533, %v560
      %v599 = vsub.f32 %v534, %v563
      %v600 = vsub.f32 %v535, %v566
      %v601 = vsub.f32 %v536, %v569
      %v602 = vsub.f32 %v537, %v572
      %v603 = vsub.f32 %v538, %v575
      %v604 = vsub.f32 %v539, %v578
      %v605 = vsub.f32 %v540, %v581
      %v606 = vsub.f32 %v541, %v584
      %v607 = vsub.f32 %v542, %v587
      %v608 = vsub.f32 %v543, %v590
      %v609 = vsub.f32 %v544, %v593
      %v610 = vmul.f32 %v594, 1.442695
      %v611 = vpow.pop %v610
      %v612 = vmul.f32 %v595, 1.442695
      %v613 = vpow.pop %v612
      %v614 = vmul.f32 %v596, 1.442695
      %v615 = vpow.pop %v614
      %v616 = vmul.f32 %v597, 1.442695
      %v617 = vpow.pop %v616
      %v618 = vmul.f32 %v598, 1.442695
      %v619 = vpow.pop %v618
      %v620 = vmul.f32 %v599, 1.442695
      %v621 = vpow.pop %v620
      %v622 = vmul.f32 %v600, 1.442695
      %v623 = vpow.pop %v622
      %v624 = vmul.f32 %v601, 1.442695
      %v625 = vpow.pop %v624
      %v626 = vmul.f32 %v602, 1.442695
      %v627 = vpow.pop %v626
      %v628 = vmul.f32 %v603, 1.442695
      %v629 = vpow.pop %v628
      %v630 = vmul.f32 %v604, 1.442695
      %v631 = vpow.pop %v630
      %v632 = vmul.f32 %v605, 1.442695
      %v633 = vpow.pop %v632
      %v634 = vmul.f32 %v606, 1.442695
      %v635 = vpow.pop %v634
      %v636 = vmul.f32 %v607, 1.442695
      %v637 = vpow.pop %v636
      %v638 = vmul.f32 %v608, 1.442695
      %v639 = vpow.pop %v638
      %v640 = vmul.f32 %v609, 1.442695
      %v641 = vpow.pop %v640
      %v642 = vsel %vm545, %v611, 0.0
      %643 = vadd.xlane.f32.xlu0 %v642
      %v644 = vpop.xlane.xlu0 %643
      %v645 = vsel %vm545, %v613, 0.0
      %646 = vadd.xlane.f32.xlu0 %v645
      %v647 = vpop.xlane.xlu0 %646
      %v648 = vsel %vm545, %v615, 0.0
      %649 = vadd.xlane.f32.xlu0 %v648
      %v650 = vpop.xlane.xlu0 %649
      %v651 = vsel %vm545, %v617, 0.0
      %652 = vadd.xlane.f32.xlu0 %v651
      %v653 = vpop.xlane.xlu0 %652
      %v654 = vsel %vm545, %v619, 0.0
      %655 = vadd.xlane.f32.xlu0 %v654
      %v656 = vpop.xlane.xlu0 %655
      %v657 = vsel %vm545, %v621, 0.0
      %658 = vadd.xlane.f32.xlu0 %v657
      %v659 = vpop.xlane.xlu0 %658
      %v660 = vsel %vm545, %v623, 0.0
      %661 = vadd.xlane.f32.xlu0 %v660
      %v662 = vpop.xlane.xlu0 %661
      %v663 = vsel %vm545, %v625, 0.0
      %664 = vadd.xlane.f32.xlu0 %v663
      %v665 = vpop.xlane.xlu0 %664
      %v666 = vsel %vm545, %v627, 0.0
      %667 = vadd.xlane.f32.xlu0 %v666
      %v668 = vpop.xlane.xlu0 %667
      %v669 = vsel %vm545, %v629, 0.0
      %670 = vadd.xlane.f32.xlu0 %v669
      %v671 = vpop.xlane.xlu0 %670
      %v672 = vsel %vm545, %v631, 0.0
      %673 = vadd.xlane.f32.xlu0 %v672
      %v674 = vpop.xlane.xlu0 %673
      %v675 = vsel %vm545, %v633, 0.0
      %676 = vadd.xlane.f32.xlu0 %v675
      %v677 = vpop.xlane.xlu0 %676
      %v678 = vsel %vm545, %v635, 0.0
      %679 = vadd.xlane.f32.xlu0 %v678
      %v680 = vpop.xlane.xlu0 %679
      %v681 = vsel %vm545, %v637, 0.0
      %682 = vadd.xlane.f32.xlu0 %v681
      %v683 = vpop.xlane.xlu0 %682
      %v684 = vsel %vm545, %v639, 0.0
      %685 = vadd.xlane.f32.xlu0 %v684
      %v686 = vpop.xlane.xlu0 %685
      %v687 = vsel %vm545, %v641, 0.0
      %688 = vadd.xlane.f32.xlu0 %v687
      %v689 = vpop.xlane.xlu0 %688
      %v690 = vrcp.pop %v644
      %v691 = vrcp.pop %v647
      %v692 = vrcp.pop %v650
      %v693 = vrcp.pop %v653
      %v694 = vrcp.pop %v656
      %v695 = vrcp.pop %v659
      %v696 = vrcp.pop %v662
      %v697 = vrcp.pop %v665
      %v698 = vrcp.pop %v668
      %v699 = vrcp.pop %v671
      %v700 = vrcp.pop %v674
      %v701 = vrcp.pop %v677
      %v702 = vrcp.pop %v680
      %v703 = vrcp.pop %v683
      %v704 = vrcp.pop %v686
      %v705 = vrcp.pop %v689
      %v706 = vmul.f32 %v611, %v690
      %v707 = vmul.f32 %v613, %v691
      %v708 = vmul.f32 %v615, %v692
      %v709 = vmul.f32 %v617, %v693
      %v710 = vmul.f32 %v619, %v694
      %v711 = vmul.f32 %v621, %v695
      %v712 = vmul.f32 %v623, %v696
      %v713 = vmul.f32 %v625, %v697
      %v714 = vmul.f32 %v627, %v698
      %v715 = vmul.f32 %v629, %v699
      %v716 = vmul.f32 %v631, %v700
      %v717 = vmul.f32 %v633, %v701
      %v718 = vmul.f32 %v635, %v702
      %v719 = vmul.f32 %v637, %v703
      %v720 = vmul.f32 %v639, %v704
      %v721 = vmul.f32 %v641, %v705
      %v722 = vpack.c.bf16 %v707, %v706
      %v723 = vpack.c.bf16 %v709, %v708
      %v724 = vpack.c.bf16 %v711, %v710
      %v725 = vpack.c.bf16 %v713, %v712
      %v726 = vpack.c.bf16 %v715, %v714
      %v727 = vpack.c.bf16 %v717, %v716
      %v728 = vpack.c.bf16 %v719, %v718
      %v729 = vpack.c.bf16 %v721, %v720
      %v731 = vsel %vm545, %v722, 0
      %v734 = vsel %vm545, %v723, 0
      %736 = vmatprep.subr.bf16.mxu0 0
      %737 = vmatpush1.bf16.msra.mxu0 %v276
      %738 = vmatprep.subr.bf16.mxu0 0
      %739 = vmatpush1.bf16.msra.mxu0 %v277
      %740 = vmatprep.subr.bf16.mxu0 0
      %741 = vmatpush1.bf16.msra.mxu0 0
      %742 = vmatprep.subr.bf16.mxu0 0
      %743 = vmatpush1.bf16.msra.mxu0 0
      %744 = vmatprep.subr.bf16.mxu0 0
      %745 = vmatpush1.bf16.msra.mxu0 0
      %746 = vmatprep.subr.bf16.mxu0 0
      %747 = vmatpush1.bf16.msra.mxu0 0
      %748 = vmatprep.subr.bf16.mxu0 0
      %749 = vmatpush1.bf16.msra.mxu0 0
      %750 = vmatprep.subr.bf16.mxu0 0
      %751 = vmatpush1.bf16.msra.mxu0 0
      %752 = vmatprep.subr.bf16.mxu0 0
      %753 = vmatpush1.bf16.msra.mxu0 0
      %754 = vmatprep.subr.bf16.mxu0 0
      %755 = vmatpush1.bf16.msra.mxu0 0
      %756 = vmatprep.subr.bf16.mxu0 0
      %757 = vmatpush1.bf16.msra.mxu0 0
      %758 = vmatprep.subr.bf16.mxu0 0
      %759 = vmatpush1.bf16.msra.mxu0 0
      %760 = vmatprep.subr.bf16.mxu0 0
      %761 = vmatpush1.bf16.msra.mxu0 0
      %762 = vmatprep.subr.bf16.mxu0 0
      %763 = vmatpush1.bf16.msra.mxu0 0
      %764 = vmatprep.subr.bf16.mxu0 0
      %765 = vmatpush1.bf16.msra.mxu0 0
      %766 = vmatprep.subr.bf16.mxu0 0
      %767 = vmatpush1.bf16.msra.mxu0 0
      %768 = vmatprep.mubr.bf16.mxu0 0
      %769 = vmatmul.mubr.bf16.gmra.mrb[0].mxu0 %v731
      %v770 = vpop.f32.mrb[0].mxu0
      %v771 = vadd.f32 0.0, %v770
      %v772 = vpop.f32.mrb[0].mxu0
      %v773 = vpop.f32.mrb[0].mxu0
      %v774 = vadd.f32 0.0, %v773
      %v775 = vpop.f32.mrb[0].mxu0
      %776 = vmatprep.mubr.bf16.mxu0 0
      %777 = vmatmul.mubr.bf16.gmra.mrb[0].mxu0 %v734
      %v778 = vpop.f32.mrb[0].mxu0
      %v779 = vadd.f32 0.0, %v778
      %v780 = vpop.f32.mrb[0].mxu0
      %v781 = vpop.f32.mrb[0].mxu0
      %v782 = vadd.f32 0.0, %v781
      %v783 = vpop.f32.mrb[0].mxu0
      %784 = vdwg.mxu0
      %v786 = vsel %vm545, %v724, 0
      %v789 = vsel %vm545, %v725, 0
      %791 = vmatprep.subr.bf16.mxu0 0
      %792 = vmatpush1.bf16.msra.mxu0 %v278
      %793 = vmatprep.subr.bf16.mxu0 0
      %794 = vmatpush1.bf16.msra.mxu0 %v279
      %795 = vmatprep.subr.bf16.mxu0 0
      %796 = vmatpush1.bf16.msra.mxu0 0
      %797 = vmatprep.subr.bf16.mxu0 0
      %798 = vmatpush1.bf16.msra.mxu0 0
      %799 = vmatprep.subr.bf16.mxu0 0
      %800 = vmatpush1.bf16.msra.mxu0 0
      %801 = vmatprep.subr.bf16.mxu0 0
      %802 = vmatpush1.bf16.msra.mxu0 0
      %803 = vmatprep.subr.bf16.mxu0 0
      %804 = vmatpush1.bf16.msra.mxu0 0
      %805 = vmatprep.subr.bf16.mxu0 0
      %806 = vmatpush1.bf16.msra.mxu0 0
      %807 = vmatprep.subr.bf16.mxu0 0
      %808 = vmatpush1.bf16.msra.mxu0 0
      %809 = vmatprep.subr.bf16.mxu0 0
      %810 = vmatpush1.bf16.msra.mxu0 0
      %811 = vmatprep.subr.bf16.mxu0 0
      %812 = vmatpush1.bf16.msra.mxu0 0
      %813 = vmatprep.subr.bf16.mxu0 0
      %814 = vmatpush1.bf16.msra.mxu0 0
      %815 = vmatprep.subr.bf16.mxu0 0
      %816 = vmatpush1.bf16.msra.mxu0 0
      %817 = vmatprep.subr.bf16.mxu0 0
      %818 = vmatpush1.bf16.msra.mxu0 0
      %819 = vmatprep.subr.bf16.mxu0 0
      %820 = vmatpush1.bf16.msra.mxu0 0
      %821 = vmatprep.subr.bf16.mxu0 0
      %822 = vmatpush1.bf16.msra.mxu0 0
      %823 = vmatprep.mubr.bf16.mxu0 0
      %824 = vmatmul.mubr.bf16.gmra.mrb[0].mxu0 %v786
      %v825 = vpop.f32.mrb[0].mxu0
      %v826 = vadd.f32 0.0, %v825
      %v827 = vpop.f32.mrb[0].mxu0
      %v828 = vpop.f32.mrb[0].mxu0
      %v829 = vadd.f32 0.0, %v828
      %v830 = vpop.f32.mrb[0].mxu0
      %831 = vmatprep.mubr.bf16.mxu0 0
      %832 = vmatmul.mubr.bf16.gmra.mrb[0].mxu0 %v789
      %v833 = vpop.f32.mrb[0].mxu0
      %v834 = vadd.f32 0.0, %v833
      %v835 = vpop.f32.mrb[0].mxu0
      %v836 = vpop.f32.mrb[0].mxu0
      %v837 = vadd.f32 0.0, %v836
      %v838 = vpop.f32.mrb[0].mxu0
      %839 = vdwg.mxu0
      %v841 = vsel %vm545, %v726, 0
      %v844 = vsel %vm545, %v727, 0
      %846 = vmatprep.subr.bf16.mxu0 0
      %847 = vmatpush1.bf16.msra.mxu0 %v280
      %848 = vmatprep.subr.bf16.mxu0 0
      %849 = vmatpush1.bf16.msra.mxu0 %v281
      %850 = vmatprep.subr.bf16.mxu0 0
      %851 = vmatpush1.bf16.msra.mxu0 0
      %852 = vmatprep.subr.bf16.mxu0 0
      %853 = vmatpush1.bf16.msra.mxu0 0
      %854 = vmatprep.subr.bf16.mxu0 0
      %855 = vmatpush1.bf16.msra.mxu0 0
      %856 = vmatprep.subr.bf16.mxu0 0
      %857 = vmatpush1.bf16.msra.mxu0 0
      %858 = vmatprep.subr.bf16.mxu0 0
      %859 = vmatpush1.bf16.msra.mxu0 0
      %860 = vmatprep.subr.bf16.mxu0 0
      %861 = vmatpush1.bf16.msra.mxu0 0
      %862 = vmatprep.subr.bf16.mxu0 0
      %863 = vmatpush1.bf16.msra.mxu0 0
      %864 = vmatprep.subr.bf16.mxu0 0
      %865 = vmatpush1.bf16.msra.mxu0 0
      %866 = vmatprep.subr.bf16.mxu0 0
      %867 = vmatpush1.bf16.msra.mxu0 0
      %868 = vmatprep.subr.bf16.mxu0 0
      %869 = vmatpush1.bf16.msra.mxu0 0
      %870 = vmatprep.subr.bf16.mxu0 0
      %871 = vmatpush1.bf16.msra.mxu0 0
      %872 = vmatprep.subr.bf16.mxu0 0
      %873 = vmatpush1.bf16.msra.mxu0 0
      %874 = vmatprep.subr.bf16.mxu0 0
      %875 = vmatpush1.bf16.msra.mxu0 0
      %876 = vmatprep.subr.bf16.mxu0 0
      %877 = vmatpush1.bf16.msra.mxu0 0
      %878 = vmatprep.mubr.bf16.mxu0 0
      %879 = vmatmul.mubr.bf16.gmra.mrb[0].mxu0 %v841
      %v880 = vpop.f32.mrb[0].mxu0
      %v881 = vadd.f32 0.0, %v880
      %v882 = vpop.f32.mrb[0].mxu0
      %v883 = vpop.f32.mrb[0].mxu0
      %v884 = vadd.f32 0.0, %v883
      %v885 = vpop.f32.mrb[0].mxu0
      %886 = vmatprep.mubr.bf16.mxu0 0
      %887 = vmatmul.mubr.bf16.gmra.mrb[0].mxu0 %v844
      %v888 = vpop.f32.mrb[0].mxu0
      %v889 = vadd.f32 0.0, %v888
      %v890 = vpop.f32.mrb[0].mxu0
      %v891 = vpop.f32.mrb[0].mxu0
      %v892 = vadd.f32 0.0, %v891
      %v893 = vpop.f32.mrb[0].mxu0
      %894 = vdwg.mxu0
      %v896 = vsel %vm545, %v728, 0
      %v899 = vsel %vm545, %v729, 0
      %901 = vmatprep.subr.bf16.mxu0 0
      %902 = vmatpush1.bf16.msra.mxu0 %v282
      %903 = vmatprep.subr.bf16.mxu0 0
      %904 = vmatpush1.bf16.msra.mxu0 %v283
      %905 = vmatprep.subr.bf16.mxu0 0
      %906 = vmatpush1.bf16.msra.mxu0 0
      %907 = vmatprep.subr.bf16.mxu0 0
      %908 = vmatpush1.bf16.msra.mxu0 0
      %909 = vmatprep.subr.bf16.mxu0 0
      %910 = vmatpush1.bf16.msra.mxu0 0
      %911 = vmatprep.subr.bf16.mxu0 0
      %912 = vmatpush1.bf16.msra.mxu0 0
      %913 = vmatprep.subr.bf16.mxu0 0
      %914 = vmatpush1.bf16.msra.mxu0 0
      %915 = vmatprep.subr.bf16.mxu0 0
      %916 = vmatpush1.bf16.msra.mxu0 0
      %917 = vmatprep.subr.bf16.mxu0 0
      %918 = vmatpush1.bf16.msra.mxu0 0
      %919 = vmatprep.subr.bf16.mxu0 0
      %920 = vmatpush1.bf16.msra.mxu0 0
      %921 = vmatprep.subr.bf16.mxu0 0
      %922 = vmatpush1.bf16.msra.mxu0 0
      %923 = vmatprep.subr.bf16.mxu0 0
      %924 = vmatpush1.bf16.msra.mxu0 0
      %925 = vmatprep.subr.bf16.mxu0 0
      %926 = vmatpush1.bf16.msra.mxu0 0
      %927 = vmatprep.subr.bf16.mxu0 0
      %928 = vmatpush1.bf16.msra.mxu0 0
      %929 = vmatprep.subr.bf16.mxu0 0
      %930 = vmatpush1.bf16.msra.mxu0 0
      %931 = vmatprep.subr.bf16.mxu0 0
      %932 = vmatpush1.bf16.msra.mxu0 0
      %933 = vmatprep.mubr.bf16.mxu0 0
      %934 = vmatmul.mubr.bf16.gmra.mrb[0].mxu0 %v896
      %v935 = vpop.f32.mrb[0].mxu0
      %v936 = vadd.f32 0.0, %v935
      %v937 = vpop.f32.mrb[0].mxu0
      %v938 = vpop.f32.mrb[0].mxu0
      %v939 = vadd.f32 0.0, %v938
      %v940 = vpop.f32.mrb[0].mxu0
      %941 = vmatprep.mubr.bf16.mxu0 0
      %942 = vmatmul.mubr.bf16.gmra.mrb[0].mxu0 %v899
      %v943 = vpop.f32.mrb[0].mxu0
      %v944 = vadd.f32 0.0, %v943
      %v945 = vpop.f32.mrb[0].mxu0
      %v946 = vpop.f32.mrb[0].mxu0
      %v947 = vadd.f32 0.0, %v946
      %v948 = vpop.f32.mrb[0].mxu0
      %949 = vdwg.mxu0
      %950 = vst.msk [vmem:[%s210] sm:$0xff] %vm284, %v771
      %951 = vst.msk [vmem:[%s210 + $0x8] sm:$0xff] %vm284, %v774
      %952 = vst.msk [vmem:[%s210 + $0x10] sm:$0xff] %vm284, %v779
      %953 = vst.msk [vmem:[%s210 + $0x18] sm:$0xff] %vm284, %v782
      %954 = vst.msk [vmem:[%s210 + $0x20] sm:$0xff] %vm284, %v826
      %955 = vst.msk [vmem:[%s210 + $0x28] sm:$0xff] %vm284, %v829
      %956 = vst.msk [vmem:[%s210 + $0x30] sm:$0xff] %vm284, %v834
      %957 = vst.msk [vmem:[%s210 + $0x38] sm:$0xff] %vm284, %v837
      %958 = vst.msk [vmem:[%s210 + $0x40] sm:$0xff] %vm284, %v881
      %959 = vst.msk [vmem:[%s210 + $0x48] sm:$0xff] %vm284, %v884
      %960 = vst.msk [vmem:[%s210 + $0x50] sm:$0xff] %vm284, %v889
      %961 = vst.msk [vmem:[%s210 + $0x58] sm:$0xff] %vm284, %v892
      %962 = vst.msk [vmem:[%s210 + $0x60] sm:$0xff] %vm284, %v936
      %963 = vst.msk [vmem:[%s210 + $0x68] sm:$0xff] %vm284, %v939
      %964 = vst.msk [vmem:[%s210 + $0x70] sm:$0xff] %vm284, %v944
      %965 = vst.msk [vmem:[%s210 + $0x78] sm:$0xff] %vm284, %v947
      %p966 = scmp.lt.s32.totalorder %s14, 1
      %s967 = scalar_select %p966, %s14, 1
      %s968 = smul.addr %s967, 16
      %s969 = smul.addr %s968, 8
      %s970 = scalar_lea.vmem %s3, %s969
      // Predicated region
      $region33: #{hybrid_forward.38} parent=31 // pred_check
        %p971 = pneg %p110
      $region34: #{hybrid_forward.38} parent=31 // pred_check_branch
        %973 = sbr.rel (%p971) target = $region36
      $region35: #{hybrid_forward.38} parent=31 // pred_region
        _
      $region36: #{hybrid_forward.38} parent=31 // pred_fallthru
        _
    $region32: #{hybrid_forward.38} parent=5 // pred_fallthru
      _
    %p974 = scmp.le.s32.totalorder 2, %s9
    // Predicated region
    $region37: #{hybrid_forward.38} parent=5 // pred_check
      %p975 = pneg %p974
    $region38: #{hybrid_forward.38} parent=5 // pred_check_branch
      %977 = sbr.rel (%p975) target = $region40
    $region39: #{hybrid_forward.38} parent=5 // pred_region
      %s978 = ssub.s32 %s9, 2
      // Predicated region
      $region41: #{hybrid_forward.38} parent=39 // pred_check
        %p979 = pneg %p116
      $region42: #{hybrid_forward.38} parent=39 // pred_check_branch
        %981 = sbr.rel (%p979) target = $region44
      $region43: #{hybrid_forward.38} parent=39 // pred_region
        %p982 = scmp.lt.s32.totalorder %s15, 1
        %s983 = scalar_select %p982, %s15, 1
        %s984 = smul.addr %s983, 16
        %s985 = smul.addr %s984, 8
        %s986 = scalar_lea.vmem %s3, %s985
      $region44: #{hybrid_forward.38} parent=39 // pred_fallthru
        _
    $region40: #{hybrid_forward.38} parent=5 // pred_fallthru
      _
  $region6: #{hybrid_forward.38} parent=0 // loop_footer
    %s13 = sadd.s32 1, %s9
  $region7: #{hybrid_forward.38} parent=0 // loop_footer_branch
    %8 = sbr.rel target = $region3
  $region8: #{hybrid_forward.38} parent=0 // loop_exit
    _

// kernel: hybrid_forward.39
$region0: #{hybrid_forward.39}
  #allocation0 [shape = 'u32[]', space=smem, size = 0x4, offset = 0x4, fixed_abs, tag = 'smem constant byte address 0x4 - core index']
  #allocation1 [shape = 'u32[144,128]{1,0:T(1,128)}', space=vmem, size = 0x12000, scoped, tag = 'internal scratch']
  %s0 = inlined_call_operand.vmem [shape: f32[64,32], index: 0, kind: input, shape index: {}]
  %s1 = inlined_call_operand.vmem [shape: f32[32,32], index: 1, kind: input, shape index: {}]
  %s2 = inlined_call_operand.vmem [shape: f32[1,32], index: 2, kind: input, shape index: {}]
  %s3 = inlined_call_operand.vmem [shape: f32[64,32], index: 3, kind: input, shape index: {}]
  %s4 = inlined_call_operand.vmem [shape: f32[1,32], index: 4, kind: input, shape index: {}]
  %s5 = inlined_call_operand.vmem [shape: f32[1,32], index: 5, kind: input, shape index: {}]
  %s6 = inlined_call_operand.vmem [shape: f32[64,32], index: 6, kind: output, shape index: {}]
  %s7 = sld [smem:[#allocation0]]
  $region34: #{hybrid_forward.39} parent=0
    _
  %s9 = ssub.s32 1, %s7
  %s10 = scalar_select 0, %s9, %s7
  // Predicated region
  $region2: #{hybrid_forward.39} parent=0 // pred_check
    _
  $region3: #{hybrid_forward.39} parent=0 // pred_check_branch
    %12 = sbr.rel (0) target = $region5
  $region4: #{hybrid_forward.39} parent=0 // pred_region
    _
  $region5: #{hybrid_forward.39} parent=0 // pred_fallthru
    _
  // Predicated region
  $region6: #{hybrid_forward.39} parent=0 // pred_check
    _
  $region7: #{hybrid_forward.39} parent=0 // pred_check_branch
    %14 = sbr.rel (0) target = $region9
  $region8: #{hybrid_forward.39} parent=0 // pred_region
    _
  $region9: #{hybrid_forward.39} parent=0 // pred_fallthru
    _
  // Predicated region
  $region10: #{hybrid_forward.39} parent=0 // pred_check
    _
  $region11: #{hybrid_forward.39} parent=0 // pred_check_branch
    %16 = sbr.rel (0) target = $region13
  $region12: #{hybrid_forward.39} parent=0 // pred_region
    _
  $region13: #{hybrid_forward.39} parent=0 // pred_fallthru
    _
  // Predicated region
  $region14: #{hybrid_forward.39} parent=0 // pred_check
    _
  $region15: #{hybrid_forward.39} parent=0 // pred_check_branch
    %18 = sbr.rel (0) target = $region17
  $region16: #{hybrid_forward.39} parent=0 // pred_region
    _
  $region17: #{hybrid_forward.39} parent=0 // pred_fallthru
    _
  // Predicated region
  $region18: #{hybrid_forward.39} parent=0 // pred_check
    _
  $region19: #{hybrid_forward.39} parent=0 // pred_check_branch
    %20 = sbr.rel (0) target = $region21
  $region20: #{hybrid_forward.39} parent=0 // pred_region
    _
  $region21: #{hybrid_forward.39} parent=0 // pred_fallthru
    _
  // Predicated region
  $region22: #{hybrid_forward.39} parent=0 // pred_check
    _
  $region23: #{hybrid_forward.39} parent=0 // pred_check_branch
    %22 = sbr.rel (0) target = $region25
  $region24: #{hybrid_forward.39} parent=0 // pred_region
    _
  $region25: #{hybrid_forward.39} parent=0 // pred_fallthru
    _
  %v24 = vld [vmem:[%s0] sm:$0xff]
  %v25 = vld [vmem:[%s0 + $0x8] sm:$0xff]
  %v26 = vld [vmem:[%s0 + $0x10] sm:$0xff]
  %v27 = vld [vmem:[%s0 + $0x18] sm:$0xff]
  %v28 = vld [vmem:[%s0 + $0x20] sm:$0xff]
  %v29 = vld [vmem:[%s0 + $0x28] sm:$0xff]
  %v30 = vld [vmem:[%s0 + $0x30] sm:$0xff]
  %v31 = vld [vmem:[%s0 + $0x38] sm:$0xff]
  %v32 = vpack.c.bf16 %v25, %v24
  %v33 = vpack.c.bf16 %v27, %v26
  %v34 = vpack.c.bf16 %v29, %v28
  %v35 = vpack.c.bf16 %v31, %v30
  %v36 = vld [vmem:[%s1] sm:$0xff]
  %v37 = vld [vmem:[%s1 + $0x8] sm:$0xff]
  %v38 = vld [vmem:[%s1 + $0x10] sm:$0xff]
  %v39 = vld [vmem:[%s1 + $0x18] sm:$0xff]
  %v40 = vpack.c.bf16 %v37, %v36
  %v41 = vpack.c.bf16 %v39, %v38
  %v42 = vld [vmem:[%s2] sm:$0x1]
  %v44 = vlaneseq
  %v45 = vshrl.u32 %v44, 7
  %v46 = vsub.s32 0, %v45
  %v47 = vrot.slane %v42, %v46
  %vm49 = vcmask 261120
  %v51 = vsel %vm49, %v32, 0
  %v54 = vsel %vm49, %v33, 0
  %v57 = vsel %vm49, %v34, 0
  %v60 = vsel %vm49, %v35, 0
  %62 = vmatprep.subr.bf16.mxu0 0
  %63 = vmatpush1.bf16.msra.mxu0 %v40
  %64 = vmatprep.subr.bf16.mxu0 0
  %65 = vmatpush1.bf16.msra.mxu0 %v41
  %66 = vmatprep.subr.bf16.mxu0 0
  %67 = vmatpush1.bf16.msra.mxu0 0
  %68 = vmatprep.subr.bf16.mxu0 0
  %69 = vmatpush1.bf16.msra.mxu0 0
  %70 = vmatprep.subr.bf16.mxu0 0
  %71 = vmatpush1.bf16.msra.mxu0 0
  %72 = vmatprep.subr.bf16.mxu0 0
  %73 = vmatpush1.bf16.msra.mxu0 0
  %74 = vmatprep.subr.bf16.mxu0 0
  %75 = vmatpush1.bf16.msra.mxu0 0
  %76 = vmatprep.subr.bf16.mxu0 0
  %77 = vmatpush1.bf16.msra.mxu0 0
  %78 = vmatprep.subr.bf16.mxu0 0
  %79 = vmatpush1.bf16.msra.mxu0 0
  %80 = vmatprep.subr.bf16.mxu0 0
  %81 = vmatpush1.bf16.msra.mxu0 0
  %82 = vmatprep.subr.bf16.mxu0 0
  %83 = vmatpush1.bf16.msra.mxu0 0
  %84 = vmatprep.subr.bf16.mxu0 0
  %85 = vmatpush1.bf16.msra.mxu0 0
  %86 = vmatprep.subr.bf16.mxu0 0
  %87 = vmatpush1.bf16.msra.mxu0 0
  %88 = vmatprep.subr.bf16.mxu0 0
  %89 = vmatpush1.bf16.msra.mxu0 0
  %90 = vmatprep.subr.bf16.mxu0 0
  %91 = vmatpush1.bf16.msra.mxu0 0
  %92 = vmatprep.subr.bf16.mxu0 0
  %93 = vmatpush1.bf16.msra.mxu0 0
  %94 = vmatprep.mubr.bf16.mxu0 0
  %95 = vmatmul.mubr.bf16.gmra.mrb[0].mxu0 %v51
  %v96 = vpop.f32.mrb[0].mxu0
  %v97 = vadd.f32 %v47, %v96
  %v98 = vpop.f32.mrb[0].mxu0
  %v99 = vpop.f32.mrb[0].mxu0
  %v100 = vadd.f32 %v47, %v99
  %v101 = vpop.f32.mrb[0].mxu0
  %102 = vmatprep.mubr.bf16.mxu0 0
  %103 = vmatmul.mubr.bf16.gmra.mrb[0].mxu0 %v54
  %v104 = vpop.f32.mrb[0].mxu0
  %v105 = vadd.f32 %v47, %v104
  %v106 = vpop.f32.mrb[0].mxu0
  %v107 = vpop.f32.mrb[0].mxu0
  %v108 = vadd.f32 %v47, %v107
  %v109 = vpop.f32.mrb[0].mxu0
  %110 = vmatprep.mubr.bf16.mxu0 0
  %111 = vmatmul.mubr.bf16.gmra.mrb[0].mxu0 %v57
  %v112 = vpop.f32.mrb[0].mxu0
  %v113 = vadd.f32 %v47, %v112
  %v114 = vpop.f32.mrb[0].mxu0
  %v115 = vpop.f32.mrb[0].mxu0
  %v116 = vadd.f32 %v47, %v115
  %v117 = vpop.f32.mrb[0].mxu0
  %118 = vmatprep.mubr.bf16.mxu0 0
  %119 = vmatmul.mubr.bf16.gmra.mrb[0].mxu0 %v60
  %v120 = vpop.f32.mrb[0].mxu0
  %v121 = vadd.f32 %v47, %v120
  %v122 = vpop.f32.mrb[0].mxu0
  %v123 = vpop.f32.mrb[0].mxu0
  %v124 = vadd.f32 %v47, %v123
  %v125 = vpop.f32.mrb[0].mxu0
  %126 = vdwg.mxu0
  %v127 = vld [vmem:[%s3] sm:$0xff]
  %v128 = vld [vmem:[%s3 + $0x8] sm:$0xff]
  %v129 = vld [vmem:[%s3 + $0x10] sm:$0xff]
  %v130 = vld [vmem:[%s3 + $0x18] sm:$0xff]
  %v131 = vld [vmem:[%s3 + $0x20] sm:$0xff]
  %v132 = vld [vmem:[%s3 + $0x28] sm:$0xff]
  %v133 = vld [vmem:[%s3 + $0x30] sm:$0xff]
  %v134 = vld [vmem:[%s3 + $0x38] sm:$0xff]
  %v135 = vadd.f32 %v97, %v127
  %v136 = vadd.f32 %v100, %v128
  %v137 = vadd.f32 %v105, %v129
  %v138 = vadd.f32 %v108, %v130
  %v139 = vadd.f32 %v113, %v131
  %v140 = vadd.f32 %v116, %v132
  %v141 = vadd.f32 %v121, %v133
  %v142 = vadd.f32 %v124, %v134
  %v143 = vsel %vm49, %v135, 0.0
  %144 = vadd.xlane.f32.xlu0 %v143
  %v145 = vpop.xlane.xlu0 %144
  %v146 = vsel %vm49, %v136, 0.0
  %147 = vadd.xlane.f32.xlu0 %v146
  %v148 = vpop.xlane.xlu0 %147
  %v149 = vsel %vm49, %v137, 0.0
  %150 = vadd.xlane.f32.xlu0 %v149
  %v151 = vpop.xlane.xlu0 %150
  %v152 = vsel %vm49, %v138, 0.0
  %153 = vadd.xlane.f32.xlu0 %v152
  %v154 = vpop.xlane.xlu0 %153
  %v155 = vsel %vm49, %v139, 0.0
  %156 = vadd.xlane.f32.xlu0 %v155
  %v157 = vpop.xlane.xlu0 %156
  %v158 = vsel %vm49, %v140, 0.0
  %159 = vadd.xlane.f32.xlu0 %v158
  %v160 = vpop.xlane.xlu0 %159
  %v161 = vsel %vm49, %v141, 0.0
  %162 = vadd.xlane.f32.xlu0 %v161
  %v163 = vpop.xlane.xlu0 %162
  %v164 = vsel %vm49, %v142, 0.0
  %165 = vadd.xlane.f32.xlu0 %v164
  %v166 = vpop.xlane.xlu0 %165
  %v167 = vrcp.pop 32.0
  %v168 = vmul.f32 %v145, %v167
  %v169 = vmul.f32 %v148, %v167
  %v170 = vmul.f32 %v151, %v167
  %v171 = vmul.f32 %v154, %v167
  %v172 = vmul.f32 %v157, %v167
  %v173 = vmul.f32 %v160, %v167
  %v174 = vmul.f32 %v163, %v167
  %v175 = vmul.f32 %v166, %v167
  %v176 = vsub.f32 %v135, %v168
  %v177 = vsub.f32 %v136, %v169
  %v178 = vsub.f32 %v137, %v170
  %v179 = vsub.f32 %v138, %v171
  %v180 = vsub.f32 %v139, %v172
  %v181 = vsub.f32 %v140, %v173
  %v182 = vsub.f32 %v141, %v174
  %v183 = vsub.f32 %v142, %v175
  %v184 = vmul.f32 %v176, %v176
  %v185 = vmul.f32 %v177, %v177
  %v186 = vmul.f32 %v178, %v178
  %v187 = vmul.f32 %v179, %v179
  %v188 = vmul.f32 %v180, %v180
  %v189 = vmul.f32 %v181, %v181
  %v190 = vmul.f32 %v182, %v182
  %v191 = vmul.f32 %v183, %v183
  %v192 = vsel %vm49, %v184, 0.0
  %193 = vadd.xlane.f32.xlu0 %v192
  %v194 = vpop.xlane.xlu0 %193
  %v195 = vsel %vm49, %v185, 0.0
  %196 = vadd.xlane.f32.xlu0 %v195
  %v197 = vpop.xlane.xlu0 %196
  %v198 = vsel %vm49, %v186, 0.0
  %199 = vadd.xlane.f32.xlu0 %v198
  %v200 = vpop.xlane.xlu0 %199
  %v201 = vsel %vm49, %v187, 0.0
  %202 = vadd.xlane.f32.xlu0 %v201
  %v203 = vpop.xlane.xlu0 %202
  %v204 = vsel %vm49, %v188, 0.0
  %205 = vadd.xlane.f32.xlu0 %v204
  %v206 = vpop.xlane.xlu0 %205
  %v207 = vsel %vm49, %v189, 0.0
  %208 = vadd.xlane.f32.xlu0 %v207
  %v209 = vpop.xlane.xlu0 %208
  %v210 = vsel %vm49, %v190, 0.0
  %211 = vadd.xlane.f32.xlu0 %v210
  %v212 = vpop.xlane.xlu0 %211
  %v213 = vsel %vm49, %v191, 0.0
  %214 = vadd.xlane.f32.xlu0 %v213
  %v215 = vpop.xlane.xlu0 %214
  %v216 = vmul.f32 %v194, %v167
  %v217 = vmul.f32 %v197, %v167
  %v218 = vmul.f32 %v200, %v167
  %v219 = vmul.f32 %v203, %v167
  %v220 = vmul.f32 %v206, %v167
  %v221 = vmul.f32 %v209, %v167
  %v222 = vmul.f32 %v212, %v167
  %v223 = vmul.f32 %v215, %v167
  %v224 = vadd.f32 %v216, 1e-05
  %v225 = vadd.f32 %v217, 1e-05
  %v226 = vadd.f32 %v218, 1e-05
  %v227 = vadd.f32 %v219, 1e-05
  %v228 = vadd.f32 %v220, 1e-05
  %v229 = vadd.f32 %v221, 1e-05
  %v230 = vadd.f32 %v222, 1e-05
  %v231 = vadd.f32 %v223, 1e-05
  %v232 = vrsqrt.pop %v224
  %v233 = vrsqrt.pop %v225
  %v234 = vrsqrt.pop %v226
  %v235 = vrsqrt.pop %v227
  %v236 = vrsqrt.pop %v228
  %v237 = vrsqrt.pop %v229
  %v238 = vrsqrt.pop %v230
  %v239 = vrsqrt.pop %v231
  %v240 = vmul.f32 %v176, %v232
  %v241 = vmul.f32 %v177, %v233
  %v242 = vmul.f32 %v178, %v234
  %v243 = vmul.f32 %v179, %v235
  %v244 = vmul.f32 %v180, %v236
  %v245 = vmul.f32 %v181, %v237
  %v246 = vmul.f32 %v182, %v238
  %v247 = vmul.f32 %v183, %v239
  %v248 = vld [vmem:[%s4] sm:$0x1]
  %v250 = vlaneseq
  %v251 = vshrl.u32 %v250, 7
  %v252 = vsub.s32 0, %v251
  %v253 = vrot.slane %v248, %v252
  %v255 = vmul.f32 %v240, %v253
  %v256 = vmul.f32 %v241, %v253
  %v257 = vmul.f32 %v242, %v253
  %v258 = vmul.f32 %v243, %v253
  %v259 = vmul.f32 %v244, %v253
  %v260 = vmul.f32 %v245, %v253
  %v261 = vmul.f32 %v246, %v253
  %v262 = vmul.f32 %v247, %v253
  %v263 = vld [vmem:[%s5] sm:$0x1]
  %v265 = vlaneseq
  %v266 = vshrl.u32 %v265, 7
  %v267 = vsub.s32 0, %v266
  %v268 = vrot.slane %v263, %v267
  %v270 = vadd.f32 %v255, %v268
  %v271 = vadd.f32 %v256, %v268
  %v272 = vadd.f32 %v257, %v268
  %v273 = vadd.f32 %v258, %v268
  %v274 = vadd.f32 %v259, %v268
  %v275 = vadd.f32 %v260, %v268
  %v276 = vadd.f32 %v261, %v268
  %v277 = vadd.f32 %v262, %v268
  %278 = vst.msk [vmem:[%s6] sm:$0xff] %vm49, %v270
  %279 = vst.msk [vmem:[%s6 + $0x8] sm:$0xff] %vm49, %v271
  %280 = vst.msk [vmem:[%s6 + $0x10] sm:$0xff] %vm49, %v272
  %281 = vst.msk [vmem:[%s6 + $0x18] sm:$0xff] %vm49, %v273
  %282 = vst.msk [vmem:[%s6 + $0x20] sm:$0xff] %vm49, %v274
  %283 = vst.msk [vmem:[%s6 + $0x28] sm:$0xff] %vm49, %v275
  %284 = vst.msk [vmem:[%s6 + $0x30] sm:$0xff] %vm49, %v276
  %285 = vst.msk [vmem:[%s6 + $0x38] sm:$0xff] %vm49, %v277
  // Predicated region
  $region26: #{hybrid_forward.39} parent=0 // pred_check
    _
  $region27: #{hybrid_forward.39} parent=0 // pred_check_branch
    %287 = sbr.rel (0) target = $region29
  $region28: #{hybrid_forward.39} parent=0 // pred_region
    _
  $region29: #{hybrid_forward.39} parent=0 // pred_fallthru
    _
  // Predicated region
  $region30: #{hybrid_forward.39} parent=0 // pred_check
    _
  $region31: #{hybrid_forward.39} parent=0 // pred_check_branch
    %289 = sbr.rel (0) target = $region33
  $region32: #{hybrid_forward.39} parent=0 // pred_region
    _
  $region33: #{hybrid_forward.39} parent=0 // pred_fallthru
    _

// kernel: hybrid_forward.41
$region0: #{hybrid_forward.41}
  #allocation0 [shape = 'u32[]', space=smem, size = 0x4, offset = 0x4, fixed_abs, tag = 'smem constant byte address 0x4 - core index']
  #allocation1 [shape = 'u32[144,128]{1,0:T(1,128)}', space=vmem, size = 0x12000, scoped, tag = 'internal scratch']
  %s0 = inlined_call_operand.vmem [shape: f32[64,512], index: 0, kind: input, shape index: {}]
  %s1 = inlined_call_operand.vmem [shape: f32[512,32], index: 1, kind: input, shape index: {}]
  %s2 = inlined_call_operand.vmem [shape: f32[1,32], index: 2, kind: input, shape index: {}]
  %s3 = inlined_call_operand.vmem [shape: f32[64,32], index: 3, kind: input, shape index: {}]
  %s4 = inlined_call_operand.vmem [shape: f32[1,32], index: 4, kind: input, shape index: {}]
  %s5 = inlined_call_operand.vmem [shape: f32[1,32], index: 5, kind: input, shape index: {}]
  %s6 = inlined_call_operand.vmem [shape: f32[64,32], index: 6, kind: output, shape index: {}]
  %s7 = sld [smem:[#allocation0]]
  $region34: #{hybrid_forward.41} parent=0
    _
  %s9 = ssub.s32 1, %s7
  %s10 = scalar_select 0, %s9, %s7
  // Predicated region
  $region2: #{hybrid_forward.41} parent=0 // pred_check
    _
  $region3: #{hybrid_forward.41} parent=0 // pred_check_branch
    %12 = sbr.rel (0) target = $region5
  $region4: #{hybrid_forward.41} parent=0 // pred_region
    _
  $region5: #{hybrid_forward.41} parent=0 // pred_fallthru
    _
  // Predicated region
  $region6: #{hybrid_forward.41} parent=0 // pred_check
    _
  $region7: #{hybrid_forward.41} parent=0 // pred_check_branch
    %14 = sbr.rel (0) target = $region9
  $region8: #{hybrid_forward.41} parent=0 // pred_region
    _
  $region9: #{hybrid_forward.41} parent=0 // pred_fallthru
    _
  // Predicated region
  $region10: #{hybrid_forward.41} parent=0 // pred_check
    _
  $region11: #{hybrid_forward.41} parent=0 // pred_check_branch
    %16 = sbr.rel (0) target = $region13
  $region12: #{hybrid_forward.41} parent=0 // pred_region
    _
  $region13: #{hybrid_forward.41} parent=0 // pred_fallthru
    _
  // Predicated region
  $region14: #{hybrid_forward.41} parent=0 // pred_check
    _
  $region15: #{hybrid_forward.41} parent=0 // pred_check_branch
    %18 = sbr.rel (0) target = $region17
  $region16: #{hybrid_forward.41} parent=0 // pred_region
    _
  $region17: #{hybrid_forward.41} parent=0 // pred_fallthru
    _
  // Predicated region
  $region18: #{hybrid_forward.41} parent=0 // pred_check
    _
  $region19: #{hybrid_forward.41} parent=0 // pred_check_branch
    %20 = sbr.rel (0) target = $region21
  $region20: #{hybrid_forward.41} parent=0 // pred_region
    _
  $region21: #{hybrid_forward.41} parent=0 // pred_fallthru
    _
  // Predicated region
  $region22: #{hybrid_forward.41} parent=0 // pred_check
    _
  $region23: #{hybrid_forward.41} parent=0 // pred_check_branch
    %22 = sbr.rel (0) target = $region25
  $region24: #{hybrid_forward.41} parent=0 // pred_region
    _
  $region25: #{hybrid_forward.41} parent=0 // pred_fallthru
    _
  %v24 = vld [vmem:[%s0] sm:$0xff]
  %v25 = vld [vmem:[%s0 + $0x8] sm:$0xff]
  %v26 = vld [vmem:[%s0 + $0x10] sm:$0xff]
  %v27 = vld [vmem:[%s0 + $0x18] sm:$0xff]
  %v28 = vld [vmem:[%s0 + $0x20] sm:$0xff]
  %v29 = vld [vmem:[%s0 + $0x28] sm:$0xff]
  %v30 = vld [vmem:[%s0 + $0x30] sm:$0xff]
  %v31 = vld [vmem:[%s0 + $0x38] sm:$0xff]
  %v32 = vld [vmem:[%s0 + $0x40] sm:$0xff]
  %v33 = vld [vmem:[%s0 + $0x48] sm:$0xff]
  %v34 = vld [vmem:[%s0 + $0x50] sm:$0xff]
  %v35 = vld [vmem:[%s0 + $0x58] sm:$0xff]
  %v36 = vld [vmem:[%s0 + $0x60] sm:$0xff]
  %v37 = vld [vmem:[%s0 + $0x68] sm:$0xff]
  %v38 = vld [vmem:[%s0 + $0x70] sm:$0xff]
  %v39 = vld [vmem:[%s0 + $0x78] sm:$0xff]
  %v40 = vld [vmem:[%s0 + $0x80] sm:$0xff]
  %v41 = vld [vmem:[%s0 + $0x88] sm:$0xff]
  %v42 = vld [vmem:[%s0 + $0x90] sm:$0xff]
  %v43 = vld [vmem:[%s0 + $0x98] sm:$0xff]
  %v44 = vld [vmem:[%s0 + $0xa0] sm:$0xff]
  %v45 = vld [vmem:[%s0 + $0xa8] sm:$0xff]
  %v46 = vld [vmem:[%s0 + $0xb0] sm:$0xff]
  %v47 = vld [vmem:[%s0 + $0xb8] sm:$0xff]
  %v48 = vld [vmem:[%s0 + $0xc0] sm:$0xff]
  %v49 = vld [vmem:[%s0 + $0xc8] sm:$0xff]
  %v50 = vld [vmem:[%s0 + $0xd0] sm:$0xff]
  %v51 = vld [vmem:[%s0 + $0xd8] sm:$0xff]
  %v52 = vld [vmem:[%s0 + $0xe0] sm:$0xff]
  %v53 = vld [vmem:[%s0 + $0xe8] sm:$0xff]
  %v54 = vld [vmem:[%s0 + $0xf0] sm:$0xff]
  %v55 = vld [vmem:[%s0 + $0xf8] sm:$0xff]
  %v56 = vpack.c.bf16 %v28, %v24
  %v57 = vpack.c.bf16 %v29, %v25
  %v58 = vpack.c.bf16 %v30, %v26
  %v59 = vpack.c.bf16 %v31, %v27
  %v60 = vpack.c.bf16 %v36, %v32
  %v61 = vpack.c.bf16 %v37, %v33
  %v62 = vpack.c.bf16 %v38, %v34
  %v63 = vpack.c.bf16 %v39, %v35
  %v64 = vpack.c.bf16 %v44, %v40
  %v65 = vpack.c.bf16 %v45, %v41
  %v66 = vpack.c.bf16 %v46, %v42
  %v67 = vpack.c.bf16 %v47, %v43
  %v68 = vpack.c.bf16 %v52, %v48
  %v69 = vpack.c.bf16 %v53, %v49
  %v70 = vpack.c.bf16 %v54, %v50
  %v71 = vpack.c.bf16 %v55, %v51
  %v72 = vld [vmem:[%s1] sm:$0xff]
  %v73 = vld [vmem:[%s1 + $0x8] sm:$0xff]
  %v74 = vld [vmem:[%s1 + $0x10] sm:$0xff]
  %v75 = vld [vmem:[%s1 + $0x18] sm:$0xff]
  %v76 = vld [vmem:[%s1 + $0x20] sm:$0xff]
  %v77 = vld [vmem:[%s1 + $0x28] sm:$0xff]
  %v78 = vld [vmem:[%s1 + $0x30] sm:$0xff]
  %v79 = vld [vmem:[%s1 + $0x38] sm:$0xff]
  %v80 = vld [vmem:[%s1 + $0x40] sm:$0xff]
  %v81 = vld [vmem:[%s1 + $0x48] sm:$0xff]
  %v82 = vld [vmem:[%s1 + $0x50] sm:$0xff]
  %v83 = vld [vmem:[%s1 + $0x58] sm:$0xff]
  %v84 = vld [vmem:[%s1 + $0x60] sm:$0xff]
  %v85 = vld [vmem:[%s1 + $0x68] sm:$0xff]
  %v86 = vld [vmem:[%s1 + $0x70] sm:$0xff]
  %v87 = vld [vmem:[%s1 + $0x78] sm:$0xff]
  %v88 = vld [vmem:[%s1 + $0x80] sm:$0xff]
  %v89 = vld [vmem:[%s1 + $0x88] sm:$0xff]
  %v90 = vld [vmem:[%s1 + $0x90] sm:$0xff]
  %v91 = vld [vmem:[%s1 + $0x98] sm:$0xff]
  %v92 = vld [vmem:[%s1 + $0xa0] sm:$0xff]
  %v93 = vld [vmem:[%s1 + $0xa8] sm:$0xff]
  %v94 = vld [vmem:[%s1 + $0xb0] sm:$0xff]
  %v95 = vld [vmem:[%s1 + $0xb8] sm:$0xff]
  %v96 = vld [vmem:[%s1 + $0xc0] sm:$0xff]
  %v97 = vld [vmem:[%s1 + $0xc8] sm:$0xff]
  %v98 = vld [vmem:[%s1 + $0xd0] sm:$0xff]
  %v99 = vld [vmem:[%s1 + $0xd8] sm:$0xff]
  %v100 = vld [vmem:[%s1 + $0xe0] sm:$0xff]
  %v101 = vld [vmem:[%s1 + $0xe8] sm:$0xff]
  %v102 = vld [vmem:[%s1 + $0xf0] sm:$0xff]
  %v103 = vld [vmem:[%s1 + $0xf8] sm:$0xff]
  %v104 = vld [vmem:[%s1 + $0x100] sm:$0xff]
  %v105 = vld [vmem:[%s1 + $0x108] sm:$0xff]
  %v106 = vld [vmem:[%s1 + $0x110] sm:$0xff]
  %v107 = vld [vmem:[%s1 + $0x118] sm:$0xff]
  %v108 = vld [vmem:[%s1 + $0x120] sm:$0xff]
  %v109 = vld [vmem:[%s1 + $0x128] sm:$0xff]
  %v110 = vld [vmem:[%s1 + $0x130] sm:$0xff]
  %v111 = vld [vmem:[%s1 + $0x138] sm:$0xff]
  %v112 = vld [vmem:[%s1 + $0x140] sm:$0xff]
  %v113 = vld [vmem:[%s1 + $0x148] sm:$0xff]
  %v114 = vld [vmem:[%s1 + $0x150] sm:$0xff]
  %v115 = vld [vmem:[%s1 + $0x158] sm:$0xff]
  %v116 = vld [vmem:[%s1 + $0x160] sm:$0xff]
  %v117 = vld [vmem:[%s1 + $0x168] sm:$0xff]
  %v118 = vld [vmem:[%s1 + $0x170] sm:$0xff]
  %v119 = vld [vmem:[%s1 + $0x178] sm:$0xff]
  %v120 = vld [vmem:[%s1 + $0x180] sm:$0xff]
  %v121 = vld [vmem:[%s1 + $0x188] sm:$0xff]
  %v122 = vld [vmem:[%s1 + $0x190] sm:$0xff]
  %v123 = vld [vmem:[%s1 + $0x198] sm:$0xff]
  %v124 = vld [vmem:[%s1 + $0x1a0] sm:$0xff]
  %v125 = vld [vmem:[%s1 + $0x1a8] sm:$0xff]
  %v126 = vld [vmem:[%s1 + $0x1b0] sm:$0xff]
  %v127 = vld [vmem:[%s1 + $0x1b8] sm:$0xff]
  %v128 = vld [vmem:[%s1 + $0x1c0] sm:$0xff]
  %v129 = vld [vmem:[%s1 + $0x1c8] sm:$0xff]
  %v130 = vld [vmem:[%s1 + $0x1d0] sm:$0xff]
  %v131 = vld [vmem:[%s1 + $0x1d8] sm:$0xff]
  %v132 = vld [vmem:[%s1 + $0x1e0] sm:$0xff]
  %v133 = vld [vmem:[%s1 + $0x1e8] sm:$0xff]
  %v134 = vld [vmem:[%s1 + $0x1f0] sm:$0xff]
  %v135 = vld [vmem:[%s1 + $0x1f8] sm:$0xff]
  %v136 = vpack.c.bf16 %v73, %v72
  %v137 = vpack.c.bf16 %v75, %v74
  %v138 = vpack.c.bf16 %v77, %v76
  %v139 = vpack.c.bf16 %v79, %v78
  %v140 = vpack.c.bf16 %v81, %v80
  %v141 = vpack.c.bf16 %v83, %v82
  %v142 = vpack.c.bf16 %v85, %v84
  %v143 = vpack.c.bf16 %v87, %v86
  %v144 = vpack.c.bf16 %v89, %v88
  %v145 = vpack.c.bf16 %v91, %v90
  %v146 = vpack.c.bf16 %v93, %v92
  %v147 = vpack.c.bf16 %v95, %v94
  %v148 = vpack.c.bf16 %v97, %v96
  %v149 = vpack.c.bf16 %v99, %v98
  %v150 = vpack.c.bf16 %v101, %v100
  %v151 = vpack.c.bf16 %v103, %v102
  %v152 = vpack.c.bf16 %v105, %v104
  %v153 = vpack.c.bf16 %v107, %v106
  %v154 = vpack.c.bf16 %v109, %v108
  %v155 = vpack.c.bf16 %v111, %v110
  %v156 = vpack.c.bf16 %v113, %v112
  %v157 = vpack.c.bf16 %v115, %v114
  %v158 = vpack.c.bf16 %v117, %v116
  %v159 = vpack.c.bf16 %v119, %v118
  %v160 = vpack.c.bf16 %v121, %v120
  %v161 = vpack.c.bf16 %v123, %v122
  %v162 = vpack.c.bf16 %v125, %v124
  %v163 = vpack.c.bf16 %v127, %v126
  %v164 = vpack.c.bf16 %v129, %v128
  %v165 = vpack.c.bf16 %v131, %v130
  %v166 = vpack.c.bf16 %v133, %v132
  %v167 = vpack.c.bf16 %v135, %v134
  %v168 = vld [vmem:[%s2] sm:$0x1]
  %v170 = vlaneseq
  %v171 = vshrl.u32 %v170, 7
  %v172 = vsub.s32 0, %v171
  %v173 = vrot.slane %v168, %v172
  %175 = vmatprep.subr.bf16.mxu0 0
  %176 = vmatpush1.bf16.msra.mxu0 %v136
  %177 = vmatprep.subr.bf16.mxu0 0
  %178 = vmatpush1.bf16.msra.mxu0 %v137
  %179 = vmatprep.subr.bf16.mxu0 0
  %180 = vmatpush1.bf16.msra.mxu0 %v138
  %181 = vmatprep.subr.bf16.mxu0 0
  %182 = vmatpush1.bf16.msra.mxu0 %v139
  %183 = vmatprep.subr.bf16.mxu0 0
  %184 = vmatpush1.bf16.msra.mxu0 %v140
  %185 = vmatprep.subr.bf16.mxu0 0
  %186 = vmatpush1.bf16.msra.mxu0 %v141
  %187 = vmatprep.subr.bf16.mxu0 0
  %188 = vmatpush1.bf16.msra.mxu0 %v142
  %189 = vmatprep.subr.bf16.mxu0 0
  %190 = vmatpush1.bf16.msra.mxu0 %v143
  %191 = vmatprep.subr.bf16.mxu0 0
  %192 = vmatpush1.bf16.msra.mxu0 %v144
  %193 = vmatprep.subr.bf16.mxu0 0
  %194 = vmatpush1.bf16.msra.mxu0 %v145
  %195 = vmatprep.subr.bf16.mxu0 0
  %196 = vmatpush1.bf16.msra.mxu0 %v146
  %197 = vmatprep.subr.bf16.mxu0 0
  %198 = vmatpush1.bf16.msra.mxu0 %v147
  %199 = vmatprep.subr.bf16.mxu0 0
  %200 = vmatpush1.bf16.msra.mxu0 %v148
  %201 = vmatprep.subr.bf16.mxu0 0
  %202 = vmatpush1.bf16.msra.mxu0 %v149
  %203 = vmatprep.subr.bf16.mxu0 0
  %204 = vmatpush1.bf16.msra.mxu0 %v150
  %205 = vmatprep.subr.bf16.mxu0 0
  %206 = vmatpush1.bf16.msra.mxu0 %v151
  %207 = vmatprep.mubr.bf16.mxu0 %v57
  %208 = vmatmul.mubr.bf16.gmra.mrb[0].mxu0 %v56
  %v209 = vpop.f32.mrb[0].mxu0
  %v210 = vadd.f32 %v173, %v209
  %v211 = vpop.f32.mrb[0].mxu0
  %v212 = vpop.f32.mrb[0].mxu0
  %v213 = vadd.f32 %v173, %v212
  %v214 = vpop.f32.mrb[0].mxu0
  %215 = vmatprep.mubr.bf16.mxu0 %v61
  %216 = vmatmul.mubr.bf16.gmra.mrb[0].mxu0 %v60
  %v217 = vpop.f32.mrb[0].mxu0
  %v218 = vadd.f32 %v173, %v217
  %v219 = vpop.f32.mrb[0].mxu0
  %v220 = vpop.f32.mrb[0].mxu0
  %v221 = vadd.f32 %v173, %v220
  %v222 = vpop.f32.mrb[0].mxu0
  %223 = vmatprep.mubr.bf16.mxu0 %v65
  %224 = vmatmul.mubr.bf16.gmra.mrb[0].mxu0 %v64
  %v225 = vpop.f32.mrb[0].mxu0
  %v226 = vadd.f32 %v173, %v225
  %v227 = vpop.f32.mrb[0].mxu0
  %v228 = vpop.f32.mrb[0].mxu0
  %v229 = vadd.f32 %v173, %v228
  %v230 = vpop.f32.mrb[0].mxu0
  %231 = vmatprep.mubr.bf16.mxu0 %v69
  %232 = vmatmul.mubr.bf16.gmra.mrb[0].mxu0 %v68
  %v233 = vpop.f32.mrb[0].mxu0
  %v234 = vadd.f32 %v173, %v233
  %v235 = vpop.f32.mrb[0].mxu0
  %v236 = vpop.f32.mrb[0].mxu0
  %v237 = vadd.f32 %v173, %v236
  %v238 = vpop.f32.mrb[0].mxu0
  %239 = vdwg.mxu0
  %240 = vmatprep.subr.bf16.mxu0 0
  %241 = vmatpush1.bf16.msra.mxu0 %v152
  %242 = vmatprep.subr.bf16.mxu0 0
  %243 = vmatpush1.bf16.msra.mxu0 %v153
  %244 = vmatprep.subr.bf16.mxu0 0
  %245 = vmatpush1.bf16.msra.mxu0 %v154
  %246 = vmatprep.subr.bf16.mxu0 0
  %247 = vmatpush1.bf16.msra.mxu0 %v155
  %248 = vmatprep.subr.bf16.mxu0 0
  %249 = vmatpush1.bf16.msra.mxu0 %v156
  %250 = vmatprep.subr.bf16.mxu0 0
  %251 = vmatpush1.bf16.msra.mxu0 %v157
  %252 = vmatprep.subr.bf16.mxu0 0
  %253 = vmatpush1.bf16.msra.mxu0 %v158
  %254 = vmatprep.subr.bf16.mxu0 0
  %255 = vmatpush1.bf16.msra.mxu0 %v159
  %256 = vmatprep.subr.bf16.mxu0 0
  %257 = vmatpush1.bf16.msra.mxu0 %v160
  %258 = vmatprep.subr.bf16.mxu0 0
  %259 = vmatpush1.bf16.msra.mxu0 %v161
  %260 = vmatprep.subr.bf16.mxu0 0
  %261 = vmatpush1.bf16.msra.mxu0 %v162
  %262 = vmatprep.subr.bf16.mxu0 0
  %263 = vmatpush1.bf16.msra.mxu0 %v163
  %264 = vmatprep.subr.bf16.mxu0 0
  %265 = vmatpush1.bf16.msra.mxu0 %v164
  %266 = vmatprep.subr.bf16.mxu0 0
  %267 = vmatpush1.bf16.msra.mxu0 %v165
  %268 = vmatprep.subr.bf16.mxu0 0
  %269 = vmatpush1.bf16.msra.mxu0 %v166
  %270 = vmatprep.subr.bf16.mxu0 0
  %271 = vmatpush1.bf16.msra.mxu0 %v167
  %272 = vmatprep.mubr.bf16.mxu0 %v59
  %273 = vmatmul.mubr.bf16.gmra.mrb[0].mxu0 %v58
  %v274 = vpop.f32.mrb[0].mxu0
  %v275 = vadd.f32 %v210, %v274
  %v276 = vpop.f32.mrb[0].mxu0
  %v277 = vpop.f32.mrb[0].mxu0
  %v278 = vadd.f32 %v213, %v277
  %v279 = vpop.f32.mrb[0].mxu0
  %280 = vmatprep.mubr.bf16.mxu0 %v63
  %281 = vmatmul.mubr.bf16.gmra.mrb[0].mxu0 %v62
  %v282 = vpop.f32.mrb[0].mxu0
  %v283 = vadd.f32 %v218, %v282
  %v284 = vpop.f32.mrb[0].mxu0
  %v285 = vpop.f32.mrb[0].mxu0
  %v286 = vadd.f32 %v221, %v285
  %v287 = vpop.f32.mrb[0].mxu0
  %288 = vmatprep.mubr.bf16.mxu0 %v67
  %289 = vmatmul.mubr.bf16.gmra.mrb[0].mxu0 %v66
  %v290 = vpop.f32.mrb[0].mxu0
  %v291 = vadd.f32 %v226, %v290
  %v292 = vpop.f32.mrb[0].mxu0
  %v293 = vpop.f32.mrb[0].mxu0
  %v294 = vadd.f32 %v229, %v293
  %v295 = vpop.f32.mrb[0].mxu0
  %296 = vmatprep.mubr.bf16.mxu0 %v71
  %297 = vmatmul.mubr.bf16.gmra.mrb[0].mxu0 %v70
  %v298 = vpop.f32.mrb[0].mxu0
  %v299 = vadd.f32 %v234, %v298
  %v300 = vpop.f32.mrb[0].mxu0
  %v301 = vpop.f32.mrb[0].mxu0
  %v302 = vadd.f32 %v237, %v301
  %v303 = vpop.f32.mrb[0].mxu0
  %304 = vdwg.mxu0
  %v305 = vld [vmem:[%s3] sm:$0xff]
  %v306 = vld [vmem:[%s3 + $0x8] sm:$0xff]
  %v307 = vld [vmem:[%s3 + $0x10] sm:$0xff]
  %v308 = vld [vmem:[%s3 + $0x18] sm:$0xff]
  %v309 = vld [vmem:[%s3 + $0x20] sm:$0xff]
  %v310 = vld [vmem:[%s3 + $0x28] sm:$0xff]
  %v311 = vld [vmem:[%s3 + $0x30] sm:$0xff]
  %v312 = vld [vmem:[%s3 + $0x38] sm:$0xff]
  %v313 = vadd.f32 %v275, %v305
  %v314 = vadd.f32 %v278, %v306
  %v315 = vadd.f32 %v283, %v307
  %v316 = vadd.f32 %v286, %v308
  %v317 = vadd.f32 %v291, %v309
  %v318 = vadd.f32 %v294, %v310
  %v319 = vadd.f32 %v299, %v311
  %v320 = vadd.f32 %v302, %v312
  %vm321 = vcmask 261120
  %v322 = vsel %vm321, %v313, 0.0
  %323 = vadd.xlane.f32.xlu0 %v322
  %v324 = vpop.xlane.xlu0 %323
  %v325 = vsel %vm321, %v314, 0.0
  %326 = vadd.xlane.f32.xlu0 %v325
  %v327 = vpop.xlane.xlu0 %326
  %v328 = vsel %vm321, %v315, 0.0
  %329 = vadd.xlane.f32.xlu0 %v328
  %v330 = vpop.xlane.xlu0 %329
  %v331 = vsel %vm321, %v316, 0.0
  %332 = vadd.xlane.f32.xlu0 %v331
  %v333 = vpop.xlane.xlu0 %332
  %v334 = vsel %vm321, %v317, 0.0
  %335 = vadd.xlane.f32.xlu0 %v334
  %v336 = vpop.xlane.xlu0 %335
  %v337 = vsel %vm321, %v318, 0.0
  %338 = vadd.xlane.f32.xlu0 %v337
  %v339 = vpop.xlane.xlu0 %338
  %v340 = vsel %vm321, %v319, 0.0
  %341 = vadd.xlane.f32.xlu0 %v340
  %v342 = vpop.xlane.xlu0 %341
  %v343 = vsel %vm321, %v320, 0.0
  %344 = vadd.xlane.f32.xlu0 %v343
  %v345 = vpop.xlane.xlu0 %344
  %v346 = vrcp.pop 32.0
  %v347 = vmul.f32 %v324, %v346
  %v348 = vmul.f32 %v327, %v346
  %v349 = vmul.f32 %v330, %v346
  %v350 = vmul.f32 %v333, %v346
  %v351 = vmul.f32 %v336, %v346
  %v352 = vmul.f32 %v339, %v346
  %v353 = vmul.f32 %v342, %v346
  %v354 = vmul.f32 %v345, %v346
  %v355 = vsub.f32 %v313, %v347
  %v356 = vsub.f32 %v314, %v348
  %v357 = vsub.f32 %v315, %v349
  %v358 = vsub.f32 %v316, %v350
  %v359 = vsub.f32 %v317, %v351
  %v360 = vsub.f32 %v318, %v352
  %v361 = vsub.f32 %v319, %v353
  %v362 = vsub.f32 %v320, %v354
  %v363 = vmul.f32 %v355, %v355
  %v364 = vmul.f32 %v356, %v356
  %v365 = vmul.f32 %v357, %v357
  %v366 = vmul.f32 %v358, %v358
  %v367 = vmul.f32 %v359, %v359
  %v368 = vmul.f32 %v360, %v360
  %v369 = vmul.f32 %v361, %v361
  %v370 = vmul.f32 %v362, %v362
  %v371 = vsel %vm321, %v363, 0.0
  %372 = vadd.xlane.f32.xlu0 %v371
  %v373 = vpop.xlane.xlu0 %372
  %v374 = vsel %vm321, %v364, 0.0
  %375 = vadd.xlane.f32.xlu0 %v374
  %v376 = vpop.xlane.xlu0 %375
  %v377 = vsel %vm321, %v365, 0.0
  %378 = vadd.xlane.f32.xlu0 %v377
  %v379 = vpop.xlane.xlu0 %378
  %v380 = vsel %vm321, %v366, 0.0
  %381 = vadd.xlane.f32.xlu0 %v380
  %v382 = vpop.xlane.xlu0 %381
  %v383 = vsel %vm321, %v367, 0.0
  %384 = vadd.xlane.f32.xlu0 %v383
  %v385 = vpop.xlane.xlu0 %384
  %v386 = vsel %vm321, %v368, 0.0
  %387 = vadd.xlane.f32.xlu0 %v386
  %v388 = vpop.xlane.xlu0 %387
  %v389 = vsel %vm321, %v369, 0.0
  %390 = vadd.xlane.f32.xlu0 %v389
  %v391 = vpop.xlane.xlu0 %390
  %v392 = vsel %vm321, %v370, 0.0
  %393 = vadd.xlane.f32.xlu0 %v392
  %v394 = vpop.xlane.xlu0 %393
  %v395 = vmul.f32 %v373, %v346
  %v396 = vmul.f32 %v376, %v346
  %v397 = vmul.f32 %v379, %v346
  %v398 = vmul.f32 %v382, %v346
  %v399 = vmul.f32 %v385, %v346
  %v400 = vmul.f32 %v388, %v346
  %v401 = vmul.f32 %v391, %v346
  %v402 = vmul.f32 %v394, %v346
  %v403 = vadd.f32 %v395, 1e-05
  %v404 = vadd.f32 %v396, 1e-05
  %v405 = vadd.f32 %v397, 1e-05
  %v406 = vadd.f32 %v398, 1e-05
  %v407 = vadd.f32 %v399, 1e-05
  %v408 = vadd.f32 %v400, 1e-05
  %v409 = vadd.f32 %v401, 1e-05
  %v410 = vadd.f32 %v402, 1e-05
  %v411 = vrsqrt.pop %v403
  %v412 = vrsqrt.pop %v404
  %v413 = vrsqrt.pop %v405
  %v414 = vrsqrt.pop %v406
  %v415 = vrsqrt.pop %v407
  %v416 = vrsqrt.pop %v408
  %v417 = vrsqrt.pop %v409
  %v418 = vrsqrt.pop %v410
  %v419 = vmul.f32 %v355, %v411
  %v420 = vmul.f32 %v356, %v412
  %v421 = vmul.f32 %v357, %v413
  %v422 = vmul.f32 %v358, %v414
  %v423 = vmul.f32 %v359, %v415
  %v424 = vmul.f32 %v360, %v416
  %v425 = vmul.f32 %v361, %v417
  %v426 = vmul.f32 %v362, %v418
  %v427 = vld [vmem:[%s4] sm:$0x1]
  %v429 = vlaneseq
  %v430 = vshrl.u32 %v429, 7
  %v431 = vsub.s32 0, %v430
  %v432 = vrot.slane %v427, %v431
  %v434 = vmul.f32 %v419, %v432
  %v435 = vmul.f32 %v420, %v432
  %v436 = vmul.f32 %v421, %v432
  %v437 = vmul.f32 %v422, %v432
  %v438 = vmul.f32 %v423, %v432
  %v439 = vmul.f32 %v424, %v432
  %v440 = vmul.f32 %v425, %v432
  %v441 = vmul.f32 %v426, %v432
  %v442 = vld [vmem:[%s5] sm:$0x1]
  %v444 = vlaneseq
  %v445 = vshrl.u32 %v444, 7
  %v446 = vsub.s32 0, %v445
  %v447 = vrot.slane %v442, %v446
  %v449 = vadd.f32 %v434, %v447
  %v450 = vadd.f32 %v435, %v447
  %v451 = vadd.f32 %v436, %v447
  %v452 = vadd.f32 %v437, %v447
  %v453 = vadd.f32 %v438, %v447
  %v454 = vadd.f32 %v439, %v447
  %v455 = vadd.f32 %v440, %v447
  %v456 = vadd.f32 %v441, %v447
  %457 = vst.msk [vmem:[%s6] sm:$0xff] %vm321, %v449
  %458 = vst.msk [vmem:[%s6 + $0x8] sm:$0xff] %vm321, %v450
  %459 = vst.msk [vmem:[%s6 + $0x10] sm:$0xff] %vm321, %v451
  %460 = vst.msk [vmem:[%s6 + $0x18] sm:$0xff] %vm321, %v452
  %461 = vst.msk [vmem:[%s6 + $0x20] sm:$0xff] %vm321, %v453
  %462 = vst.msk [vmem:[%s6 + $0x28] sm:$0xff] %vm321, %v454
  %463 = vst.msk [vmem:[%s6 + $0x30] sm:$0xff] %vm321, %v455
  %464 = vst.msk [vmem:[%s6 + $0x38] sm:$0xff] %vm321, %v456
  // Predicated region
  $region26: #{hybrid_forward.41} parent=0 // pred_check
    _
  $region27: #{hybrid_forward.41} parent=0 // pred_check_branch
    %466 = sbr.rel (0) target = $region29
  $region28: #{hybrid_forward.41} parent=0 // pred_region
    _
  $region29: #{hybrid_forward.41} parent=0 // pred_fallthru
    _
  // Predicated region
  $region30: #{hybrid_forward.41} parent=0 // pred_check
    _
  $region31: #{hybrid_forward.41} parent=0 // pred_check_branch
    %468 = sbr.rel (0) target = $region33
  $region32: #{hybrid_forward.41} parent=0 // pred_region
    _
  $region33: #{hybrid_forward.41} parent=0 // pred_fallthru
    _

// kernel: hybrid_forward.47
$region0: #{hybrid_forward.47}
  #allocation0 [shape = 'u32[]', space=smem, size = 0x4, offset = 0x4, fixed_abs, tag = 'smem constant byte address 0x4 - core index']
  #allocation1 [shape = 'u32[144,128]{1,0:T(1,128)}', space=vmem, size = 0x12000, scoped, tag = 'internal scratch']
  %s0 = inlined_call_operand.vmem [shape: f32[64,32], index: 0, kind: input, shape index: {}]
  %s1 = inlined_call_operand.vmem [shape: f32[32,4], index: 1, kind: input, shape index: {}]
  %s2 = inlined_call_operand.vmem [shape: f32[1,4], index: 2, kind: input, shape index: {}]
  %s3 = inlined_call_operand.vmem [shape: f32[64,4], index: 3, kind: output, shape index: {}]
  %s4 = sld [smem:[#allocation0]]
  $region22: #{hybrid_forward.47} parent=0
    _
  %s6 = ssub.s32 1, %s4
  %s7 = scalar_select 0, %s6, %s4
  // Predicated region
  $region2: #{hybrid_forward.47} parent=0 // pred_check
    _
  $region3: #{hybrid_forward.47} parent=0 // pred_check_branch
    %9 = sbr.rel (0) target = $region5
  $region4: #{hybrid_forward.47} parent=0 // pred_region
    _
  $region5: #{hybrid_forward.47} parent=0 // pred_fallthru
    _
  // Predicated region
  $region6: #{hybrid_forward.47} parent=0 // pred_check
    _
  $region7: #{hybrid_forward.47} parent=0 // pred_check_branch
    %11 = sbr.rel (0) target = $region9
  $region8: #{hybrid_forward.47} parent=0 // pred_region
    _
  $region9: #{hybrid_forward.47} parent=0 // pred_fallthru
    _
  // Predicated region
  $region10: #{hybrid_forward.47} parent=0 // pred_check
    _
  $region11: #{hybrid_forward.47} parent=0 // pred_check_branch
    %13 = sbr.rel (0) target = $region13
  $region12: #{hybrid_forward.47} parent=0 // pred_region
    _
  $region13: #{hybrid_forward.47} parent=0 // pred_fallthru
    _
  %v15 = vld [vmem:[%s0] sm:$0xff]
  %v16 = vld [vmem:[%s0 + $0x8] sm:$0xff]
  %v17 = vld [vmem:[%s0 + $0x10] sm:$0xff]
  %v18 = vld [vmem:[%s0 + $0x18] sm:$0xff]
  %v19 = vld [vmem:[%s0 + $0x20] sm:$0xff]
  %v20 = vld [vmem:[%s0 + $0x28] sm:$0xff]
  %v21 = vld [vmem:[%s0 + $0x30] sm:$0xff]
  %v22 = vld [vmem:[%s0 + $0x38] sm:$0xff]
  %v23 = vpack.c.bf16 %v16, %v15
  %v24 = vpack.c.bf16 %v18, %v17
  %v25 = vpack.c.bf16 %v20, %v19
  %v26 = vpack.c.bf16 %v22, %v21
  %v27 = vld [vmem:[%s1] sm:$0xff]
  %v28 = vld [vmem:[%s1 + $0x8] sm:$0xff]
  %v29 = vld [vmem:[%s1 + $0x10] sm:$0xff]
  %v30 = vld [vmem:[%s1 + $0x18] sm:$0xff]
  %v31 = vpack.c.bf16 %v28, %v27
  %v32 = vpack.c.bf16 %v30, %v29
  %v33 = vld [vmem:[%s2] sm:$0x1]
  %v35 = vlaneseq
  %v36 = vshrl.u32 %v35, 7
  %v37 = vsub.s32 0, %v36
  %v38 = vrot.slane %v33, %v37
  %vm40 = vcmask 261120
  %v42 = vsel %vm40, %v23, 0
  %v45 = vsel %vm40, %v24, 0
  %v48 = vsel %vm40, %v25, 0
  %v51 = vsel %vm40, %v26, 0
  %53 = vmatprep.subr.bf16.mxu0 0
  %54 = vmatpush1.bf16.msra.mxu0 %v31
  %55 = vmatprep.subr.bf16.mxu0 0
  %56 = vmatpush1.bf16.msra.mxu0 %v32
  %57 = vmatprep.subr.bf16.mxu0 0
  %58 = vmatpush1.bf16.msra.mxu0 0
  %59 = vmatprep.subr.bf16.mxu0 0
  %60 = vmatpush1.bf16.msra.mxu0 0
  %61 = vmatprep.subr.bf16.mxu0 0
  %62 = vmatpush1.bf16.msra.mxu0 0
  %63 = vmatprep.subr.bf16.mxu0 0
  %64 = vmatpush1.bf16.msra.mxu0 0
  %65 = vmatprep.subr.bf16.mxu0 0
  %66 = vmatpush1.bf16.msra.mxu0 0
  %67 = vmatprep.subr.bf16.mxu0 0
  %68 = vmatpush1.bf16.msra.mxu0 0
  %69 = vmatprep.subr.bf16.mxu0 0
  %70 = vmatpush1.bf16.msra.mxu0 0
  %71 = vmatprep.subr.bf16.mxu0 0
  %72 = vmatpush1.bf16.msra.mxu0 0
  %73 = vmatprep.subr.bf16.mxu0 0
  %74 = vmatpush1.bf16.msra.mxu0 0
  %75 = vmatprep.subr.bf16.mxu0 0
  %76 = vmatpush1.bf16.msra.mxu0 0
  %77 = vmatprep.subr.bf16.mxu0 0
  %78 = vmatpush1.bf16.msra.mxu0 0
  %79 = vmatprep.subr.bf16.mxu0 0
  %80 = vmatpush1.bf16.msra.mxu0 0
  %81 = vmatprep.subr.bf16.mxu0 0
  %82 = vmatpush1.bf16.msra.mxu0 0
  %83 = vmatprep.subr.bf16.mxu0 0
  %84 = vmatpush1.bf16.msra.mxu0 0
  %85 = vmatprep.mubr.bf16.mxu0 0
  %86 = vmatmul.mubr.bf16.gmra.mrb[0].mxu0 %v42
  %v87 = vpop.f32.mrb[0].mxu0
  %v88 = vadd.f32 %v38, %v87
  %v89 = vpop.f32.mrb[0].mxu0
  %v90 = vpop.f32.mrb[0].mxu0
  %v91 = vadd.f32 %v38, %v90
  %v92 = vpop.f32.mrb[0].mxu0
  %93 = vmatprep.mubr.bf16.mxu0 0
  %94 = vmatmul.mubr.bf16.gmra.mrb[0].mxu0 %v45
  %v95 = vpop.f32.mrb[0].mxu0
  %v96 = vadd.f32 %v38, %v95
  %v97 = vpop.f32.mrb[0].mxu0
  %v98 = vpop.f32.mrb[0].mxu0
  %v99 = vadd.f32 %v38, %v98
  %v100 = vpop.f32.mrb[0].mxu0
  %101 = vmatprep.mubr.bf16.mxu0 0
  %102 = vmatmul.mubr.bf16.gmra.mrb[0].mxu0 %v48
  %v103 = vpop.f32.mrb[0].mxu0
  %v104 = vadd.f32 %v38, %v103
  %v105 = vpop.f32.mrb[0].mxu0
  %v106 = vpop.f32.mrb[0].mxu0
  %v107 = vadd.f32 %v38, %v106
  %v108 = vpop.f32.mrb[0].mxu0
  %109 = vmatprep.mubr.bf16.mxu0 0
  %110 = vmatmul.mubr.bf16.gmra.mrb[0].mxu0 %v51
  %v111 = vpop.f32.mrb[0].mxu0
  %v112 = vadd.f32 %v38, %v111
  %v113 = vpop.f32.mrb[0].mxu0
  %v114 = vpop.f32.mrb[0].mxu0
  %v115 = vadd.f32 %v38, %v114
  %v116 = vpop.f32.mrb[0].mxu0
  %117 = vdwg.mxu0
  %vm118 = vcmask 31744
  %119 = vst.msk [vmem:[%s3] sm:$0xff] %vm118, %v88
  %120 = vst.msk [vmem:[%s3 + $0x8] sm:$0xff] %vm118, %v91
  %121 = vst.msk [vmem:[%s3 + $0x10] sm:$0xff] %vm118, %v96
  %122 = vst.msk [vmem:[%s3 + $0x18] sm:$0xff] %vm118, %v99
  %123 = vst.msk [vmem:[%s3 + $0x20] sm:$0xff] %vm118, %v104
  %124 = vst.msk [vmem:[%s3 + $0x28] sm:$0xff] %vm118, %v107
  %125 = vst.msk [vmem:[%s3 + $0x30] sm:$0xff] %vm118, %v112
  %126 = vst.msk [vmem:[%s3 + $0x38] sm:$0xff] %vm118, %v115
  // Predicated region
  $region14: #{hybrid_forward.47} parent=0 // pred_check
    _
  $region15: #{hybrid_forward.47} parent=0 // pred_check_branch
    %128 = sbr.rel (0) target = $region17
  $region16: #{hybrid_forward.47} parent=0 // pred_region
    _
  $region17: #{hybrid_forward.47} parent=0 // pred_fallthru
    _
  // Predicated region
  $region18: #{hybrid_forward.47} parent=0 // pred_check
    _
  $region19: #{hybrid_forward.47} parent=0 // pred_check_branch
    %130 = sbr.rel (0) target = $region21
  $region20: #{hybrid_forward.47} parent=0 // pred_region
    _
  $region21: #{hybrid_forward.47} parent=0 // pred_fallthru
    _

// kernel: hybrid_forward.48
$region0: #{hybrid_forward.48}
  #allocation0 [shape = 'u32[]', space=smem, size = 0x4, offset = 0x4, fixed_abs, tag = 'smem constant byte address 0x4 - core index']
  #allocation1 [shape = 'u32[144,128]{1,0:T(1,128)}', space=vmem, size = 0x12000, scoped, tag = 'internal scratch']
  %s0 = inlined_call_operand.vmem [shape: f32[64,8], index: 0, kind: input, shape index: {}]
  %s1 = inlined_call_operand.vmem [shape: f32[8,16], index: 1, kind: input, shape index: {}]
  %s2 = inlined_call_operand.vmem [shape: f32[1,16], index: 2, kind: input, shape index: {}]
  %s3 = inlined_call_operand.vmem [shape: f32[64,16], index: 3, kind: output, shape index: {}]
  %s4 = sld [smem:[#allocation0]]
  $region22: #{hybrid_forward.48} parent=0
    _
  %s6 = ssub.s32 1, %s4
  %s7 = scalar_select 0, %s6, %s4
  // Predicated region
  $region2: #{hybrid_forward.48} parent=0 // pred_check
    _
  $region3: #{hybrid_forward.48} parent=0 // pred_check_branch
    %9 = sbr.rel (0) target = $region5
  $region4: #{hybrid_forward.48} parent=0 // pred_region
    _
  $region5: #{hybrid_forward.48} parent=0 // pred_fallthru
    _
  // Predicated region
  $region6: #{hybrid_forward.48} parent=0 // pred_check
    _
  $region7: #{hybrid_forward.48} parent=0 // pred_check_branch
    %11 = sbr.rel (0) target = $region9
  $region8: #{hybrid_forward.48} parent=0 // pred_region
    _
  $region9: #{hybrid_forward.48} parent=0 // pred_fallthru
    _
  // Predicated region
  $region10: #{hybrid_forward.48} parent=0 // pred_check
    _
  $region11: #{hybrid_forward.48} parent=0 // pred_check_branch
    %13 = sbr.rel (0) target = $region13
  $region12: #{hybrid_forward.48} parent=0 // pred_region
    _
  $region13: #{hybrid_forward.48} parent=0 // pred_fallthru
    _
  %v15 = vld [vmem:[%s0] sm:$0xff]
  %v16 = vld [vmem:[%s0 + $0x8] sm:$0xff]
  %v17 = vld [vmem:[%s0 + $0x10] sm:$0xff]
  %v18 = vld [vmem:[%s0 + $0x18] sm:$0xff]
  %v19 = vld [vmem:[%s0 + $0x20] sm:$0xff]
  %v20 = vld [vmem:[%s0 + $0x28] sm:$0xff]
  %v21 = vld [vmem:[%s0 + $0x30] sm:$0xff]
  %v22 = vld [vmem:[%s0 + $0x38] sm:$0xff]
  %v23 = vpack.c.bf16 %v16, %v15
  %v24 = vpack.c.bf16 %v18, %v17
  %v25 = vpack.c.bf16 %v20, %v19
  %v26 = vpack.c.bf16 %v22, %v21
  %v27 = vld [vmem:[%s1] sm:$0xff]
  %v28 = vpack.c.bf16 %v27, %v27
  %v29 = vld [vmem:[%s2] sm:$0x1]
  %v31 = vlaneseq
  %v32 = vshrl.u32 %v31, 7
  %v33 = vsub.s32 0, %v32
  %v34 = vrot.slane %v29, %v33
  %vm36 = vcmask 64512
  %v38 = vsel %vm36, %v23, 0
  %v41 = vsel %vm36, %v24, 0
  %v44 = vsel %vm36, %v25, 0
  %v47 = vsel %vm36, %v26, 0
  %vm49 = vcmask 1043456
  %v51 = vsel %vm49, %v28, 0
  %53 = vmatprep.subr.bf16.mxu0 0
  %54 = vmatpush1.bf16.msra.mxu0 %v51
  %55 = vmatprep.subr.bf16.mxu0 0
  %56 = vmatpush1.bf16.msra.mxu0 0
  %57 = vmatprep.subr.bf16.mxu0 0
  %58 = vmatpush1.bf16.msra.mxu0 0
  %59 = vmatprep.subr.bf16.mxu0 0
  %60 = vmatpush1.bf16.msra.mxu0 0
  %61 = vmatprep.subr.bf16.mxu0 0
  %62 = vmatpush1.bf16.msra.mxu0 0
  %63 = vmatprep.subr.bf16.mxu0 0
  %64 = vmatpush1.bf16.msra.mxu0 0
  %65 = vmatprep.subr.bf16.mxu0 0
  %66 = vmatpush1.bf16.msra.mxu0 0
  %67 = vmatprep.subr.bf16.mxu0 0
  %68 = vmatpush1.bf16.msra.mxu0 0
  %69 = vmatprep.subr.bf16.mxu0 0
  %70 = vmatpush1.bf16.msra.mxu0 0
  %71 = vmatprep.subr.bf16.mxu0 0
  %72 = vmatpush1.bf16.msra.mxu0 0
  %73 = vmatprep.subr.bf16.mxu0 0
  %74 = vmatpush1.bf16.msra.mxu0 0
  %75 = vmatprep.subr.bf16.mxu0 0
  %76 = vmatpush1.bf16.msra.mxu0 0
  %77 = vmatprep.subr.bf16.mxu0 0
  %78 = vmatpush1.bf16.msra.mxu0 0
  %79 = vmatprep.subr.bf16.mxu0 0
  %80 = vmatpush1.bf16.msra.mxu0 0
  %81 = vmatprep.subr.bf16.mxu0 0
  %82 = vmatpush1.bf16.msra.mxu0 0
  %83 = vmatprep.subr.bf16.mxu0 0
  %84 = vmatpush1.bf16.msra.mxu0 0
  %85 = vmatprep.mubr.bf16.mxu0 0
  %86 = vmatmul.mubr.bf16.gmra.mrb[0].mxu0 %v38
  %v87 = vpop.f32.mrb[0].mxu0
  %v88 = vadd.f32 %v34, %v87
  %v89 = vpop.f32.mrb[0].mxu0
  %v90 = vpop.f32.mrb[0].mxu0
  %v91 = vadd.f32 %v34, %v90
  %v92 = vpop.f32.mrb[0].mxu0
  %93 = vmatprep.mubr.bf16.mxu0 0
  %94 = vmatmul.mubr.bf16.gmra.mrb[0].mxu0 %v41
  %v95 = vpop.f32.mrb[0].mxu0
  %v96 = vadd.f32 %v34, %v95
  %v97 = vpop.f32.mrb[0].mxu0
  %v98 = vpop.f32.mrb[0].mxu0
  %v99 = vadd.f32 %v34, %v98
  %v100 = vpop.f32.mrb[0].mxu0
  %101 = vmatprep.mubr.bf16.mxu0 0
  %102 = vmatmul.mubr.bf16.gmra.mrb[0].mxu0 %v44
  %v103 = vpop.f32.mrb[0].mxu0
  %v104 = vadd.f32 %v34, %v103
  %v105 = vpop.f32.mrb[0].mxu0
  %v106 = vpop.f32.mrb[0].mxu0
  %v107 = vadd.f32 %v34, %v106
  %v108 = vpop.f32.mrb[0].mxu0
  %109 = vmatprep.mubr.bf16.mxu0 0
  %110 = vmatmul.mubr.bf16.gmra.mrb[0].mxu0 %v47
  %v111 = vpop.f32.mrb[0].mxu0
  %v112 = vadd.f32 %v34, %v111
  %v113 = vpop.f32.mrb[0].mxu0
  %v114 = vpop.f32.mrb[0].mxu0
  %v115 = vadd.f32 %v34, %v114
  %v116 = vpop.f32.mrb[0].mxu0
  %117 = vdwg.mxu0
  %vm118 = vcmask 130048
  %119 = vst.msk [vmem:[%s3] sm:$0xff] %vm118, %v88
  %120 = vst.msk [vmem:[%s3 + $0x8] sm:$0xff] %vm118, %v91
  %121 = vst.msk [vmem:[%s3 + $0x10] sm:$0xff] %vm118, %v96
  %122 = vst.msk [vmem:[%s3 + $0x18] sm:$0xff] %vm118, %v99
  %123 = vst.msk [vmem:[%s3 + $0x20] sm:$0xff] %vm118, %v104
  %124 = vst.msk [vmem:[%s3 + $0x28] sm:$0xff] %vm118, %v107
  %125 = vst.msk [vmem:[%s3 + $0x30] sm:$0xff] %vm118, %v112
  %126 = vst.msk [vmem:[%s3 + $0x38] sm:$0xff] %vm118, %v115
  // Predicated region
  $region14: #{hybrid_forward.48} parent=0 // pred_check
    _
  $region15: #{hybrid_forward.48} parent=0 // pred_check_branch
    %128 = sbr.rel (0) target = $region17
  $region16: #{hybrid_forward.48} parent=0 // pred_region
    _
  $region17: #{hybrid_forward.48} parent=0 // pred_fallthru
    _
  // Predicated region
  $region18: #{hybrid_forward.48} parent=0 // pred_check
    _
  $region19: #{hybrid_forward.48} parent=0 // pred_check_branch
    %130 = sbr.rel (0) target = $region21
  $region20: #{hybrid_forward.48} parent=0 // pred_region
    _
  $region21: #{hybrid_forward.48} parent=0 // pred_fallthru
    _

// kernel: hybrid_forward.49
$region0: #{hybrid_forward.49}
  #allocation0 [shape = 'u32[]', space=smem, size = 0x4, offset = 0x4, fixed_abs, tag = 'smem constant byte address 0x4 - core index']
  #allocation1 [shape = 'u32[144,128]{1,0:T(1,128)}', space=vmem, size = 0x12000, scoped, tag = 'internal scratch']
  %s0 = inlined_call_operand.vmem [shape: f32[64,16], index: 0, kind: input, shape index: {}]
  %s1 = inlined_call_operand.vmem [shape: f32[16,4], index: 1, kind: input, shape index: {}]
  %s2 = inlined_call_operand.vmem [shape: f32[1,4], index: 2, kind: input, shape index: {}]
  %s3 = inlined_call_operand.vmem [shape: f32[64,4], index: 3, kind: output, shape index: {}]
  %s4 = sld [smem:[#allocation0]]
  $region22: #{hybrid_forward.49} parent=0
    _
  %s6 = ssub.s32 1, %s4
  %s7 = scalar_select 0, %s6, %s4
  // Predicated region
  $region2: #{hybrid_forward.49} parent=0 // pred_check
    _
  $region3: #{hybrid_forward.49} parent=0 // pred_check_branch
    %9 = sbr.rel (0) target = $region5
  $region4: #{hybrid_forward.49} parent=0 // pred_region
    _
  $region5: #{hybrid_forward.49} parent=0 // pred_fallthru
    _
  // Predicated region
  $region6: #{hybrid_forward.49} parent=0 // pred_check
    _
  $region7: #{hybrid_forward.49} parent=0 // pred_check_branch
    %11 = sbr.rel (0) target = $region9
  $region8: #{hybrid_forward.49} parent=0 // pred_region
    _
  $region9: #{hybrid_forward.49} parent=0 // pred_fallthru
    _
  // Predicated region
  $region10: #{hybrid_forward.49} parent=0 // pred_check
    _
  $region11: #{hybrid_forward.49} parent=0 // pred_check_branch
    %13 = sbr.rel (0) target = $region13
  $region12: #{hybrid_forward.49} parent=0 // pred_region
    _
  $region13: #{hybrid_forward.49} parent=0 // pred_fallthru
    _
  %v15 = vld [vmem:[%s0] sm:$0xff]
  %v16 = vld [vmem:[%s0 + $0x8] sm:$0xff]
  %v17 = vld [vmem:[%s0 + $0x10] sm:$0xff]
  %v18 = vld [vmem:[%s0 + $0x18] sm:$0xff]
  %v19 = vld [vmem:[%s0 + $0x20] sm:$0xff]
  %v20 = vld [vmem:[%s0 + $0x28] sm:$0xff]
  %v21 = vld [vmem:[%s0 + $0x30] sm:$0xff]
  %v22 = vld [vmem:[%s0 + $0x38] sm:$0xff]
  %v23 = vpack.c.bf16 %v16, %v15
  %v24 = vpack.c.bf16 %v18, %v17
  %v25 = vpack.c.bf16 %v20, %v19
  %v26 = vpack.c.bf16 %v22, %v21
  %v27 = vld [vmem:[%s1] sm:$0xff]
  %v28 = vld [vmem:[%s1 + $0x8] sm:$0xff]
  %v29 = vpack.c.bf16 %v28, %v27
  %v30 = vld [vmem:[%s2] sm:$0x1]
  %v32 = vlaneseq
  %v33 = vshrl.u32 %v32, 7
  %v34 = vsub.s32 0, %v33
  %v35 = vrot.slane %v30, %v34
  %vm37 = vcmask 130048
  %v39 = vsel %vm37, %v23, 0
  %v42 = vsel %vm37, %v24, 0
  %v45 = vsel %vm37, %v25, 0
  %v48 = vsel %vm37, %v26, 0
  %50 = vmatprep.subr.bf16.mxu0 0
  %51 = vmatpush1.bf16.msra.mxu0 %v29
  %52 = vmatprep.subr.bf16.mxu0 0
  %53 = vmatpush1.bf16.msra.mxu0 0
  %54 = vmatprep.subr.bf16.mxu0 0
  %55 = vmatpush1.bf16.msra.mxu0 0
  %56 = vmatprep.subr.bf16.mxu0 0
  %57 = vmatpush1.bf16.msra.mxu0 0
  %58 = vmatprep.subr.bf16.mxu0 0
  %59 = vmatpush1.bf16.msra.mxu0 0
  %60 = vmatprep.subr.bf16.mxu0 0
  %61 = vmatpush1.bf16.msra.mxu0 0
  %62 = vmatprep.subr.bf16.mxu0 0
  %63 = vmatpush1.bf16.msra.mxu0 0
  %64 = vmatprep.subr.bf16.mxu0 0
  %65 = vmatpush1.bf16.msra.mxu0 0
  %66 = vmatprep.subr.bf16.mxu0 0
  %67 = vmatpush1.bf16.msra.mxu0 0
  %68 = vmatprep.subr.bf16.mxu0 0
  %69 = vmatpush1.bf16.msra.mxu0 0
  %70 = vmatprep.subr.bf16.mxu0 0
  %71 = vmatpush1.bf16.msra.mxu0 0
  %72 = vmatprep.subr.bf16.mxu0 0
  %73 = vmatpush1.bf16.msra.mxu0 0
  %74 = vmatprep.subr.bf16.mxu0 0
  %75 = vmatpush1.bf16.msra.mxu0 0
  %76 = vmatprep.subr.bf16.mxu0 0
  %77 = vmatpush1.bf16.msra.mxu0 0
  %78 = vmatprep.subr.bf16.mxu0 0
  %79 = vmatpush1.bf16.msra.mxu0 0
  %80 = vmatprep.subr.bf16.mxu0 0
  %81 = vmatpush1.bf16.msra.mxu0 0
  %82 = vmatprep.mubr.bf16.mxu0 0
  %83 = vmatmul.mubr.bf16.gmra.mrb[0].mxu0 %v39
  %v84 = vpop.f32.mrb[0].mxu0
  %v85 = vadd.f32 %v35, %v84
  %v86 = vpop.f32.mrb[0].mxu0
  %v87 = vpop.f32.mrb[0].mxu0
  %v88 = vadd.f32 %v35, %v87
  %v89 = vpop.f32.mrb[0].mxu0
  %90 = vmatprep.mubr.bf16.mxu0 0
  %91 = vmatmul.mubr.bf16.gmra.mrb[0].mxu0 %v42
  %v92 = vpop.f32.mrb[0].mxu0
  %v93 = vadd.f32 %v35, %v92
  %v94 = vpop.f32.mrb[0].mxu0
  %v95 = vpop.f32.mrb[0].mxu0
  %v96 = vadd.f32 %v35, %v95
  %v97 = vpop.f32.mrb[0].mxu0
  %98 = vmatprep.mubr.bf16.mxu0 0
  %99 = vmatmul.mubr.bf16.gmra.mrb[0].mxu0 %v45
  %v100 = vpop.f32.mrb[0].mxu0
  %v101 = vadd.f32 %v35, %v100
  %v102 = vpop.f32.mrb[0].mxu0
  %v103 = vpop.f32.mrb[0].mxu0
  %v104 = vadd.f32 %v35, %v103
  %v105 = vpop.f32.mrb[0].mxu0
  %106 = vmatprep.mubr.bf16.mxu0 0
  %107 = vmatmul.mubr.bf16.gmra.mrb[0].mxu0 %v48
  %v108 = vpop.f32.mrb[0].mxu0
  %v109 = vadd.f32 %v35, %v108
  %v110 = vpop.f32.mrb[0].mxu0
  %v111 = vpop.f32.mrb[0].mxu0
  %v112 = vadd.f32 %v35, %v111
  %v113 = vpop.f32.mrb[0].mxu0
  %114 = vdwg.mxu0
  %vm115 = vcmask 31744
  %116 = vst.msk [vmem:[%s3] sm:$0xff] %vm115, %v85
  %117 = vst.msk [vmem:[%s3 + $0x8] sm:$0xff] %vm115, %v88
  %118 = vst.msk [vmem:[%s3 + $0x10] sm:$0xff] %vm115, %v93
  %119 = vst.msk [vmem:[%s3 + $0x18] sm:$0xff] %vm115, %v96
  %120 = vst.msk [vmem:[%s3 + $0x20] sm:$0xff] %vm115, %v101
  %121 = vst.msk [vmem:[%s3 + $0x28] sm:$0xff] %vm115, %v104
  %122 = vst.msk [vmem:[%s3 + $0x30] sm:$0xff] %vm115, %v109
  %123 = vst.msk [vmem:[%s3 + $0x38] sm:$0xff] %vm115, %v112
  // Predicated region
  $region14: #{hybrid_forward.49} parent=0 // pred_check
    _
  $region15: #{hybrid_forward.49} parent=0 // pred_check_branch
    %125 = sbr.rel (0) target = $region17
  $region16: #{hybrid_forward.49} parent=0 // pred_region
    _
  $region17: #{hybrid_forward.49} parent=0 // pred_fallthru
    _
  // Predicated region
  $region18: #{hybrid_forward.49} parent=0 // pred_check
    _
  $region19: #{hybrid_forward.49} parent=0 // pred_check_branch
    %127 = sbr.rel (0) target = $region21
  $region20: #{hybrid_forward.49} parent=0 // pred_region
    _
  $region21: #{hybrid_forward.49} parent=0 // pred_fallthru
    _

</llo_original>
